<compile_context>
chip_gen: v7x
topology: tpu7x:2x2x1
jax: 0.10.0
libtpu: 0.0.40
codegen_flags: <defaults>
</compile_context>

<pallas_src>
import functools

import jax
import jax.numpy as jnp
from jax import lax
from jax.experimental import pallas as pl
from jax.experimental.pallas import tpu as pltpu


# ---------------------------------------------------------------------------
# Kernel 1: GRU recurrence.  grid = (batch_tiles, time_chunks), time innermost.
# The hidden state is carried in a f32 VMEM scratch across time chunks.
# ---------------------------------------------------------------------------
def _gru_kernel(gi_ref, h0_ref, whh_ref, bhh_ref, out_ref, hfin_ref, h_scr,
                *, tc, approx):
    c = pl.program_id(1)

    @pl.when(c == 0)
    def _():
        h_scr[...] = h0_ref[:, 0, :].astype(jnp.float32)

    H = h_scr.shape[-1]
    bhh = bhh_ref[...].astype(jnp.float32)            # (1, 3H)
    h = h_scr[...]                                    # (TB, H) f32 carry

    def sigmoid(v):
        den = 1.0 + jnp.exp(-v)                       # exp -> EUP
        if approx:
            return pl.reciprocal(den, approx=True)    # EUP vrcp (perf config)
        return 1.0 / den                              # exact (default config)

    # Static unroll over the time chunk: every slice is a static (zero-cost)
    # ref index and the LLO scheduler sees the whole chunk.
    # TODO(synk): for very long chunks switch to lax.fori_loop + pl.ds.
    for t in range(tc):
        gi_t = gi_ref[:, t, :].astype(jnp.float32)    # hoisted input projection
        gh = jnp.dot(h.astype(whh_ref.dtype), whh_ref[...],
                     preferred_element_type=jnp.float32) + bhh
        r = sigmoid(gi_t[:, :H] + gh[:, :H])
        z = sigmoid(gi_t[:, H:2 * H] + gh[:, H:2 * H])
        n = jnp.tanh(gi_t[:, 2 * H:] + r * gh[:, 2 * H:])
        h = (1.0 - z) * n + z * h
        out_ref[:, t, :] = h.astype(out_ref.dtype)    # batch-first, lane-dense

    h_scr[...] = h

    @pl.when(c == pl.num_programs(1) - 1)
    def _():
        hfin_ref[:, 0, :] = h.astype(hfin_ref.dtype)


# ---------------------------------------------------------------------------
# Kernel 2: fused heads.  cat([gru_out, action], -1) is folded into split
# weights; the fc and rew1 projections are packed into one matmul per operand.
# ---------------------------------------------------------------------------
def _heads_kernel(g_ref, a_ref, w1g_ref, w1a_ref, b1_ref, wo_ref, bo_ref,
                  wr2_ref, br2_ref, ns_ref, rew_ref, *, rew_cols):
    mm_dt = w1g_ref.dtype
    g = g_ref[...].astype(mm_dt)
    a = a_ref[...].astype(mm_dt)

    # Packed first layer: columns [0:rew_cols] -> rew_model layer 1,
    # [rew_cols:] -> fc.  rew_cols == H so the slice boundary is lane 128.
    h1 = (jnp.dot(g, w1g_ref[...], preferred_element_type=jnp.float32)
          + jnp.dot(a, w1a_ref[...], preferred_element_type=jnp.float32)
          + b1_ref[...].astype(jnp.float32))
    r_pre = h1[:, :rew_cols]
    fc_pre = h1[:, rew_cols:]

    # pred_next_state = out(ELU(fc(cat[g, a])))
    elu = jnp.where(fc_pre > 0, fc_pre, jnp.exp(fc_pre) - 1.0)   # ELU, alpha=1
    ns = (jnp.dot(elu.astype(wo_ref.dtype), wo_ref[...],
                  preferred_element_type=jnp.float32)
          + bo_ref[...].astype(jnp.float32))
    ns_ref[...] = ns.astype(ns_ref.dtype)

    # pred_rew = tanh(rew2(ReLU(rew1(cat[g, a])))).  The (TN,H)@(H,1) rew2
    # projection is a VPU multiply + XLU lane reduction (no 1-lane MXU matmul).
    relu = jnp.maximum(r_pre, 0.0)
    rew = (jnp.sum(relu * wr2_ref[...].astype(jnp.float32), axis=-1,
                   keepdims=True)
           + br2_ref[...].astype(jnp.float32))
    rew_ref[...] = jnp.tanh(rew).astype(rew_ref.dtype)


# ---------------------------------------------------------------------------
# Wrapper
# ---------------------------------------------------------------------------
def _vmem_limit_bytes():
    # Size the scoped-VMEM limit per generation (v7x: 64 MiB, v5e/v6e: 128 MiB).
    try:
        cap = pltpu.get_tpu_info().vmem_capacity_bytes
        return int(min(96 * 1024 * 1024, (cap * 3) // 4))
    except Exception:
        return None


def ca3net_forward(x, hidden, action, params, *,
                   batch_tile=256, row_tile=1024, time_chunk=16,
                   matmul_dtype=None, approx_sigmoid=False):
    """x: (B, T, S); hidden: None or (1, B, H)/(B, H); action: (B, T, A).

    Returns (gru_out (B,T,H), pred_next_state (B,T,H), pred_rew (B,T,1),
             gru_hidden (1,B,H)) — same as CA3Net.forward.
    """
    B, T, S = x.shape
    A = action.shape[-1]
    w_ih, w_hh, b_ih, b_hh = params["gru"]
    wf, bf = params["fc"]
    wo, bo = params["out"]
    wr1, br1 = params["rew1"]
    wr2, br2 = params["rew2"]
    H = w_hh.shape[0]
    H2 = wo.shape[0]
    N = B * T
    f32 = jnp.float32
    mm_dt = x.dtype if matmul_dtype is None else matmul_dtype
    out_dt = x.dtype
    vmem_limit = _vmem_limit_bytes()

    # ---- hoisted GRU input projection: one large fully-parallel matmul ----
    gi = (jnp.dot(x.reshape(N, S).astype(mm_dt), w_ih.astype(mm_dt),
                  preferred_element_type=f32,
                  precision=lax.Precision.HIGHEST)
          + b_ih.astype(f32)).reshape(B, T, 3 * H)

    h0 = (jnp.zeros((B, H), x.dtype) if hidden is None
          else hidden.reshape(B, H).astype(x.dtype))
    h0 = h0.reshape(B, 1, H)      # 3-D so the batch tile dim is unconstrained

    # ---- tiling: >=2 "parallel" tiles for v7x megacore, Tc | T time chunks ----
    TB = min(B, batch_tile)
    if B > 1 and pl.cdiv(B, TB) < 2:
        TB = pl.cdiv(B, 2)
    nb = pl.cdiv(B, TB)

    if T <= time_chunk:
        Tc = T
    else:
        Tc = max(16, (time_chunk // 16) * 16)
        while Tc > 16 and T % Tc:
            Tc -= 16
        if T % Tc:
            Tc = T                # TODO(synk): pad/mask ragged sequence lengths
    nt = T // Tc

    gru_cost = pl.CostEstimate(
        flops=2 * N * H * 3 * H,
        transcendentals=3 * N * H,
        bytes_accessed=4 * (N * 4 * H + 2 * B * H + (H + 1) * 3 * H))

    gru_out, h_fin = pl.pallas_call(
        functools.partial(_gru_kernel, tc=Tc, approx=approx_sigmoid),
        out_shape=(jax.ShapeDtypeStruct((B, T, H), out_dt),
                   jax.ShapeDtypeStruct((B, 1, H), out_dt)),
        grid=(nb, nt),
        in_specs=[
            pl.BlockSpec((TB, Tc, 3 * H), lambda i, c: (i, c, 0)),
            pl.BlockSpec((TB, 1, H), lambda i, c: (i, 0, 0)),
            pl.BlockSpec((H, 3 * H), lambda i, c: (0, 0)),      # VMEM-resident
            pl.BlockSpec((1, 3 * H), lambda i, c: (0, 0)),
        ],
        out_specs=(
            pl.BlockSpec((TB, Tc, H), lambda i, c: (i, c, 0)),  # batch-first
            pl.BlockSpec((TB, 1, H), lambda i, c: (i, 0, 0)),
        ),
        scratch_shapes=[pltpu.VMEM((TB, H), jnp.float32)],
        compiler_params=pltpu.CompilerParams(
            dimension_semantics=("parallel", "arbitrary"),
            vmem_limit_bytes=vmem_limit),
        cost_estimate=gru_cost,
    )(gi, h0, w_hh.astype(mm_dt), b_hh.astype(f32))

    # ---- fused heads over flattened rows (reshape is free, no transpose) ----
    w1g = jnp.concatenate([wr1[:H], wf[:H]], axis=1).astype(mm_dt)   # (H, H+H2)
    w1a = jnp.concatenate([wr1[H:], wf[H:]], axis=1).astype(mm_dt)   # (A, H+H2)
    b1 = jnp.concatenate([br1, bf], axis=1).astype(f32)              # (1, H+H2)
    wr2_row = wr2.reshape(1, H).astype(f32)

    TN = min(N, row_tile)
    if TN < N:
        TN = min(((TN + 15) // 16) * 16, N)
    cand = ((pl.cdiv(N, 2) + 15) // 16) * 16
    if pl.cdiv(N, TN) < 2 and cand < N:
        TN = cand                 # >=2 "parallel" row tiles for v7x megacore
    nr = pl.cdiv(N, TN)

    g_flat = gru_out.reshape(N, H)     # .detach() is autograd-only: no-op here
    a_flat = action.reshape(N, A)

    heads_cost = pl.CostEstimate(
        flops=2 * N * ((H + A) * (H + H2) + H2 * H + H),
        transcendentals=N * (H2 + 1),
        bytes_accessed=4 * (N * (2 * H + A + 1)
                            + (H + A) * (H + H2) + H2 * H + 2 * H))

    ns_flat, rew_flat = pl.pallas_call(
        functools.partial(_heads_kernel, rew_cols=wr1.shape[1]),
        out_shape=(jax.ShapeDtypeStruct((N, H), out_dt),
                   jax.ShapeDtypeStruct((N, 1), out_dt)),
        grid=(nr,),
        in_specs=[
            pl.BlockSpec((TN, H), lambda i: (i, 0)),
            pl.BlockSpec((TN, A), lambda i: (i, 0)),
            pl.BlockSpec((H, H + H2), lambda i: (0, 0)),
            pl.BlockSpec((A, H + H2), lambda i: (0, 0)),
            pl.BlockSpec((1, H + H2), lambda i: (0, 0)),
            pl.BlockSpec((H2, H), lambda i: (0, 0)),
            pl.BlockSpec((1, H), lambda i: (0, 0)),
            pl.BlockSpec((1, H), lambda i: (0, 0)),
            pl.BlockSpec((1, 1), lambda i: (0, 0)),
        ],
        out_specs=(
            pl.BlockSpec((TN, H), lambda i: (i, 0)),
            pl.BlockSpec((TN, 1), lambda i: (i, 0)),
        ),
        compiler_params=pltpu.CompilerParams(
            dimension_semantics=("parallel",),
            vmem_limit_bytes=vmem_limit),
        cost_estimate=heads_cost,
    )(g_flat, a_flat, w1g, w1a, b1, wo.astype(mm_dt), bo.astype(f32),
      wr2_row, br2.astype(f32))

    pred_next_state = ns_flat.reshape(B, T, H)
    pred_rew = rew_flat.reshape(B, T, 1)
    gru_hidden = h_fin.reshape(1, B, H)
    return gru_out, pred_next_state, pred_rew, gru_hidden


# ---------------------------------------------------------------------------
# Params (synthetic, deterministic) and pure-JAX reference.
# ---------------------------------------------------------------------------
def init_ca3net_params(key, state_dim, hidden_dim, action_dim, dtype=jnp.float32):
    """PyTorch stores weights as (out, in); here they are (in, out) so the
    kernels compute x @ W.  GRU gate order along the 3H axis is [r, z, n]."""
    # TODO(synk): utils.weight_init (custom init) is not replicated; uniform
    # fan-in init is used instead (init does not affect forward semantics).
    H, S, A = hidden_dim, state_dim, action_dim
    H2 = H // 2
    ks = jax.random.split(key, 12)

    def u(k, shape, fan_in):
        s = 1.0 / jnp.sqrt(fan_in)
        return jax.random.uniform(k, shape, dtype, -s, s)

    return {
        "gru": (u(ks[0], (S, 3 * H), H), u(ks[1], (H, 3 * H), H),
                u(ks[2], (1, 3 * H), H), u(ks[3], (1, 3 * H), H)),
        "fc": (u(ks[4], (H + A, H2), H + A), u(ks[5], (1, H2), H + A)),
        "out": (u(ks[6], (H2, H), H2), u(ks[7], (1, H), H2)),
        "rew1": (u(ks[8], (H + A, H), H + A), u(ks[9], (1, H), H + A)),
        "rew2": (u(ks[10], (H, 1), H), u(ks[11], (1, 1), H)),
    }


def ca3net_reference(x, hidden, action, params):
    w_ih, w_hh, b_ih, b_hh = params["gru"]
    wf, bf = params["fc"]
    wo, bo = params["out"]
    wr1, br1 = params["rew1"]
    wr2, br2 = params["rew2"]
    H = w_hh.shape[0]
    B = x.shape[0]
    h0 = jnp.zeros((B, H), x.dtype) if hidden is None else hidden.reshape(B, H)

    def step(h, x_t):
        gi = x_t @ w_ih + b_ih[0]
        gh = h @ w_hh + b_hh[0]
        r = 1.0 / (1.0 + jnp.exp(-(gi[:, :H] + gh[:, :H])))
        z = 1.0 / (1.0 + jnp.exp(-(gi[:, H:2 * H] + gh[:, H:2 * H])))
        n = jnp.tanh(gi[:, 2 * H:] + r * gh[:, 2 * H:])
        h_new = (1.0 - z) * n + z * h
        return h_new, h_new

    h_fin, outs = jax.lax.scan(step, h0, jnp.transpose(x, (1, 0, 2)))
    gru_out = jnp.transpose(outs, (1, 0, 2))
    x_conc = jnp.concatenate([gru_out, action], axis=-1)
    pre = x_conc @ wf + bf[0]
    pred_ns = jnp.where(pre > 0, pre, jnp.exp(pre) - 1.0) @ wo + bo[0]
    rew_h = jnp.maximum(x_conc @ wr1 + br1[0], 0.0)
    pred_rew = jnp.tanh(rew_h @ wr2 + br2[0])
    return gru_out, pred_ns, pred_rew, h_fin[None]


if __name__ == "__main__":
    batch, seq, state_dim, hidden_dim, action_dim = 4, 8, 12, 128, 4

    key = jax.random.PRNGKey(0)
    kx, ka, kp = jax.random.split(key, 3)
    x = jax.random.normal(kx, (batch, seq, state_dim), jnp.float32)
    action = jax.random.normal(ka, (batch, seq, action_dim), jnp.float32)
    params = init_ca3net_params(kp, state_dim, hidden_dim, action_dim)

    with jax.default_matmul_precision("float32"):
        ref_gru, ref_ns, ref_rew, ref_hid = ca3net_reference(x, None, action, params)

    # 1) Numerically-exact configuration (f32 MXU operands, exact sigmoid).
    fwd = jax.jit(lambda x_, a_, p_: ca3net_forward(x_, None, a_, p_))
    gru_out, pred_ns, pred_rew, gru_hidden = jax.block_until_ready(
        fwd(x, action, params))

    assert gru_out.shape == (batch, seq, hidden_dim)
    assert pred_ns.shape == (batch, seq, hidden_dim)
    assert pred_rew.shape == (batch, seq, 1)
    assert gru_hidden.shape == (1, batch, hidden_dim)

    tol = dict(atol=1e-4, rtol=1e-4)
    assert jnp.allclose(gru_out, ref_gru, **tol)
    assert jnp.allclose(pred_ns, ref_ns, **tol)
    assert jnp.allclose(pred_rew, ref_rew, **tol)
    assert jnp.allclose(gru_hidden, ref_hid, **tol)

    # 2) Performance configuration for v6e/v7x: bf16 MXU operands with f32
    #    accumulation + EUP approximate reciprocal in the gate sigmoids.
    fwd_fast = jax.jit(lambda x_, a_, p_: ca3net_forward(
        x_, None, a_, p_, matmul_dtype=jnp.bfloat16, approx_sigmoid=True))
    f_gru, f_ns, f_rew, f_hid = jax.block_until_ready(fwd_fast(x, action, params))
    loose = dict(atol=1e-1, rtol=1e-1)
    assert jnp.allclose(f_gru.astype(jnp.float32), ref_gru, **loose)
    assert jnp.allclose(f_ns.astype(jnp.float32), ref_ns, **loose)
    assert jnp.allclose(f_rew.astype(jnp.float32), ref_rew, **loose)
    assert jnp.allclose(f_hid.astype(jnp.float32), ref_hid, **loose)

    print("KERNEL_OK")
</pallas_src>

<mosaic_0001>
module attributes {stable_mosaic.version = 11 : i64} {
  func.func @_gru_kernel(%arg0: i32, %arg1: i32, %arg2: memref<2x8x384xf32, #tpu.memory_space<vmem>>, %arg3: memref<2x1x128xf32, #tpu.memory_space<vmem>>, %arg4: memref<128x384xf32, #tpu.memory_space<vmem>>, %arg5: memref<1x384xf32, #tpu.memory_space<vmem>>, %arg6: memref<2x8x128xf32, #tpu.memory_space<vmem>>, %arg7: memref<2x1x128xf32, #tpu.memory_space<vmem>>, %arg8: memref<2x128xf32, #tpu.memory_space<vmem>>) attributes {dimension_semantics = [#tpu.dimension_semantics<parallel>, #tpu.dimension_semantics<arbitrary>], iteration_bounds = array<i64: 2, 1>, scalar_prefetch = 0 : i64, scratch_operands = 1 : i64, tpu.core_type = #tpu.core_type<tc>, window_params = [{transform_indices = @transform_0, window_bounds = array<i64: 2, 8, 384>}, {transform_indices = @transform_1, window_bounds = array<i64: 2, 1, 128>}, {pipeline_mode = #tpu.pipeline_mode<synchronous>, transform_indices = @transform_2, window_bounds = array<i64: 128, 384>}, {pipeline_mode = #tpu.pipeline_mode<synchronous>, transform_indices = @transform_3, window_bounds = array<i64: 1, 384>}, {transform_indices = @transform_4, window_bounds = array<i64: 2, 8, 128>}, {transform_indices = @transform_5, window_bounds = array<i64: 2, 1, 128>}]} {
    %c0_i32 = arith.constant 0 : i32
    %0 = arith.cmpi eq, %arg1, %c0_i32 : i32
    %1 = arith.extui %0 : i1 to i32
    %c0_i32_0 = arith.constant 0 : i32
    %2 = arith.cmpi ne, %1, %c0_i32_0 : i32
    scf.if %2 {
      %c0_128 = arith.constant 0 : index
      %c0_129 = arith.constant 0 : index
      %c0_130 = arith.constant 0 : index
      %321 = vector.load %arg3[%c0_128, %c0_129, %c0_130] : memref<2x1x128xf32, #tpu.memory_space<vmem>>, vector<2x1x128xf32>
      %322 = vector.shape_cast %321 : vector<2x1x128xf32> to vector<2x128xf32>
      %c0_131 = arith.constant 0 : index
      %c0_132 = arith.constant 0 : index
      %323 = vector.load %arg8[%c0_131, %c0_132] : memref<2x128xf32, #tpu.memory_space<vmem>>, vector<2x128xf32>
      tpu.vector_store %arg8[%c0_131, %c0_132], %322 {strides = array<i32>} : memref<2x128xf32, #tpu.memory_space<vmem>>, vector<2x128xf32>,
    } else {
    }
    %c0 = arith.constant 0 : index
    %c0_1 = arith.constant 0 : index
    %3 = vector.load %arg5[%c0, %c0_1] : memref<1x384xf32, #tpu.memory_space<vmem>>, vector<1x384xf32>
    %c0_2 = arith.constant 0 : index
    %c0_3 = arith.constant 0 : index
    %4 = vector.load %arg8[%c0_2, %c0_3] : memref<2x128xf32, #tpu.memory_space<vmem>>, vector<2x128xf32>
    %c0_4 = arith.constant 0 : index
    %c0_5 = arith.constant 0 : index
    %c0_6 = arith.constant 0 : index
    %5 = vector.load %arg2[%c0_4, %c0_5, %c0_6] : memref<2x8x384xf32, #tpu.memory_space<vmem>>, vector<2x1x384xf32>
    %6 = vector.shape_cast %5 : vector<2x1x384xf32> to vector<2x384xf32>
    %c0_7 = arith.constant 0 : index
    %c0_8 = arith.constant 0 : index
    %7 = vector.load %arg4[%c0_7, %c0_8] : memref<128x384xf32, #tpu.memory_space<vmem>>, vector<128x384xf32>
    %cst = arith.constant dense<0.000000e+00> : vector<2x384xf32>
    %8 = tpu.matmul %4, %7, %cst {dimension_numbers = #tpu.dot_dimension_numbers<[1], [0], [0], [1], [0, 0, 1, 1], [], []>} : vector<2x128xf32>, vector<128x384xf32>, vector<2x384xf32> -> vector<2x384xf32>
    %9 = vector.broadcast %3 : vector<1x384xf32> to vector<2x384xf32>
    %10 = arith.addf %8, %9 : vector<2x384xf32>
    %11 = vector.extract_strided_slice %6 {offsets = [0, 0], sizes = [2, 128], strides = [1, 1]} : vector<2x384xf32> to vector<2x128xf32>
    %12 = vector.extract_strided_slice %10 {offsets = [0, 0], sizes = [2, 128], strides = [1, 1]} : vector<2x384xf32> to vector<2x128xf32>
    %13 = arith.addf %11, %12 : vector<2x128xf32>
    %cst_9 = arith.constant 0.000000e+00 : f32
    %14 = vector.broadcast %cst_9 : f32 to vector<2x128xf32>
    %15 = arith.subf %14, %13 : vector<2x128xf32>
    %16 = math.exp %15 : vector<2x128xf32>
    %cst_10 = arith.constant 1.000000e+00 : f32
    %17 = vector.broadcast %cst_10 : f32 to vector<2x128xf32>
    %18 = arith.addf %17, %16 : vector<2x128xf32>
    %cst_11 = arith.constant 1.000000e+00 : f32
    %19 = vector.broadcast %cst_11 : f32 to vector<2x128xf32>
    %20 = arith.divf %19, %18 : vector<2x128xf32>
    %21 = vector.extract_strided_slice %6 {offsets = [0, 128], sizes = [2, 128], strides = [1, 1]} : vector<2x384xf32> to vector<2x128xf32>
    %22 = vector.extract_strided_slice %10 {offsets = [0, 128], sizes = [2, 128], strides = [1, 1]} : vector<2x384xf32> to vector<2x128xf32>
    %23 = arith.addf %21, %22 : vector<2x128xf32>
    %cst_12 = arith.constant 0.000000e+00 : f32
    %24 = vector.broadcast %cst_12 : f32 to vector<2x128xf32>
    %25 = arith.subf %24, %23 : vector<2x128xf32>
    %26 = math.exp %25 : vector<2x128xf32>
    %cst_13 = arith.constant 1.000000e+00 : f32
    %27 = vector.broadcast %cst_13 : f32 to vector<2x128xf32>
    %28 = arith.addf %27, %26 : vector<2x128xf32>
    %cst_14 = arith.constant 1.000000e+00 : f32
    %29 = vector.broadcast %cst_14 : f32 to vector<2x128xf32>
    %30 = arith.divf %29, %28 : vector<2x128xf32>
    %31 = vector.extract_strided_slice %6 {offsets = [0, 256], sizes = [2, 128], strides = [1, 1]} : vector<2x384xf32> to vector<2x128xf32>
    %32 = vector.extract_strided_slice %10 {offsets = [0, 256], sizes = [2, 128], strides = [1, 1]} : vector<2x384xf32> to vector<2x128xf32>
    %33 = arith.mulf %20, %32 : vector<2x128xf32>
    %34 = arith.addf %31, %33 : vector<2x128xf32>
    %35 = math.tanh %34 : vector<2x128xf32>
    %cst_15 = arith.constant 1.000000e+00 : f32
    %36 = vector.broadcast %cst_15 : f32 to vector<2x128xf32>
    %37 = arith.subf %36, %30 : vector<2x128xf32>
    %38 = arith.mulf %37, %35 : vector<2x128xf32>
    %39 = arith.mulf %30, %4 : vector<2x128xf32>
    %40 = arith.addf %38, %39 : vector<2x128xf32>
    %c0_16 = arith.constant 0 : index
    %c0_17 = arith.constant 0 : index
    %c0_18 = arith.constant 0 : index
    %41 = vector.load %arg6[%c0_16, %c0_17, %c0_18] : memref<2x8x128xf32, #tpu.memory_space<vmem>>, vector<2x1x128xf32>
    %42 = vector.shape_cast %41 : vector<2x1x128xf32> to vector<2x128xf32>
    %43 = vector.shape_cast %40 : vector<2x128xf32> to vector<2x1x128xf32>
    tpu.vector_store %arg6[%c0_16, %c0_17, %c0_18], %43 {strides = array<i32>} : memref<2x8x128xf32, #tpu.memory_space<vmem>>, vector<2x1x128xf32>,
    %c0_19 = arith.constant 0 : index
    %c1 = arith.constant 1 : index
    %c0_20 = arith.constant 0 : index
    %44 = vector.load %arg2[%c0_19, %c1, %c0_20] : memref<2x8x384xf32, #tpu.memory_space<vmem>>, vector<2x1x384xf32>
    %45 = vector.shape_cast %44 : vector<2x1x384xf32> to vector<2x384xf32>
    %c0_21 = arith.constant 0 : index
    %c0_22 = arith.constant 0 : index
    %46 = vector.load %arg4[%c0_21, %c0_22] : memref<128x384xf32, #tpu.memory_space<vmem>>, vector<128x384xf32>
    %cst_23 = arith.constant dense<0.000000e+00> : vector<2x384xf32>
    %47 = tpu.matmul %40, %46, %cst_23 {dimension_numbers = #tpu.dot_dimension_numbers<[1], [0], [0], [1], [0, 0, 1, 1], [], []>} : vector<2x128xf32>, vector<128x384xf32>, vector<2x384xf32> -> vector<2x384xf32>
    %48 = vector.broadcast %3 : vector<1x384xf32> to vector<2x384xf32>
    %49 = arith.addf %47, %48 : vector<2x384xf32>
    %50 = vector.extract_strided_slice %45 {offsets = [0, 0], sizes = [2, 128], strides = [1, 1]} : vector<2x384xf32> to vector<2x128xf32>
    %51 = vector.extract_strided_slice %49 {offsets = [0, 0], sizes = [2, 128], strides = [1, 1]} : vector<2x384xf32> to vector<2x128xf32>
    %52 = arith.addf %50, %51 : vector<2x128xf32>
    %cst_24 = arith.constant 0.000000e+00 : f32
    %53 = vector.broadcast %cst_24 : f32 to vector<2x128xf32>
    %54 = arith.subf %53, %52 : vector<2x128xf32>
    %55 = math.exp %54 : vector<2x128xf32>
    %cst_25 = arith.constant 1.000000e+00 : f32
    %56 = vector.broadcast %cst_25 : f32 to vector<2x128xf32>
    %57 = arith.addf %56, %55 : vector<2x128xf32>
    %cst_26 = arith.constant 1.000000e+00 : f32
    %58 = vector.broadcast %cst_26 : f32 to vector<2x128xf32>
    %59 = arith.divf %58, %57 : vector<2x128xf32>
    %60 = vector.extract_strided_slice %45 {offsets = [0, 128], sizes = [2, 128], strides = [1, 1]} : vector<2x384xf32> to vector<2x128xf32>
    %61 = vector.extract_strided_slice %49 {offsets = [0, 128], sizes = [2, 128], strides = [1, 1]} : vector<2x384xf32> to vector<2x128xf32>
    %62 = arith.addf %60, %61 : vector<2x128xf32>
    %cst_27 = arith.constant 0.000000e+00 : f32
    %63 = vector.broadcast %cst_27 : f32 to vector<2x128xf32>
    %64 = arith.subf %63, %62 : vector<2x128xf32>
    %65 = math.exp %64 : vector<2x128xf32>
    %cst_28 = arith.constant 1.000000e+00 : f32
    %66 = vector.broadcast %cst_28 : f32 to vector<2x128xf32>
    %67 = arith.addf %66, %65 : vector<2x128xf32>
    %cst_29 = arith.constant 1.000000e+00 : f32
    %68 = vector.broadcast %cst_29 : f32 to vector<2x128xf32>
    %69 = arith.divf %68, %67 : vector<2x128xf32>
    %70 = vector.extract_strided_slice %45 {offsets = [0, 256], sizes = [2, 128], strides = [1, 1]} : vector<2x384xf32> to vector<2x128xf32>
    %71 = vector.extract_strided_slice %49 {offsets = [0, 256], sizes = [2, 128], strides = [1, 1]} : vector<2x384xf32> to vector<2x128xf32>
    %72 = arith.mulf %59, %71 : vector<2x128xf32>
    %73 = arith.addf %70, %72 : vector<2x128xf32>
    %74 = math.tanh %73 : vector<2x128xf32>
    %cst_30 = arith.constant 1.000000e+00 : f32
    %75 = vector.broadcast %cst_30 : f32 to vector<2x128xf32>
    %76 = arith.subf %75, %69 : vector<2x128xf32>
    %77 = arith.mulf %76, %74 : vector<2x128xf32>
    %78 = arith.mulf %69, %40 : vector<2x128xf32>
    %79 = arith.addf %77, %78 : vector<2x128xf32>
    %c0_31 = arith.constant 0 : index
    %c1_32 = arith.constant 1 : index
    %c0_33 = arith.constant 0 : index
    %80 = vector.load %arg6[%c0_31, %c1_32, %c0_33] : memref<2x8x128xf32, #tpu.memory_space<vmem>>, vector<2x1x128xf32>
    %81 = vector.shape_cast %80 : vector<2x1x128xf32> to vector<2x128xf32>
    %82 = vector.shape_cast %79 : vector<2x128xf32> to vector<2x1x128xf32>
    tpu.vector_store %arg6[%c0_31, %c1_32, %c0_33], %82 {strides = array<i32>} : memref<2x8x128xf32, #tpu.memory_space<vmem>>, vector<2x1x128xf32>,
    %c0_34 = arith.constant 0 : index
    %c2 = arith.constant 2 : index
    %c0_35 = arith.constant 0 : index
    %83 = vector.load %arg2[%c0_34, %c2, %c0_35] : memref<2x8x384xf32, #tpu.memory_space<vmem>>, vector<2x1x384xf32>
    %84 = vector.shape_cast %83 : vector<2x1x384xf32> to vector<2x384xf32>
    %c0_36 = arith.constant 0 : index
    %c0_37 = arith.constant 0 : index
    %85 = vector.load %arg4[%c0_36, %c0_37] : memref<128x384xf32, #tpu.memory_space<vmem>>, vector<128x384xf32>
    %cst_38 = arith.constant dense<0.000000e+00> : vector<2x384xf32>
    %86 = tpu.matmul %79, %85, %cst_38 {dimension_numbers = #tpu.dot_dimension_numbers<[1], [0], [0], [1], [0, 0, 1, 1], [], []>} : vector<2x128xf32>, vector<128x384xf32>, vector<2x384xf32> -> vector<2x384xf32>
    %87 = vector.broadcast %3 : vector<1x384xf32> to vector<2x384xf32>
    %88 = arith.addf %86, %87 : vector<2x384xf32>
    %89 = vector.extract_strided_slice %84 {offsets = [0, 0], sizes = [2, 128], strides = [1, 1]} : vector<2x384xf32> to vector<2x128xf32>
    %90 = vector.extract_strided_slice %88 {offsets = [0, 0], sizes = [2, 128], strides = [1, 1]} : vector<2x384xf32> to vector<2x128xf32>
    %91 = arith.addf %89, %90 : vector<2x128xf32>
    %cst_39 = arith.constant 0.000000e+00 : f32
    %92 = vector.broadcast %cst_39 : f32 to vector<2x128xf32>
    %93 = arith.subf %92, %91 : vector<2x128xf32>
    %94 = math.exp %93 : vector<2x128xf32>
    %cst_40 = arith.constant 1.000000e+00 : f32
    %95 = vector.broadcast %cst_40 : f32 to vector<2x128xf32>
    %96 = arith.addf %95, %94 : vector<2x128xf32>
    %cst_41 = arith.constant 1.000000e+00 : f32
    %97 = vector.broadcast %cst_41 : f32 to vector<2x128xf32>
    %98 = arith.divf %97, %96 : vector<2x128xf32>
    %99 = vector.extract_strided_slice %84 {offsets = [0, 128], sizes = [2, 128], strides = [1, 1]} : vector<2x384xf32> to vector<2x128xf32>
    %100 = vector.extract_strided_slice %88 {offsets = [0, 128], sizes = [2, 128], strides = [1, 1]} : vector<2x384xf32> to vector<2x128xf32>
    %101 = arith.addf %99, %100 : vector<2x128xf32>
    %cst_42 = arith.constant 0.000000e+00 : f32
    %102 = vector.broadcast %cst_42 : f32 to vector<2x128xf32>
    %103 = arith.subf %102, %101 : vector<2x128xf32>
    %104 = math.exp %103 : vector<2x128xf32>
    %cst_43 = arith.constant 1.000000e+00 : f32
    %105 = vector.broadcast %cst_43 : f32 to vector<2x128xf32>
    %106 = arith.addf %105, %104 : vector<2x128xf32>
    %cst_44 = arith.constant 1.000000e+00 : f32
    %107 = vector.broadcast %cst_44 : f32 to vector<2x128xf32>
    %108 = arith.divf %107, %106 : vector<2x128xf32>
    %109 = vector.extract_strided_slice %84 {offsets = [0, 256], sizes = [2, 128], strides = [1, 1]} : vector<2x384xf32> to vector<2x128xf32>
    %110 = vector.extract_strided_slice %88 {offsets = [0, 256], sizes = [2, 128], strides = [1, 1]} : vector<2x384xf32> to vector<2x128xf32>
    %111 = arith.mulf %98, %110 : vector<2x128xf32>
    %112 = arith.addf %109, %111 : vector<2x128xf32>
    %113 = math.tanh %112 : vector<2x128xf32>
    %cst_45 = arith.constant 1.000000e+00 : f32
    %114 = vector.broadcast %cst_45 : f32 to vector<2x128xf32>
    %115 = arith.subf %114, %108 : vector<2x128xf32>
    %116 = arith.mulf %115, %113 : vector<2x128xf32>
    %117 = arith.mulf %108, %79 : vector<2x128xf32>
    %118 = arith.addf %116, %117 : vector<2x128xf32>
    %c0_46 = arith.constant 0 : index
    %c2_47 = arith.constant 2 : index
    %c0_48 = arith.constant 0 : index
    %119 = vector.load %arg6[%c0_46, %c2_47, %c0_48] : memref<2x8x128xf32, #tpu.memory_space<vmem>>, vector<2x1x128xf32>
    %120 = vector.shape_cast %119 : vector<2x1x128xf32> to vector<2x128xf32>
    %121 = vector.shape_cast %118 : vector<2x128xf32> to vector<2x1x128xf32>
    tpu.vector_store %arg6[%c0_46, %c2_47, %c0_48], %121 {strides = array<i32>} : memref<2x8x128xf32, #tpu.memory_space<vmem>>, vector<2x1x128xf32>,
    %c0_49 = arith.constant 0 : index
    %c3 = arith.constant 3 : index
    %c0_50 = arith.constant 0 : index
    %122 = vector.load %arg2[%c0_49, %c3, %c0_50] : memref<2x8x384xf32, #tpu.memory_space<vmem>>, vector<2x1x384xf32>
    %123 = vector.shape_cast %122 : vector<2x1x384xf32> to vector<2x384xf32>
    %c0_51 = arith.constant 0 : index
    %c0_52 = arith.constant 0 : index
    %124 = vector.load %arg4[%c0_51, %c0_52] : memref<128x384xf32, #tpu.memory_space<vmem>>, vector<128x384xf32>
    %cst_53 = arith.constant dense<0.000000e+00> : vector<2x384xf32>
    %125 = tpu.matmul %118, %124, %cst_53 {dimension_numbers = #tpu.dot_dimension_numbers<[1], [0], [0], [1], [0, 0, 1, 1], [], []>} : vector<2x128xf32>, vector<128x384xf32>, vector<2x384xf32> -> vector<2x384xf32>
    %126 = vector.broadcast %3 : vector<1x384xf32> to vector<2x384xf32>
    %127 = arith.addf %125, %126 : vector<2x384xf32>
    %128 = vector.extract_strided_slice %123 {offsets = [0, 0], sizes = [2, 128], strides = [1, 1]} : vector<2x384xf32> to vector<2x128xf32>
    %129 = vector.extract_strided_slice %127 {offsets = [0, 0], sizes = [2, 128], strides = [1, 1]} : vector<2x384xf32> to vector<2x128xf32>
    %130 = arith.addf %128, %129 : vector<2x128xf32>
    %cst_54 = arith.constant 0.000000e+00 : f32
    %131 = vector.broadcast %cst_54 : f32 to vector<2x128xf32>
    %132 = arith.subf %131, %130 : vector<2x128xf32>
    %133 = math.exp %132 : vector<2x128xf32>
    %cst_55 = arith.constant 1.000000e+00 : f32
    %134 = vector.broadcast %cst_55 : f32 to vector<2x128xf32>
    %135 = arith.addf %134, %133 : vector<2x128xf32>
    %cst_56 = arith.constant 1.000000e+00 : f32
    %136 = vector.broadcast %cst_56 : f32 to vector<2x128xf32>
    %137 = arith.divf %136, %135 : vector<2x128xf32>
    %138 = vector.extract_strided_slice %123 {offsets = [0, 128], sizes = [2, 128], strides = [1, 1]} : vector<2x384xf32> to vector<2x128xf32>
    %139 = vector.extract_strided_slice %127 {offsets = [0, 128], sizes = [2, 128], strides = [1, 1]} : vector<2x384xf32> to vector<2x128xf32>
    %140 = arith.addf %138, %139 : vector<2x128xf32>
    %cst_57 = arith.constant 0.000000e+00 : f32
    %141 = vector.broadcast %cst_57 : f32 to vector<2x128xf32>
    %142 = arith.subf %141, %140 : vector<2x128xf32>
    %143 = math.exp %142 : vector<2x128xf32>
    %cst_58 = arith.constant 1.000000e+00 : f32
    %144 = vector.broadcast %cst_58 : f32 to vector<2x128xf32>
    %145 = arith.addf %144, %143 : vector<2x128xf32>
    %cst_59 = arith.constant 1.000000e+00 : f32
    %146 = vector.broadcast %cst_59 : f32 to vector<2x128xf32>
    %147 = arith.divf %146, %145 : vector<2x128xf32>
    %148 = vector.extract_strided_slice %123 {offsets = [0, 256], sizes = [2, 128], strides = [1, 1]} : vector<2x384xf32> to vector<2x128xf32>
    %149 = vector.extract_strided_slice %127 {offsets = [0, 256], sizes = [2, 128], strides = [1, 1]} : vector<2x384xf32> to vector<2x128xf32>
    %150 = arith.mulf %137, %149 : vector<2x128xf32>
    %151 = arith.addf %148, %150 : vector<2x128xf32>
    %152 = math.tanh %151 : vector<2x128xf32>
    %cst_60 = arith.constant 1.000000e+00 : f32
    %153 = vector.broadcast %cst_60 : f32 to vector<2x128xf32>
    %154 = arith.subf %153, %147 : vector<2x128xf32>
    %155 = arith.mulf %154, %152 : vector<2x128xf32>
    %156 = arith.mulf %147, %118 : vector<2x128xf32>
    %157 = arith.addf %155, %156 : vector<2x128xf32>
    %c0_61 = arith.constant 0 : index
    %c3_62 = arith.constant 3 : index
    %c0_63 = arith.constant 0 : index
    %158 = vector.load %arg6[%c0_61, %c3_62, %c0_63] : memref<2x8x128xf32, #tpu.memory_space<vmem>>, vector<2x1x128xf32>
    %159 = vector.shape_cast %158 : vector<2x1x128xf32> to vector<2x128xf32>
    %160 = vector.shape_cast %157 : vector<2x128xf32> to vector<2x1x128xf32>
    tpu.vector_store %arg6[%c0_61, %c3_62, %c0_63], %160 {strides = array<i32>} : memref<2x8x128xf32, #tpu.memory_space<vmem>>, vector<2x1x128xf32>,
    %c0_64 = arith.constant 0 : index
    %c4 = arith.constant 4 : index
    %c0_65 = arith.constant 0 : index
    %161 = vector.load %arg2[%c0_64, %c4, %c0_65] : memref<2x8x384xf32, #tpu.memory_space<vmem>>, vector<2x1x384xf32>
    %162 = vector.shape_cast %161 : vector<2x1x384xf32> to vector<2x384xf32>
    %c0_66 = arith.constant 0 : index
    %c0_67 = arith.constant 0 : index
    %163 = vector.load %arg4[%c0_66, %c0_67] : memref<128x384xf32, #tpu.memory_space<vmem>>, vector<128x384xf32>
    %cst_68 = arith.constant dense<0.000000e+00> : vector<2x384xf32>
    %164 = tpu.matmul %157, %163, %cst_68 {dimension_numbers = #tpu.dot_dimension_numbers<[1], [0], [0], [1], [0, 0, 1, 1], [], []>} : vector<2x128xf32>, vector<128x384xf32>, vector<2x384xf32> -> vector<2x384xf32>
    %165 = vector.broadcast %3 : vector<1x384xf32> to vector<2x384xf32>
    %166 = arith.addf %164, %165 : vector<2x384xf32>
    %167 = vector.extract_strided_slice %162 {offsets = [0, 0], sizes = [2, 128], strides = [1, 1]} : vector<2x384xf32> to vector<2x128xf32>
    %168 = vector.extract_strided_slice %166 {offsets = [0, 0], sizes = [2, 128], strides = [1, 1]} : vector<2x384xf32> to vector<2x128xf32>
    %169 = arith.addf %167, %168 : vector<2x128xf32>
    %cst_69 = arith.constant 0.000000e+00 : f32
    %170 = vector.broadcast %cst_69 : f32 to vector<2x128xf32>
    %171 = arith.subf %170, %169 : vector<2x128xf32>
    %172 = math.exp %171 : vector<2x128xf32>
    %cst_70 = arith.constant 1.000000e+00 : f32
    %173 = vector.broadcast %cst_70 : f32 to vector<2x128xf32>
    %174 = arith.addf %173, %172 : vector<2x128xf32>
    %cst_71 = arith.constant 1.000000e+00 : f32
    %175 = vector.broadcast %cst_71 : f32 to vector<2x128xf32>
    %176 = arith.divf %175, %174 : vector<2x128xf32>
    %177 = vector.extract_strided_slice %162 {offsets = [0, 128], sizes = [2, 128], strides = [1, 1]} : vector<2x384xf32> to vector<2x128xf32>
    %178 = vector.extract_strided_slice %166 {offsets = [0, 128], sizes = [2, 128], strides = [1, 1]} : vector<2x384xf32> to vector<2x128xf32>
    %179 = arith.addf %177, %178 : vector<2x128xf32>
    %cst_72 = arith.constant 0.000000e+00 : f32
    %180 = vector.broadcast %cst_72 : f32 to vector<2x128xf32>
    %181 = arith.subf %180, %179 : vector<2x128xf32>
    %182 = math.exp %181 : vector<2x128xf32>
    %cst_73 = arith.constant 1.000000e+00 : f32
    %183 = vector.broadcast %cst_73 : f32 to vector<2x128xf32>
    %184 = arith.addf %183, %182 : vector<2x128xf32>
    %cst_74 = arith.constant 1.000000e+00 : f32
    %185 = vector.broadcast %cst_74 : f32 to vector<2x128xf32>
    %186 = arith.divf %185, %184 : vector<2x128xf32>
    %187 = vector.extract_strided_slice %162 {offsets = [0, 256], sizes = [2, 128], strides = [1, 1]} : vector<2x384xf32> to vector<2x128xf32>
    %188 = vector.extract_strided_slice %166 {offsets = [0, 256], sizes = [2, 128], strides = [1, 1]} : vector<2x384xf32> to vector<2x128xf32>
    %189 = arith.mulf %176, %188 : vector<2x128xf32>
    %190 = arith.addf %187, %189 : vector<2x128xf32>
    %191 = math.tanh %190 : vector<2x128xf32>
    %cst_75 = arith.constant 1.000000e+00 : f32
    %192 = vector.broadcast %cst_75 : f32 to vector<2x128xf32>
    %193 = arith.subf %192, %186 : vector<2x128xf32>
    %194 = arith.mulf %193, %191 : vector<2x128xf32>
    %195 = arith.mulf %186, %157 : vector<2x128xf32>
    %196 = arith.addf %194, %195 : vector<2x128xf32>
    %c0_76 = arith.constant 0 : index
    %c4_77 = arith.constant 4 : index
    %c0_78 = arith.constant 0 : index
    %197 = vector.load %arg6[%c0_76, %c4_77, %c0_78] : memref<2x8x128xf32, #tpu.memory_space<vmem>>, vector<2x1x128xf32>
    %198 = vector.shape_cast %197 : vector<2x1x128xf32> to vector<2x128xf32>
    %199 = vector.shape_cast %196 : vector<2x128xf32> to vector<2x1x128xf32>
    tpu.vector_store %arg6[%c0_76, %c4_77, %c0_78], %199 {strides = array<i32>} : memref<2x8x128xf32, #tpu.memory_space<vmem>>, vector<2x1x128xf32>,
    %c0_79 = arith.constant 0 : index
    %c5 = arith.constant 5 : index
    %c0_80 = arith.constant 0 : index
    %200 = vector.load %arg2[%c0_79, %c5, %c0_80] : memref<2x8x384xf32, #tpu.memory_space<vmem>>, vector<2x1x384xf32>
    %201 = vector.shape_cast %200 : vector<2x1x384xf32> to vector<2x384xf32>
    %c0_81 = arith.constant 0 : index
    %c0_82 = arith.constant 0 : index
    %202 = vector.load %arg4[%c0_81, %c0_82] : memref<128x384xf32, #tpu.memory_space<vmem>>, vector<128x384xf32>
    %cst_83 = arith.constant dense<0.000000e+00> : vector<2x384xf32>
    %203 = tpu.matmul %196, %202, %cst_83 {dimension_numbers = #tpu.dot_dimension_numbers<[1], [0], [0], [1], [0, 0, 1, 1], [], []>} : vector<2x128xf32>, vector<128x384xf32>, vector<2x384xf32> -> vector<2x384xf32>
    %204 = vector.broadcast %3 : vector<1x384xf32> to vector<2x384xf32>
    %205 = arith.addf %203, %204 : vector<2x384xf32>
    %206 = vector.extract_strided_slice %201 {offsets = [0, 0], sizes = [2, 128], strides = [1, 1]} : vector<2x384xf32> to vector<2x128xf32>
    %207 = vector.extract_strided_slice %205 {offsets = [0, 0], sizes = [2, 128], strides = [1, 1]} : vector<2x384xf32> to vector<2x128xf32>
    %208 = arith.addf %206, %207 : vector<2x128xf32>
    %cst_84 = arith.constant 0.000000e+00 : f32
    %209 = vector.broadcast %cst_84 : f32 to vector<2x128xf32>
    %210 = arith.subf %209, %208 : vector<2x128xf32>
    %211 = math.exp %210 : vector<2x128xf32>
    %cst_85 = arith.constant 1.000000e+00 : f32
    %212 = vector.broadcast %cst_85 : f32 to vector<2x128xf32>
    %213 = arith.addf %212, %211 : vector<2x128xf32>
    %cst_86 = arith.constant 1.000000e+00 : f32
    %214 = vector.broadcast %cst_86 : f32 to vector<2x128xf32>
    %215 = arith.divf %214, %213 : vector<2x128xf32>
    %216 = vector.extract_strided_slice %201 {offsets = [0, 128], sizes = [2, 128], strides = [1, 1]} : vector<2x384xf32> to vector<2x128xf32>
    %217 = vector.extract_strided_slice %205 {offsets = [0, 128], sizes = [2, 128], strides = [1, 1]} : vector<2x384xf32> to vector<2x128xf32>
    %218 = arith.addf %216, %217 : vector<2x128xf32>
    %cst_87 = arith.constant 0.000000e+00 : f32
    %219 = vector.broadcast %cst_87 : f32 to vector<2x128xf32>
    %220 = arith.subf %219, %218 : vector<2x128xf32>
    %221 = math.exp %220 : vector<2x128xf32>
    %cst_88 = arith.constant 1.000000e+00 : f32
    %222 = vector.broadcast %cst_88 : f32 to vector<2x128xf32>
    %223 = arith.addf %222, %221 : vector<2x128xf32>
    %cst_89 = arith.constant 1.000000e+00 : f32
    %224 = vector.broadcast %cst_89 : f32 to vector<2x128xf32>
    %225 = arith.divf %224, %223 : vector<2x128xf32>
    %226 = vector.extract_strided_slice %201 {offsets = [0, 256], sizes = [2, 128], strides = [1, 1]} : vector<2x384xf32> to vector<2x128xf32>
    %227 = vector.extract_strided_slice %205 {offsets = [0, 256], sizes = [2, 128], strides = [1, 1]} : vector<2x384xf32> to vector<2x128xf32>
    %228 = arith.mulf %215, %227 : vector<2x128xf32>
    %229 = arith.addf %226, %228 : vector<2x128xf32>
    %230 = math.tanh %229 : vector<2x128xf32>
    %cst_90 = arith.constant 1.000000e+00 : f32
    %231 = vector.broadcast %cst_90 : f32 to vector<2x128xf32>
    %232 = arith.subf %231, %225 : vector<2x128xf32>
    %233 = arith.mulf %232, %230 : vector<2x128xf32>
    %234 = arith.mulf %225, %196 : vector<2x128xf32>
    %235 = arith.addf %233, %234 : vector<2x128xf32>
    %c0_91 = arith.constant 0 : index
    %c5_92 = arith.constant 5 : index
    %c0_93 = arith.constant 0 : index
    %236 = vector.load %arg6[%c0_91, %c5_92, %c0_93] : memref<2x8x128xf32, #tpu.memory_space<vmem>>, vector<2x1x128xf32>
    %237 = vector.shape_cast %236 : vector<2x1x128xf32> to vector<2x128xf32>
    %238 = vector.shape_cast %235 : vector<2x128xf32> to vector<2x1x128xf32>
    tpu.vector_store %arg6[%c0_91, %c5_92, %c0_93], %238 {strides = array<i32>} : memref<2x8x128xf32, #tpu.memory_space<vmem>>, vector<2x1x128xf32>,
    %c0_94 = arith.constant 0 : index
    %c6 = arith.constant 6 : index
    %c0_95 = arith.constant 0 : index
    %239 = vector.load %arg2[%c0_94, %c6, %c0_95] : memref<2x8x384xf32, #tpu.memory_space<vmem>>, vector<2x1x384xf32>
    %240 = vector.shape_cast %239 : vector<2x1x384xf32> to vector<2x384xf32>
    %c0_96 = arith.constant 0 : index
    %c0_97 = arith.constant 0 : index
    %241 = vector.load %arg4[%c0_96, %c0_97] : memref<128x384xf32, #tpu.memory_space<vmem>>, vector<128x384xf32>
    %cst_98 = arith.constant dense<0.000000e+00> : vector<2x384xf32>
    %242 = tpu.matmul %235, %241, %cst_98 {dimension_numbers = #tpu.dot_dimension_numbers<[1], [0], [0], [1], [0, 0, 1, 1], [], []>} : vector<2x128xf32>, vector<128x384xf32>, vector<2x384xf32> -> vector<2x384xf32>
    %243 = vector.broadcast %3 : vector<1x384xf32> to vector<2x384xf32>
    %244 = arith.addf %242, %243 : vector<2x384xf32>
    %245 = vector.extract_strided_slice %240 {offsets = [0, 0], sizes = [2, 128], strides = [1, 1]} : vector<2x384xf32> to vector<2x128xf32>
    %246 = vector.extract_strided_slice %244 {offsets = [0, 0], sizes = [2, 128], strides = [1, 1]} : vector<2x384xf32> to vector<2x128xf32>
    %247 = arith.addf %245, %246 : vector<2x128xf32>
    %cst_99 = arith.constant 0.000000e+00 : f32
    %248 = vector.broadcast %cst_99 : f32 to vector<2x128xf32>
    %249 = arith.subf %248, %247 : vector<2x128xf32>
    %250 = math.exp %249 : vector<2x128xf32>
    %cst_100 = arith.constant 1.000000e+00 : f32
    %251 = vector.broadcast %cst_100 : f32 to vector<2x128xf32>
    %252 = arith.addf %251, %250 : vector<2x128xf32>
    %cst_101 = arith.constant 1.000000e+00 : f32
    %253 = vector.broadcast %cst_101 : f32 to vector<2x128xf32>
    %254 = arith.divf %253, %252 : vector<2x128xf32>
    %255 = vector.extract_strided_slice %240 {offsets = [0, 128], sizes = [2, 128], strides = [1, 1]} : vector<2x384xf32> to vector<2x128xf32>
    %256 = vector.extract_strided_slice %244 {offsets = [0, 128], sizes = [2, 128], strides = [1, 1]} : vector<2x384xf32> to vector<2x128xf32>
    %257 = arith.addf %255, %256 : vector<2x128xf32>
    %cst_102 = arith.constant 0.000000e+00 : f32
    %258 = vector.broadcast %cst_102 : f32 to vector<2x128xf32>
    %259 = arith.subf %258, %257 : vector<2x128xf32>
    %260 = math.exp %259 : vector<2x128xf32>
    %cst_103 = arith.constant 1.000000e+00 : f32
    %261 = vector.broadcast %cst_103 : f32 to vector<2x128xf32>
    %262 = arith.addf %261, %260 : vector<2x128xf32>
    %cst_104 = arith.constant 1.000000e+00 : f32
    %263 = vector.broadcast %cst_104 : f32 to vector<2x128xf32>
    %264 = arith.divf %263, %262 : vector<2x128xf32>
    %265 = vector.extract_strided_slice %240 {offsets = [0, 256], sizes = [2, 128], strides = [1, 1]} : vector<2x384xf32> to vector<2x128xf32>
    %266 = vector.extract_strided_slice %244 {offsets = [0, 256], sizes = [2, 128], strides = [1, 1]} : vector<2x384xf32> to vector<2x128xf32>
    %267 = arith.mulf %254, %266 : vector<2x128xf32>
    %268 = arith.addf %265, %267 : vector<2x128xf32>
    %269 = math.tanh %268 : vector<2x128xf32>
    %cst_105 = arith.constant 1.000000e+00 : f32
    %270 = vector.broadcast %cst_105 : f32 to vector<2x128xf32>
    %271 = arith.subf %270, %264 : vector<2x128xf32>
    %272 = arith.mulf %271, %269 : vector<2x128xf32>
    %273 = arith.mulf %264, %235 : vector<2x128xf32>
    %274 = arith.addf %272, %273 : vector<2x128xf32>
    %c0_106 = arith.constant 0 : index
    %c6_107 = arith.constant 6 : index
    %c0_108 = arith.constant 0 : index
    %275 = vector.load %arg6[%c0_106, %c6_107, %c0_108] : memref<2x8x128xf32, #tpu.memory_space<vmem>>, vector<2x1x128xf32>
    %276 = vector.shape_cast %275 : vector<2x1x128xf32> to vector<2x128xf32>
    %277 = vector.shape_cast %274 : vector<2x128xf32> to vector<2x1x128xf32>
    tpu.vector_store %arg6[%c0_106, %c6_107, %c0_108], %277 {strides = array<i32>} : memref<2x8x128xf32, #tpu.memory_space<vmem>>, vector<2x1x128xf32>,
    %c0_109 = arith.constant 0 : index
    %c7 = arith.constant 7 : index
    %c0_110 = arith.constant 0 : index
    %278 = vector.load %arg2[%c0_109, %c7, %c0_110] : memref<2x8x384xf32, #tpu.memory_space<vmem>>, vector<2x1x384xf32>
    %279 = vector.shape_cast %278 : vector<2x1x384xf32> to vector<2x384xf32>
    %c0_111 = arith.constant 0 : index
    %c0_112 = arith.constant 0 : index
    %280 = vector.load %arg4[%c0_111, %c0_112] : memref<128x384xf32, #tpu.memory_space<vmem>>, vector<128x384xf32>
    %cst_113 = arith.constant dense<0.000000e+00> : vector<2x384xf32>
    %281 = tpu.matmul %274, %280, %cst_113 {dimension_numbers = #tpu.dot_dimension_numbers<[1], [0], [0], [1], [0, 0, 1, 1], [], []>} : vector<2x128xf32>, vector<128x384xf32>, vector<2x384xf32> -> vector<2x384xf32>
    %282 = vector.broadcast %3 : vector<1x384xf32> to vector<2x384xf32>
    %283 = arith.addf %281, %282 : vector<2x384xf32>
    %284 = vector.extract_strided_slice %279 {offsets = [0, 0], sizes = [2, 128], strides = [1, 1]} : vector<2x384xf32> to vector<2x128xf32>
    %285 = vector.extract_strided_slice %283 {offsets = [0, 0], sizes = [2, 128], strides = [1, 1]} : vector<2x384xf32> to vector<2x128xf32>
    %286 = arith.addf %284, %285 : vector<2x128xf32>
    %cst_114 = arith.constant 0.000000e+00 : f32
    %287 = vector.broadcast %cst_114 : f32 to vector<2x128xf32>
    %288 = arith.subf %287, %286 : vector<2x128xf32>
    %289 = math.exp %288 : vector<2x128xf32>
    %cst_115 = arith.constant 1.000000e+00 : f32
    %290 = vector.broadcast %cst_115 : f32 to vector<2x128xf32>
    %291 = arith.addf %290, %289 : vector<2x128xf32>
    %cst_116 = arith.constant 1.000000e+00 : f32
    %292 = vector.broadcast %cst_116 : f32 to vector<2x128xf32>
    %293 = arith.divf %292, %291 : vector<2x128xf32>
    %294 = vector.extract_strided_slice %279 {offsets = [0, 128], sizes = [2, 128], strides = [1, 1]} : vector<2x384xf32> to vector<2x128xf32>
    %295 = vector.extract_strided_slice %283 {offsets = [0, 128], sizes = [2, 128], strides = [1, 1]} : vector<2x384xf32> to vector<2x128xf32>
    %296 = arith.addf %294, %295 : vector<2x128xf32>
    %cst_117 = arith.constant 0.000000e+00 : f32
    %297 = vector.broadcast %cst_117 : f32 to vector<2x128xf32>
    %298 = arith.subf %297, %296 : vector<2x128xf32>
    %299 = math.exp %298 : vector<2x128xf32>
    %cst_118 = arith.constant 1.000000e+00 : f32
    %300 = vector.broadcast %cst_118 : f32 to vector<2x128xf32>
    %301 = arith.addf %300, %299 : vector<2x128xf32>
    %cst_119 = arith.constant 1.000000e+00 : f32
    %302 = vector.broadcast %cst_119 : f32 to vector<2x128xf32>
    %303 = arith.divf %302, %301 : vector<2x128xf32>
    %304 = vector.extract_strided_slice %279 {offsets = [0, 256], sizes = [2, 128], strides = [1, 1]} : vector<2x384xf32> to vector<2x128xf32>
    %305 = vector.extract_strided_slice %283 {offsets = [0, 256], sizes = [2, 128], strides = [1, 1]} : vector<2x384xf32> to vector<2x128xf32>
    %306 = arith.mulf %293, %305 : vector<2x128xf32>
    %307 = arith.addf %304, %306 : vector<2x128xf32>
    %308 = math.tanh %307 : vector<2x128xf32>
    %cst_120 = arith.constant 1.000000e+00 : f32
    %309 = vector.broadcast %cst_120 : f32 to vector<2x128xf32>
    %310 = arith.subf %309, %303 : vector<2x128xf32>
    %311 = arith.mulf %310, %308 : vector<2x128xf32>
    %312 = arith.mulf %303, %274 : vector<2x128xf32>
    %313 = arith.addf %311, %312 : vector<2x128xf32>
    %c0_121 = arith.constant 0 : index
    %c7_122 = arith.constant 7 : index
    %c0_123 = arith.constant 0 : index
    %314 = vector.load %arg6[%c0_121, %c7_122, %c0_123] : memref<2x8x128xf32, #tpu.memory_space<vmem>>, vector<2x1x128xf32>
    %315 = vector.shape_cast %314 : vector<2x1x128xf32> to vector<2x128xf32>
    %316 = vector.shape_cast %313 : vector<2x128xf32> to vector<2x1x128xf32>
    tpu.vector_store %arg6[%c0_121, %c7_122, %c0_123], %316 {strides = array<i32>} : memref<2x8x128xf32, #tpu.memory_space<vmem>>, vector<2x1x128xf32>,
    %c0_124 = arith.constant 0 : index
    %c0_125 = arith.constant 0 : index
    %317 = vector.load %arg8[%c0_124, %c0_125] : memref<2x128xf32, #tpu.memory_space<vmem>>, vector<2x128xf32>
    tpu.vector_store %arg8[%c0_124, %c0_125], %313 {strides = array<i32>} : memref<2x128xf32, #tpu.memory_space<vmem>>, vector<2x128xf32>,
    %c0_i32_126 = arith.constant 0 : i32
    %318 = arith.cmpi eq, %arg1, %c0_i32_126 : i32
    %319 = arith.extui %318 : i1 to i32
    %c0_i32_127 = arith.constant 0 : i32
    %320 = arith.cmpi ne, %319, %c0_i32_127 : i32
    scf.if %320 {
      %c0_128 = arith.constant 0 : index
      %c0_129 = arith.constant 0 : index
      %c0_130 = arith.constant 0 : index
      %321 = vector.load %arg7[%c0_128, %c0_129, %c0_130] : memref<2x1x128xf32, #tpu.memory_space<vmem>>, vector<2x1x128xf32>
      %322 = vector.shape_cast %321 : vector<2x1x128xf32> to vector<2x128xf32>
      %323 = vector.shape_cast %313 : vector<2x128xf32> to vector<2x1x128xf32>
      tpu.vector_store %arg7[%c0_128, %c0_129, %c0_130], %323 {strides = array<i32>} : memref<2x1x128xf32, #tpu.memory_space<vmem>>, vector<2x1x128xf32>,
    } else {
    }
    return
  }
  func.func @transform_0(%arg0: i32, %arg1: i32) -> (i32, i32, i32) {
    %c0_i32 = arith.constant 0 : i32
    %c0_i32_0 = arith.constant 0 : i32
    return %arg0, %arg1, %c0_i32 : i32, i32, i32
  }
  func.func @transform_1(%arg0: i32, %arg1: i32) -> (i32, i32, i32) {
    %c0_i32 = arith.constant 0 : i32
    %c0_i32_0 = arith.constant 0 : i32
    %c0_i32_1 = arith.constant 0 : i32
    return %arg0, %c0_i32, %c0_i32_0 : i32, i32, i32
  }
  func.func @transform_2(%arg0: i32, %arg1: i32) -> (i32, i32) {
    %c0_i32 = arith.constant 0 : i32
    %c0_i32_0 = arith.constant 0 : i32
    %c0_i32_1 = arith.constant 0 : i32
    return %c0_i32, %c0_i32_0 : i32, i32
  }
  func.func @transform_3(%arg0: i32, %arg1: i32) -> (i32, i32) {
    %c0_i32 = arith.constant 0 : i32
    %c0_i32_0 = arith.constant 0 : i32
    %c0_i32_1 = arith.constant 0 : i32
    return %c0_i32, %c0_i32_0 : i32, i32
  }
  func.func @transform_4(%arg0: i32, %arg1: i32) -> (i32, i32, i32) {
    %c0_i32 = arith.constant 0 : i32
    %c0_i32_0 = arith.constant 0 : i32
    return %arg0, %arg1, %c0_i32 : i32, i32, i32
  }
  func.func @transform_5(%arg0: i32, %arg1: i32) -> (i32, i32, i32) {
    %c0_i32 = arith.constant 0 : i32
    %c0_i32_0 = arith.constant 0 : i32
    %c0_i32_1 = arith.constant 0 : i32
    return %arg0, %c0_i32, %c0_i32_0 : i32, i32, i32
  }
}

module attributes {stable_mosaic.version = 11 : i64} {
  func.func @_heads_kernel(%arg0: i32, %arg1: memref<16x128xf32, #tpu.memory_space<vmem>>, %arg2: memref<16x4xf32, #tpu.memory_space<vmem>>, %arg3: memref<128x192xf32, #tpu.memory_space<vmem>>, %arg4: memref<4x192xf32, #tpu.memory_space<vmem>>, %arg5: memref<1x192xf32, #tpu.memory_space<vmem>>, %arg6: memref<64x128xf32, #tpu.memory_space<vmem>>, %arg7: memref<1x128xf32, #tpu.memory_space<vmem>>, %arg8: memref<1x128xf32, #tpu.memory_space<vmem>>, %arg9: memref<1x1xf32, #tpu.memory_space<vmem>>, %arg10: memref<16x128xf32, #tpu.memory_space<vmem>>, %arg11: memref<16x1xf32, #tpu.memory_space<vmem>>) attributes {dimension_semantics = [#tpu.dimension_semantics<parallel>], iteration_bounds = array<i64: 2>, scalar_prefetch = 0 : i64, scratch_operands = 0 : i64, tpu.core_type = #tpu.core_type<tc>, window_params = [{transform_indices = @transform_0, window_bounds = array<i64: 16, 128>}, {transform_indices = @transform_1, window_bounds = array<i64: 16, 4>}, {pipeline_mode = #tpu.pipeline_mode<synchronous>, transform_indices = @transform_2, window_bounds = array<i64: 128, 192>}, {pipeline_mode = #tpu.pipeline_mode<synchronous>, transform_indices = @transform_3, window_bounds = array<i64: 4, 192>}, {pipeline_mode = #tpu.pipeline_mode<synchronous>, transform_indices = @transform_4, window_bounds = array<i64: 1, 192>}, {pipeline_mode = #tpu.pipeline_mode<synchronous>, transform_indices = @transform_5, window_bounds = array<i64: 64, 128>}, {pipeline_mode = #tpu.pipeline_mode<synchronous>, transform_indices = @transform_6, window_bounds = array<i64: 1, 128>}, {pipeline_mode = #tpu.pipeline_mode<synchronous>, transform_indices = @transform_7, window_bounds = array<i64: 1, 128>}, {pipeline_mode = #tpu.pipeline_mode<synchronous>, transform_indices = @transform_8, window_bounds = array<i64: 1, 1>}, {transform_indices = @transform_9, window_bounds = array<i64: 16, 128>}, {transform_indices = @transform_10, window_bounds = array<i64: 16, 1>}]} {
    %c0 = arith.constant 0 : index
    %c0_0 = arith.constant 0 : index
    %0 = vector.load %arg1[%c0, %c0_0] : memref<16x128xf32, #tpu.memory_space<vmem>>, vector<16x128xf32>
    %c0_1 = arith.constant 0 : index
    %c0_2 = arith.constant 0 : index
    %1 = vector.load %arg2[%c0_1, %c0_2] : memref<16x4xf32, #tpu.memory_space<vmem>>, vector<16x4xf32>
    %c0_3 = arith.constant 0 : index
    %c0_4 = arith.constant 0 : index
    %2 = vector.load %arg3[%c0_3, %c0_4] : memref<128x192xf32, #tpu.memory_space<vmem>>, vector<128x192xf32>
    %cst = arith.constant dense<0.000000e+00> : vector<16x192xf32>
    %3 = tpu.matmul %0, %2, %cst {dimension_numbers = #tpu.dot_dimension_numbers<[1], [0], [0], [1], [0, 0, 1, 1], [], []>} : vector<16x128xf32>, vector<128x192xf32>, vector<16x192xf32> -> vector<16x192xf32>
    %c0_5 = arith.constant 0 : index
    %c0_6 = arith.constant 0 : index
    %4 = vector.load %arg4[%c0_5, %c0_6] : memref<4x192xf32, #tpu.memory_space<vmem>>, vector<4x192xf32>
    %cst_7 = arith.constant dense<0.000000e+00> : vector<16x192xf32>
    %5 = tpu.matmul %1, %4, %cst_7 {dimension_numbers = #tpu.dot_dimension_numbers<[1], [0], [0], [1], [0, 0, 1, 1], [], []>} : vector<16x4xf32>, vector<4x192xf32>, vector<16x192xf32> -> vector<16x192xf32>
    %6 = arith.addf %3, %5 : vector<16x192xf32>
    %c0_8 = arith.constant 0 : index
    %c0_9 = arith.constant 0 : index
    %7 = vector.load %arg5[%c0_8, %c0_9] : memref<1x192xf32, #tpu.memory_space<vmem>>, vector<1x192xf32>
    %8 = vector.broadcast %7 : vector<1x192xf32> to vector<16x192xf32>
    %9 = arith.addf %6, %8 : vector<16x192xf32>
    %10 = vector.extract_strided_slice %9 {offsets = [0, 0], sizes = [16, 128], strides = [1, 1]} : vector<16x192xf32> to vector<16x128xf32>
    %11 = vector.extract_strided_slice %9 {offsets = [0, 128], sizes = [16, 64], strides = [1, 1]} : vector<16x192xf32> to vector<16x64xf32>
    %cst_10 = arith.constant 0.000000e+00 : f32
    %12 = vector.broadcast %cst_10 : f32 to vector<16x64xf32>
    %13 = arith.cmpf ogt, %11, %12 : vector<16x64xf32>
    %14 = math.exp %11 : vector<16x64xf32>
    %cst_11 = arith.constant 1.000000e+00 : f32
    %15 = vector.broadcast %cst_11 : f32 to vector<16x64xf32>
    %16 = arith.subf %14, %15 : vector<16x64xf32>
    %17 = arith.select %13, %11, %16 : vector<16x64xi1>, vector<16x64xf32>
    %c0_12 = arith.constant 0 : index
    %c0_13 = arith.constant 0 : index
    %18 = vector.load %arg6[%c0_12, %c0_13] : memref<64x128xf32, #tpu.memory_space<vmem>>, vector<64x128xf32>
    %cst_14 = arith.constant dense<0.000000e+00> : vector<16x128xf32>
    %19 = tpu.matmul %17, %18, %cst_14 {dimension_numbers = #tpu.dot_dimension_numbers<[1], [0], [0], [1], [0, 0, 1, 1], [], []>} : vector<16x64xf32>, vector<64x128xf32>, vector<16x128xf32> -> vector<16x128xf32>
    %c0_15 = arith.constant 0 : index
    %c0_16 = arith.constant 0 : index
    %20 = vector.load %arg7[%c0_15, %c0_16] : memref<1x128xf32, #tpu.memory_space<vmem>>, vector<1x128xf32>
    %21 = vector.broadcast %20 : vector<1x128xf32> to vector<16x128xf32>
    %22 = arith.addf %19, %21 : vector<16x128xf32>
    %c0_17 = arith.constant 0 : index
    %c0_18 = arith.constant 0 : index
    %23 = vector.load %arg10[%c0_17, %c0_18] : memref<16x128xf32, #tpu.memory_space<vmem>>, vector<16x128xf32>
    tpu.vector_store %arg10[%c0_17, %c0_18], %22 {strides = array<i32>} : memref<16x128xf32, #tpu.memory_space<vmem>>, vector<16x128xf32>,
    %cst_19 = arith.constant 0.000000e+00 : f32
    %24 = vector.broadcast %cst_19 : f32 to vector<16x128xf32>
    %25 = arith.maximumf %10, %24 : vector<16x128xf32>
    %c0_20 = arith.constant 0 : index
    %c0_21 = arith.constant 0 : index
    %26 = vector.load %arg8[%c0_20, %c0_21] : memref<1x128xf32, #tpu.memory_space<vmem>>, vector<1x128xf32>
    %27 = vector.broadcast %26 : vector<1x128xf32> to vector<16x128xf32>
    %28 = arith.mulf %25, %27 : vector<16x128xf32>
    %cst_22 = arith.constant dense<0.000000e+00> : vector<16xf32>
    %29 = vector.multi_reduction <add>, %28, %cst_22 [1] : vector<16x128xf32> to vector<16xf32>
    %30 = vector.shape_cast %29 : vector<16xf32> to vector<16x1xf32>
    %c0_23 = arith.constant 0 : index
    %c0_24 = arith.constant 0 : index
    %31 = vector.load %arg9[%c0_23, %c0_24] : memref<1x1xf32, #tpu.memory_space<vmem>>, vector<1x1xf32>
    %32 = vector.broadcast %31 : vector<1x1xf32> to vector<16x1xf32>
    %33 = arith.addf %30, %32 : vector<16x1xf32>
    %34 = math.tanh %33 : vector<16x1xf32>
    %c0_25 = arith.constant 0 : index
    %c0_26 = arith.constant 0 : index
    %35 = vector.load %arg11[%c0_25, %c0_26] : memref<16x1xf32, #tpu.memory_space<vmem>>, vector<16x1xf32>
    tpu.vector_store %arg11[%c0_25, %c0_26], %34 {strides = array<i32>} : memref<16x1xf32, #tpu.memory_space<vmem>>, vector<16x1xf32>,
    return
  }
  func.func @transform_0(%arg0: i32) -> (i32, i32) {
    %c0_i32 = arith.constant 0 : i32
    %c0_i32_0 = arith.constant 0 : i32
    return %arg0, %c0_i32 : i32, i32
  }
  func.func @transform_1(%arg0: i32) -> (i32, i32) {
    %c0_i32 = arith.constant 0 : i32
    %c0_i32_0 = arith.constant 0 : i32
    return %arg0, %c0_i32 : i32, i32
  }
  func.func @transform_2(%arg0: i32) -> (i32, i32) {
    %c0_i32 = arith.constant 0 : i32
    %c0_i32_0 = arith.constant 0 : i32
    %c0_i32_1 = arith.constant 0 : i32
    return %c0_i32, %c0_i32_0 : i32, i32
  }
  func.func @transform_3(%arg0: i32) -> (i32, i32) {
    %c0_i32 = arith.constant 0 : i32
    %c0_i32_0 = arith.constant 0 : i32
    %c0_i32_1 = arith.constant 0 : i32
    return %c0_i32, %c0_i32_0 : i32, i32
  }
  func.func @transform_4(%arg0: i32) -> (i32, i32) {
    %c0_i32 = arith.constant 0 : i32
    %c0_i32_0 = arith.constant 0 : i32
    %c0_i32_1 = arith.constant 0 : i32
    return %c0_i32, %c0_i32_0 : i32, i32
  }
  func.func @transform_5(%arg0: i32) -> (i32, i32) {
    %c0_i32 = arith.constant 0 : i32
    %c0_i32_0 = arith.constant 0 : i32
    %c0_i32_1 = arith.constant 0 : i32
    return %c0_i32, %c0_i32_0 : i32, i32
  }
  func.func @transform_6(%arg0: i32) -> (i32, i32) {
    %c0_i32 = arith.constant 0 : i32
    %c0_i32_0 = arith.constant 0 : i32
    %c0_i32_1 = arith.constant 0 : i32
    return %c0_i32, %c0_i32_0 : i32, i32
  }
  func.func @transform_7(%arg0: i32) -> (i32, i32) {
    %c0_i32 = arith.constant 0 : i32
    %c0_i32_0 = arith.constant 0 : i32
    %c0_i32_1 = arith.constant 0 : i32
    return %c0_i32, %c0_i32_0 : i32, i32
  }
  func.func @transform_8(%arg0: i32) -> (i32, i32) {
    %c0_i32 = arith.constant 0 : i32
    %c0_i32_0 = arith.constant 0 : i32
    %c0_i32_1 = arith.constant 0 : i32
    return %c0_i32, %c0_i32_0 : i32, i32
  }
  func.func @transform_9(%arg0: i32) -> (i32, i32) {
    %c0_i32 = arith.constant 0 : i32
    %c0_i32_0 = arith.constant 0 : i32
    return %arg0, %c0_i32 : i32, i32
  }
  func.func @transform_10(%arg0: i32) -> (i32, i32) {
    %c0_i32 = arith.constant 0 : i32
    %c0_i32_0 = arith.constant 0 : i32
    return %arg0, %c0_i32 : i32, i32
  }
}

</mosaic_0001>

<llo_original>
// kernel: _lambda_.3
$region0: #{_lambda_.3}
  #allocation0 [shape = 'u32[]', space=smem, size = 0x4, offset = 0x4, fixed_abs, tag = 'smem constant byte address 0x4 - core index']
  #allocation1 [shape = 'u32[144,128]{1,0:T(1,128)}', space=vmem, size = 0x12000, scoped, tag = 'internal scratch']
  #allocation2 [shape = 'f32[1,1]{1,0:T(1,128)S(1)}', space=vmem, size = 0x200, scoped, tag = 'scoped memory for _lambda_.3']
  %s0 = inlined_call_operand.vmem [shape: f32[32,128], index: 0, kind: input, shape index: {}]
  %s1 = inlined_call_operand.vmem [shape: f32[32,4], index: 1, kind: input, shape index: {}]
  %s2 = inlined_call_operand.vmem [shape: f32[128,192], index: 2, kind: input, shape index: {}]
  %s3 = inlined_call_operand.vmem [shape: f32[4,192], index: 3, kind: input, shape index: {}]
  %s4 = inlined_call_operand.vmem [shape: f32[1,192], index: 4, kind: input, shape index: {}]
  %s5 = inlined_call_operand.vmem [shape: f32[64,128], index: 5, kind: input, shape index: {}]
  %s6 = inlined_call_operand.vmem [shape: f32[1,128], index: 6, kind: input, shape index: {}]
  %s7 = inlined_call_operand.vmem [shape: f32[1,128], index: 7, kind: input, shape index: {}]
  %s8 = inlined_call_operand.<no memory space> [shape: f32[1,1], index: 8, kind: input, shape index: {}]
  %s9 = inlined_call_operand.hbm [shape: f32[32,128], index: 9, kind: output, shape index: {0}]
  %s10 = inlined_call_operand.vmem [shape: f32[32,1], index: 10, kind: output, shape index: {1}]
  %11 = xla_tuple %s9, %s10
  %s12 = sld [smem:[#allocation0]]
  $region77: #{_lambda_.3} parent=0
    _
  %s14 = ssub.s32 1, %s12
  %s15 = scalar_select 0, %s14, %s12
  %v16 = vstv %s8
  %17 = vst [vmem:[#allocation2] sm:$0x1] %v16
  $region1: #{_lambda_.3} parent=0
    #allocation3 [shape = 'u8[16384]{0}', space=vmem, size = 0x4000, scoped, tag = 'output window, operand 0']
    #allocation4 [shape = 's32[2]{0}', space=sflag, size = 0x8, scoped, tag = 'scoped memory for _lambda_.3']
    %18 = vsyncpa [#allocation4], 0
    %s19 = scalar_lea.sflag [#allocation4], 1
    %20 = vsyncpa %s19, 0
    loop: start=0, step=1, limit=4
    $region2: #{_lambda_.3} parent=1 // loop_pre_header
      _
    $region3: #{_lambda_.3} parent=1 // loop_header
      %s22 = sphi 0, %s26
      %p23 = scmp.ge.s32.totalorder %s22, 4
      %s32 = sphi 0, %s34
      %s35 = sphi 0, %s32
      %s36 = sphi 0, %s35
      %s52 = sphi 0, %s36
      %s58 = sphi 0, %s60
      %s61 = sphi 0, %s58
      %s62 = sphi 0, %s61
      %s78 = sphi 0, %s62
      %s82 = sphi 0, %s82
      %s84 = sphi 0, %s82
      %s85 = sphi 0, %s84
      %s99 = sphi 0, %s85
      %s103 = sphi 0, %s103
      %s105 = sphi 0, %s103
      %s106 = sphi 0, %s105
      %s120 = sphi 0, %s106
      %s124 = sphi 0, %s124
      %s126 = sphi 0, %s124
      %s127 = sphi 0, %s126
      %s141 = sphi 0, %s127
      %s145 = sphi 0, %s145
      %s147 = sphi 0, %s145
      %s148 = sphi 0, %s147
      %s162 = sphi 0, %s148
      %s166 = sphi 0, %s166
      %s168 = sphi 0, %s166
      %s169 = sphi 0, %s168
      %s183 = sphi 0, %s169
      %s187 = sphi 0, %s187
      %s189 = sphi 0, %s187
      %s190 = sphi 0, %s189
      %s204 = sphi 0, %s190
      %s208 = sphi 0, %s208
      %s210 = sphi 0, %s208
      %s211 = sphi 0, %s210
      %s225 = sphi 0, %s211
      %s231 = sphi 0, %s233
      %s234 = sphi 0, %s231
      %s235 = sphi 0, %s234
      %s251 = sphi 0, %s235
      %s257 = sphi 0, %s259
      %s260 = sphi 0, %s257
      %s261 = sphi 0, %s260
      %s277 = sphi 0, %s261
    $region4: #{_lambda_.3} parent=1 // loop_header_branch
      %25 = sbr.rel (%p23) target = $region8
    $region5: #{_lambda_.3} parent=1 // loop_body
      %s27 = ssub.s32 %s22, 1
      %s28 = ssub.s32 %s22, 2
      %s29 = sadd.s32 %s22, 1
      %s30 = ssub.s32 %s22, %s29
      %p31 = scmp.eq.s32.totalorder %s30, 0
      %s33 = sadd.s32 %s32, 1
      %s34 = scalar_select %p31, %s32, %s33
      %p37 = pneg %p31
      %p38 = scmp.eq.s32.totalorder %s22, 1
      %p39 = por %p37, %p38
      %p40 = scmp.ne.s32.totalorder %s32, %s35
      %p41 = scmp.eq.s32.totalorder %s22, 0
      %p42 = por %p40, %p41
      %p43 = scmp.ne.s32.totalorder %s32, %s35
      %p44 = scmp.eq.s32.totalorder %s27, 1
      %p45 = por %p43, %p44
      %p46 = scmp.ne.s32.totalorder %s35, %s36
      %p47 = scmp.eq.s32.totalorder %s27, 0
      %p48 = por %p46, %p47
      %p49 = scmp.ne.s32.totalorder %s35, %s36
      %p50 = scmp.eq.s32.totalorder %s28, 1
      %p51 = por %p49, %p50
      %p53 = scmp.ne.s32.totalorder %s36, %s52
      %p54 = scmp.eq.s32.totalorder %s28, 0
      %p55 = por %p53, %p54
      %s56 = ssub.s32 %s22, %s29
      %p57 = scmp.eq.s32.totalorder %s56, 0
      %s59 = sadd.s32 %s58, 1
      %s60 = scalar_select %p57, %s58, %s59
      %p63 = pneg %p57
      %p64 = scmp.eq.s32.totalorder %s22, 1
      %p65 = por %p63, %p64
      %p66 = scmp.ne.s32.totalorder %s58, %s61
      %p67 = scmp.eq.s32.totalorder %s22, 0
      %p68 = por %p66, %p67
      %p69 = scmp.ne.s32.totalorder %s58, %s61
      %p70 = scmp.eq.s32.totalorder %s27, 1
      %p71 = por %p69, %p70
      %p72 = scmp.ne.s32.totalorder %s61, %s62
      %p73 = scmp.eq.s32.totalorder %s27, 0
      %p74 = por %p72, %p73
      %p75 = scmp.ne.s32.totalorder %s61, %s62
      %p76 = scmp.eq.s32.totalorder %s28, 1
      %p77 = por %p75, %p76
      %p79 = scmp.ne.s32.totalorder %s62, %s78
      %p80 = scmp.eq.s32.totalorder %s28, 0
      %p81 = por %p79, %p80
      %s83 = sadd.s32 %s82, 1
      %p86 = scmp.eq.s32.totalorder %s22, 1
      %p87 = scmp.ne.s32.totalorder %s82, %s84
      %p88 = scmp.eq.s32.totalorder %s22, 0
      %p89 = por %p87, %p88
      %p90 = scmp.ne.s32.totalorder %s82, %s84
      %p91 = scmp.eq.s32.totalorder %s27, 1
      %p92 = por %p90, %p91
      %p93 = scmp.ne.s32.totalorder %s84, %s85
      %p94 = scmp.eq.s32.totalorder %s27, 0
      %p95 = por %p93, %p94
      %p96 = scmp.ne.s32.totalorder %s84, %s85
      %p97 = scmp.eq.s32.totalorder %s28, 1
      %p98 = por %p96, %p97
      %p100 = scmp.ne.s32.totalorder %s85, %s99
      %p101 = scmp.eq.s32.totalorder %s28, 0
      %p102 = por %p100, %p101
      %s104 = sadd.s32 %s103, 1
      %p107 = scmp.eq.s32.totalorder %s22, 1
      %p108 = scmp.ne.s32.totalorder %s103, %s105
      %p109 = scmp.eq.s32.totalorder %s22, 0
      %p110 = por %p108, %p109
      %p111 = scmp.ne.s32.totalorder %s103, %s105
      %p112 = scmp.eq.s32.totalorder %s27, 1
      %p113 = por %p111, %p112
      %p114 = scmp.ne.s32.totalorder %s105, %s106
      %p115 = scmp.eq.s32.totalorder %s27, 0
      %p116 = por %p114, %p115
      %p117 = scmp.ne.s32.totalorder %s105, %s106
      %p118 = scmp.eq.s32.totalorder %s28, 1
      %p119 = por %p117, %p118
      %p121 = scmp.ne.s32.totalorder %s106, %s120
      %p122 = scmp.eq.s32.totalorder %s28, 0
      %p123 = por %p121, %p122
      %s125 = sadd.s32 %s124, 1
      %p128 = scmp.eq.s32.totalorder %s22, 1
      %p129 = scmp.ne.s32.totalorder %s124, %s126
      %p130 = scmp.eq.s32.totalorder %s22, 0
      %p131 = por %p129, %p130
      %p132 = scmp.ne.s32.totalorder %s124, %s126
      %p133 = scmp.eq.s32.totalorder %s27, 1
      %p134 = por %p132, %p133
      %p135 = scmp.ne.s32.totalorder %s126, %s127
      %p136 = scmp.eq.s32.totalorder %s27, 0
      %p137 = por %p135, %p136
      %p138 = scmp.ne.s32.totalorder %s126, %s127
      %p139 = scmp.eq.s32.totalorder %s28, 1
      %p140 = por %p138, %p139
      %p142 = scmp.ne.s32.totalorder %s127, %s141
      %p143 = scmp.eq.s32.totalorder %s28, 0
      %p144 = por %p142, %p143
      %s146 = sadd.s32 %s145, 1
      %p149 = scmp.eq.s32.totalorder %s22, 1
      %p150 = scmp.ne.s32.totalorder %s145, %s147
      %p151 = scmp.eq.s32.totalorder %s22, 0
      %p152 = por %p150, %p151
      %p153 = scmp.ne.s32.totalorder %s145, %s147
      %p154 = scmp.eq.s32.totalorder %s27, 1
      %p155 = por %p153, %p154
      %p156 = scmp.ne.s32.totalorder %s147, %s148
      %p157 = scmp.eq.s32.totalorder %s27, 0
      %p158 = por %p156, %p157
      %p159 = scmp.ne.s32.totalorder %s147, %s148
      %p160 = scmp.eq.s32.totalorder %s28, 1
      %p161 = por %p159, %p160
      %p163 = scmp.ne.s32.totalorder %s148, %s162
      %p164 = scmp.eq.s32.totalorder %s28, 0
      %p165 = por %p163, %p164
      %s167 = sadd.s32 %s166, 1
      %p170 = scmp.eq.s32.totalorder %s22, 1
      %p171 = scmp.ne.s32.totalorder %s166, %s168
      %p172 = scmp.eq.s32.totalorder %s22, 0
      %p173 = por %p171, %p172
      %p174 = scmp.ne.s32.totalorder %s166, %s168
      %p175 = scmp.eq.s32.totalorder %s27, 1
      %p176 = por %p174, %p175
      %p177 = scmp.ne.s32.totalorder %s168, %s169
      %p178 = scmp.eq.s32.totalorder %s27, 0
      %p179 = por %p177, %p178
      %p180 = scmp.ne.s32.totalorder %s168, %s169
      %p181 = scmp.eq.s32.totalorder %s28, 1
      %p182 = por %p180, %p181
      %p184 = scmp.ne.s32.totalorder %s169, %s183
      %p185 = scmp.eq.s32.totalorder %s28, 0
      %p186 = por %p184, %p185
      %s188 = sadd.s32 %s187, 1
      %p191 = scmp.eq.s32.totalorder %s22, 1
      %p192 = scmp.ne.s32.totalorder %s187, %s189
      %p193 = scmp.eq.s32.totalorder %s22, 0
      %p194 = por %p192, %p193
      %p195 = scmp.ne.s32.totalorder %s187, %s189
      %p196 = scmp.eq.s32.totalorder %s27, 1
      %p197 = por %p195, %p196
      %p198 = scmp.ne.s32.totalorder %s189, %s190
      %p199 = scmp.eq.s32.totalorder %s27, 0
      %p200 = por %p198, %p199
      %p201 = scmp.ne.s32.totalorder %s189, %s190
      %p202 = scmp.eq.s32.totalorder %s28, 1
      %p203 = por %p201, %p202
      %p205 = scmp.ne.s32.totalorder %s190, %s204
      %p206 = scmp.eq.s32.totalorder %s28, 0
      %p207 = por %p205, %p206
      %s209 = sadd.s32 %s208, 1
      %p212 = scmp.eq.s32.totalorder %s22, 1
      %p213 = scmp.ne.s32.totalorder %s208, %s210
      %p214 = scmp.eq.s32.totalorder %s22, 0
      %p215 = por %p213, %p214
      %p216 = scmp.ne.s32.totalorder %s208, %s210
      %p217 = scmp.eq.s32.totalorder %s27, 1
      %p218 = por %p216, %p217
      %p219 = scmp.ne.s32.totalorder %s210, %s211
      %p220 = scmp.eq.s32.totalorder %s27, 0
      %p221 = por %p219, %p220
      %p222 = scmp.ne.s32.totalorder %s210, %s211
      %p223 = scmp.eq.s32.totalorder %s28, 1
      %p224 = por %p222, %p223
      %p226 = scmp.ne.s32.totalorder %s211, %s225
      %p227 = scmp.eq.s32.totalorder %s28, 0
      %p228 = por %p226, %p227
      %s229 = ssub.s32 %s22, %s29
      %p230 = scmp.eq.s32.totalorder %s229, 0
      %s232 = sadd.s32 %s231, 1
      %s233 = scalar_select %p230, %s231, %s232
      %p236 = pneg %p230
      %p237 = scmp.eq.s32.totalorder %s22, 1
      %p238 = por %p236, %p237
      %p239 = scmp.ne.s32.totalorder %s231, %s234
      %p240 = scmp.eq.s32.totalorder %s22, 0
      %p241 = por %p239, %p240
      %p242 = scmp.ne.s32.totalorder %s231, %s234
      %p243 = scmp.eq.s32.totalorder %s27, 1
      %p244 = por %p242, %p243
      %p245 = scmp.ne.s32.totalorder %s234, %s235
      %p246 = scmp.eq.s32.totalorder %s27, 0
      %p247 = por %p245, %p246
      %p248 = scmp.ne.s32.totalorder %s234, %s235
      %p249 = scmp.eq.s32.totalorder %s28, 1
      %p250 = por %p248, %p249
      %p252 = scmp.ne.s32.totalorder %s235, %s251
      %p253 = scmp.eq.s32.totalorder %s28, 0
      %p254 = por %p252, %p253
      %s255 = ssub.s32 %s22, %s29
      %p256 = scmp.eq.s32.totalorder %s255, 0
      %s258 = sadd.s32 %s257, 1
      %s259 = scalar_select %p256, %s257, %s258
      %p262 = pneg %p256
      %p263 = scmp.eq.s32.totalorder %s22, 1
      %p264 = por %p262, %p263
      %p265 = scmp.ne.s32.totalorder %s257, %s260
      %p266 = scmp.eq.s32.totalorder %s22, 0
      %p267 = por %p265, %p266
      %p268 = scmp.ne.s32.totalorder %s257, %s260
      %p269 = scmp.eq.s32.totalorder %s27, 1
      %p270 = por %p268, %p269
      %p271 = scmp.ne.s32.totalorder %s260, %s261
      %p272 = scmp.eq.s32.totalorder %s27, 0
      %p273 = por %p271, %p272
      %p274 = scmp.ne.s32.totalorder %s260, %s261
      %p275 = scmp.eq.s32.totalorder %s28, 1
      %p276 = por %p274, %p275
      %p278 = scmp.ne.s32.totalorder %s261, %s277
      %p279 = scmp.eq.s32.totalorder %s28, 0
      %p280 = por %p278, %p279
      %p281 = scmp.le.s32.totalorder 1, %s22
      %p282 = scmp.lt.s32.totalorder %s22, 3
      %p283 = pnand %p281, %p282
      %p284 = pneg %p283
      // Predicated region
      $region9: #{_lambda_.3} parent=5 // pred_check
        _
      $region10: #{_lambda_.3} parent=5 // pred_check_branch
        %286 = sbr.rel (%p283) target = $region12
      $region11: #{_lambda_.3} parent=5 // pred_region
        %s287 = ssub.s32 %s22, 1
        // Predicated region
        $region13: #{_lambda_.3} parent=11 // pred_check
          %p288 = pneg %p95
        $region14: #{_lambda_.3} parent=11 // pred_check_branch
          %290 = sbr.rel (%p288) target = $region16
        $region15: #{_lambda_.3} parent=11 // pred_region
          _
        $region16: #{_lambda_.3} parent=11 // pred_fallthru
          _
        // Predicated region
        $region17: #{_lambda_.3} parent=11 // pred_check
          %p291 = pneg %p116
        $region18: #{_lambda_.3} parent=11 // pred_check_branch
          %293 = sbr.rel (%p291) target = $region20
        $region19: #{_lambda_.3} parent=11 // pred_region
          _
        $region20: #{_lambda_.3} parent=11 // pred_fallthru
          _
        // Predicated region
        $region21: #{_lambda_.3} parent=11 // pred_check
          %p294 = pneg %p137
        $region22: #{_lambda_.3} parent=11 // pred_check_branch
          %296 = sbr.rel (%p294) target = $region24
        $region23: #{_lambda_.3} parent=11 // pred_region
          _
        $region24: #{_lambda_.3} parent=11 // pred_fallthru
          _
        // Predicated region
        $region25: #{_lambda_.3} parent=11 // pred_check
          %p297 = pneg %p158
        $region26: #{_lambda_.3} parent=11 // pred_check_branch
          %299 = sbr.rel (%p297) target = $region28
        $region27: #{_lambda_.3} parent=11 // pred_region
          _
        $region28: #{_lambda_.3} parent=11 // pred_fallthru
          _
        // Predicated region
        $region29: #{_lambda_.3} parent=11 // pred_check
          %p300 = pneg %p179
        $region30: #{_lambda_.3} parent=11 // pred_check_branch
          %302 = sbr.rel (%p300) target = $region32
        $region31: #{_lambda_.3} parent=11 // pred_region
          _
        $region32: #{_lambda_.3} parent=11 // pred_fallthru
          _
        // Predicated region
        $region33: #{_lambda_.3} parent=11 // pred_check
          %p303 = pneg %p200
        $region34: #{_lambda_.3} parent=11 // pred_check_branch
          %305 = sbr.rel (%p303) target = $region36
        $region35: #{_lambda_.3} parent=11 // pred_region
          _
        $region36: #{_lambda_.3} parent=11 // pred_fallthru
          _
        // Predicated region
        $region37: #{_lambda_.3} parent=11 // pred_check
          %p306 = pneg %p221
        $region38: #{_lambda_.3} parent=11 // pred_check_branch
          %308 = sbr.rel (%p306) target = $region40
        $region39: #{_lambda_.3} parent=11 // pred_region
          _
        $region40: #{_lambda_.3} parent=11 // pred_fallthru
          _
      $region12: #{_lambda_.3} parent=5 // pred_fallthru
        _
      %p309 = scmp.lt.s32.totalorder %s22, 2
      // Predicated region
      $region41: #{_lambda_.3} parent=5 // pred_check
        %p310 = pneg %p309
      $region42: #{_lambda_.3} parent=5 // pred_check_branch
        %312 = sbr.rel (%p310) target = $region44
      $region43: #{_lambda_.3} parent=5 // pred_region
        // Predicated region
        $region45: #{_lambda_.3} parent=43 // pred_check
          %p313 = pneg %p42
        $region46: #{_lambda_.3} parent=43 // pred_check_branch
          %315 = sbr.rel (%p313) target = $region48
        $region47: #{_lambda_.3} parent=43 // pred_region
          %s316 = smul.u32 2, %s22
          %p317 = scmp.lt.s32.totalorder %s316, 3
          %s318 = scalar_select %p317, %s316, 3
          %s319 = smul.addr %s318, 8
          %s320 = scalar_lea.vmem %s0, %s319
          %s321 = smul.u32 2, %s22
        $region48: #{_lambda_.3} parent=43 // pred_fallthru
          _
        // Predicated region
        $region49: #{_lambda_.3} parent=43 // pred_check
          %p322 = pneg %p68
        $region50: #{_lambda_.3} parent=43 // pred_check_branch
          %324 = sbr.rel (%p322) target = $region52
        $region51: #{_lambda_.3} parent=43 // pred_region
          %s325 = smul.u32 2, %s22
          %p326 = scmp.lt.s32.totalorder %s325, 3
          %s327 = scalar_select %p326, %s325, 3
          %s328 = smul.addr %s327, 8
          %s329 = scalar_lea.vmem %s1, %s328
          %s330 = smul.u32 2, %s22
        $region52: #{_lambda_.3} parent=43 // pred_fallthru
          _
      $region44: #{_lambda_.3} parent=5 // pred_fallthru
        _
      %p331 = scmp.le.s32.totalorder 1, %s22
      %p332 = scmp.lt.s32.totalorder %s22, 3
      %p333 = pnand %p331, %p332
      %p334 = pneg %p333
      // Predicated region
      $region53: #{_lambda_.3} parent=5 // pred_check
        _
      $region54: #{_lambda_.3} parent=5 // pred_check_branch
        %336 = sbr.rel (%p333) target = $region56
      $region55: #{_lambda_.3} parent=5 // pred_region
        %s337 = ssub.s32 %s22, 1
        %s338 = smul.u32 2, %s27
        %p339 = scmp.lt.s32.totalorder %s338, 3
        %s340 = scalar_select %p339, %s338, 3
        %s341 = smul.addr %s340, 8
        %s342 = scalar_lea.vmem %s0, %s341
        %p343 = pneg %p48
        %p344 = pneg %p45
        %s345 = smul.u32 2, %s27
        %p346 = scmp.lt.s32.totalorder %s345, 3
        %s347 = scalar_select %p346, %s345, 3
        %s348 = smul.addr %s347, 8
        %s349 = scalar_lea.vmem %s1, %s348
        %p350 = pneg %p74
        %p351 = pneg %p71
        %p352 = pneg %p95
        %p353 = pneg %p92
        %p354 = pneg %p116
        %p355 = pneg %p113
        %p356 = pneg %p137
        %p357 = pneg %p134
        %p358 = pneg %p158
        %p359 = pneg %p155
        %p360 = pneg %p179
        %p361 = pneg %p176
        %p362 = pneg %p200
        %p363 = pneg %p197
        %p364 = pneg %p221
        %p365 = pneg %p218
        %p366 = pneg %p247
        %p367 = pneg %p244
        %s368 = sand.u32 %s234, 1
        %s369 = scalar_lea.sflag [#allocation4], %s368
        %s370 = sand.u32 %s234, 1
        %s371 = smul.addr %s370, 16
        %s372 = scalar_lea.vmem [#allocation3], %s371
        %p373 = pneg %p273
        %p374 = pneg %p270
        %s375 = smul.u32 2, %s27
        %p376 = scmp.lt.s32.totalorder %s375, 3
        %s377 = scalar_select %p376, %s375, 3
        %s378 = smul.addr %s377, 8
        %s379 = scalar_lea.vmem %s10, %s378
        %s380 = smul.u32 2, %s27
        %p381 = scmp.lt.s32.totalorder %s380, 3
        %s382 = scalar_select %p381, %s380, 3
        %s383 = smul.addr %s382, 8
        %s384 = scalar_lea.vmem %s0, %s383
        %s385 = smul.u32 2, %s27
        %s386 = smul.u32 2, %s27
        %p387 = scmp.lt.s32.totalorder %s386, 3
        %s388 = scalar_select %p387, %s386, 3
        %s389 = smul.addr %s388, 8
        %s390 = scalar_lea.vmem %s1, %s389
        %s391 = smul.u32 2, %s27
        %s392 = smul.u32 2, %s27
        %s393 = smul.u32 2, %s27
        %p394 = scmp.lt.s32.totalorder %s393, 3
        %s395 = scalar_select %p394, %s393, 3
        %s396 = smul.addr %s395, 8
        %s397 = scalar_lea.vmem %s10, %s396
        %s398 = smul.u32 2, %s27
        %v399 = vld [vmem:[%s384] sm:$0xff]
        %v400 = vld [vmem:[%s384 + $0x8] sm:$0xff]
        %v401 = vld [vmem:[%s390] sm:$0xff]
        %v402 = vld [vmem:[%s390 + $0x8] sm:$0xff]
        %v403 = vld [vmem:[%s2] sm:$0xff]
        %v404 = vld [vmem:[%s2 + $0x8] sm:$0xff]
        %v405 = vld [vmem:[%s2 + $0x10] sm:$0xff]
        %v406 = vld [vmem:[%s2 + $0x18] sm:$0xff]
        %v407 = vld [vmem:[%s2 + $0x20] sm:$0xff]
        %v408 = vld [vmem:[%s2 + $0x28] sm:$0xff]
        %v409 = vld [vmem:[%s2 + $0x30] sm:$0xff]
        %v410 = vld [vmem:[%s2 + $0x38] sm:$0xff]
        %v411 = vld [vmem:[%s2 + $0x40] sm:$0xff]
        %v412 = vld [vmem:[%s2 + $0x48] sm:$0xff]
        %v413 = vld [vmem:[%s2 + $0x50] sm:$0xff]
        %v414 = vld [vmem:[%s2 + $0x58] sm:$0xff]
        %v415 = vld [vmem:[%s2 + $0x60] sm:$0xff]
        %v416 = vld [vmem:[%s2 + $0x68] sm:$0xff]
        %v417 = vld [vmem:[%s2 + $0x70] sm:$0xff]
        %v418 = vld [vmem:[%s2 + $0x78] sm:$0xff]
        %v419 = vld [vmem:[%s2 + $0x80] sm:$0xff]
        %v420 = vld [vmem:[%s2 + $0x88] sm:$0xff]
        %v421 = vld [vmem:[%s2 + $0x90] sm:$0xff]
        %v422 = vld [vmem:[%s2 + $0x98] sm:$0xff]
        %v423 = vld [vmem:[%s2 + $0xa0] sm:$0xff]
        %v424 = vld [vmem:[%s2 + $0xa8] sm:$0xff]
        %v425 = vld [vmem:[%s2 + $0xb0] sm:$0xff]
        %v426 = vld [vmem:[%s2 + $0xb8] sm:$0xff]
        %v427 = vld [vmem:[%s2 + $0xc0] sm:$0xff]
        %v428 = vld [vmem:[%s2 + $0xc8] sm:$0xff]
        %v429 = vld [vmem:[%s2 + $0xd0] sm:$0xff]
        %v430 = vld [vmem:[%s2 + $0xd8] sm:$0xff]
        %v431 = vld [vmem:[%s2 + $0xe0] sm:$0xff]
        %v432 = vld [vmem:[%s2 + $0xe8] sm:$0xff]
        %v433 = vld [vmem:[%s2 + $0xf0] sm:$0xff]
        %v434 = vld [vmem:[%s2 + $0xf8] sm:$0xff]
        %v435 = vld [vmem:[%s3] sm:$0xff]
        %v437 = vcombine.high %v435, %v435
        %vm438 = vcmask 31744
        %v440 = vsel %vm438, %v401, 0
        %v443 = vsel %vm438, %v402, 0
        %vm445 = vcmask 1043456
        %v446 = vsel %vm445, %v435, 0
        %v448 = vsel %vm445, %v437, 0
        %450 = vmatprep.subr.mxu0 %v448
        %451 = vmatpush1.msra.mxu0 %v446
        %452 = vmatprep.subr.mxu0 0.0
        %453 = vmatpush1.msra.mxu0 0.0
        %454 = vmatprep.subr.mxu0 0.0
        %455 = vmatpush1.msra.mxu0 0.0
        %456 = vmatprep.subr.mxu0 0.0
        %457 = vmatpush1.msra.mxu0 0.0
        %458 = vmatprep.subr.mxu0 0.0
        %459 = vmatpush1.msra.mxu0 0.0
        %460 = vmatprep.subr.mxu0 0.0
        %461 = vmatpush1.msra.mxu0 0.0
        %462 = vmatprep.subr.mxu0 0.0
        %463 = vmatpush1.msra.mxu0 0.0
        %464 = vmatprep.subr.mxu0 0.0
        %465 = vmatpush1.msra.mxu0 0.0
        %466 = vmatprep.subr.mxu0 0.0
        %467 = vmatpush1.msra.mxu0 0.0
        %468 = vmatprep.subr.mxu0 0.0
        %469 = vmatpush1.msra.mxu0 0.0
        %470 = vmatprep.subr.mxu0 0.0
        %471 = vmatpush1.msra.mxu0 0.0
        %472 = vmatprep.subr.mxu0 0.0
        %473 = vmatpush1.msra.mxu0 0.0
        %474 = vmatprep.subr.mxu0 0.0
        %475 = vmatpush1.msra.mxu0 0.0
        %476 = vmatprep.subr.mxu0 0.0
        %477 = vmatpush1.msra.mxu0 0.0
        %478 = vmatprep.subr.mxu0 0.0
        %479 = vmatpush1.msra.mxu0 0.0
        %480 = vmatprep.subr.mxu0 0.0
        %481 = vmatpush1.msra.mxu0 0.0
        %482 = vmatprep.subr.mxu0 0.0
        %483 = vmatpush1.msra.mxu0 0.0
        %484 = vmatprep.subr.mxu0 0.0
        %485 = vmatpush1.msra.mxu0 0.0
        %486 = vmatprep.subr.mxu0 0.0
        %487 = vmatpush1.msra.mxu0 0.0
        %488 = vmatprep.subr.mxu0 0.0
        %489 = vmatpush1.msra.mxu0 0.0
        %490 = vmatprep.subr.mxu0 0.0
        %491 = vmatpush1.msra.mxu0 0.0
        %492 = vmatprep.subr.mxu0 0.0
        %493 = vmatpush1.msra.mxu0 0.0
        %494 = vmatprep.subr.mxu0 0.0
        %495 = vmatpush1.msra.mxu0 0.0
        %496 = vmatprep.subr.mxu0 0.0
        %497 = vmatpush1.msra.mxu0 0.0
        %498 = vmatprep.subr.mxu0 0.0
        %499 = vmatpush1.msra.mxu0 0.0
        %500 = vmatprep.subr.mxu0 0.0
        %501 = vmatpush1.msra.mxu0 0.0
        %502 = vmatprep.subr.mxu0 0.0
        %503 = vmatpush1.msra.mxu0 0.0
        %504 = vmatprep.subr.mxu0 0.0
        %505 = vmatpush1.msra.mxu0 0.0
        %506 = vmatprep.subr.mxu0 0.0
        %507 = vmatpush1.msra.mxu0 0.0
        %508 = vmatprep.subr.mxu0 0.0
        %509 = vmatpush1.msra.mxu0 0.0
        %510 = vmatprep.subr.mxu0 0.0
        %511 = vmatpush1.msra.mxu0 0.0
        %512 = vmatprep.subr.mxu0 0.0
        %513 = vmatpush1.msra.mxu0 0.0
        %514 = vmatprep.mubr.f32.mxu0 0.0
        %515 = vmatmul.mubr.f32.gmra.mrb[0].mxu0 %v440
        %v516 = vpop.f32.mrb[0].mxu0
        %v517 = vadd.f32 0.0, %v516
        %v518 = vpop.f32.mrb[0].mxu0
        %v519 = vadd.f32 0.0, %v518
        %520 = vmatprep.mubr.f32.mxu0 0.0
        %521 = vmatmul.mubr.f32.gmra.mrb[0].mxu0 %v443
        %v522 = vpop.f32.mrb[0].mxu0
        %v523 = vadd.f32 0.0, %v522
        %v524 = vpop.f32.mrb[0].mxu0
        %v525 = vadd.f32 0.0, %v524
        %526 = vdwg.mxu0
        %527 = vmatprep.subr.mxu0 %v404
        %528 = vmatpush1.msra.mxu0 %v403
        %529 = vmatprep.subr.mxu0 %v406
        %530 = vmatpush1.msra.mxu0 %v405
        %531 = vmatprep.subr.mxu0 %v408
        %532 = vmatpush1.msra.mxu0 %v407
        %533 = vmatprep.subr.mxu0 %v410
        %534 = vmatpush1.msra.mxu0 %v409
        %535 = vmatprep.subr.mxu0 %v412
        %536 = vmatpush1.msra.mxu0 %v411
        %537 = vmatprep.subr.mxu0 %v414
        %538 = vmatpush1.msra.mxu0 %v413
        %539 = vmatprep.subr.mxu0 %v416
        %540 = vmatpush1.msra.mxu0 %v415
        %541 = vmatprep.subr.mxu0 %v418
        %542 = vmatpush1.msra.mxu0 %v417
        %543 = vmatprep.subr.mxu0 %v420
        %544 = vmatpush1.msra.mxu0 %v419
        %545 = vmatprep.subr.mxu0 %v422
        %546 = vmatpush1.msra.mxu0 %v421
        %547 = vmatprep.subr.mxu0 %v424
        %548 = vmatpush1.msra.mxu0 %v423
        %549 = vmatprep.subr.mxu0 %v426
        %550 = vmatpush1.msra.mxu0 %v425
        %551 = vmatprep.subr.mxu0 %v428
        %552 = vmatpush1.msra.mxu0 %v427
        %553 = vmatprep.subr.mxu0 %v430
        %554 = vmatpush1.msra.mxu0 %v429
        %555 = vmatprep.subr.mxu0 %v432
        %556 = vmatpush1.msra.mxu0 %v431
        %557 = vmatprep.subr.mxu0 %v434
        %558 = vmatpush1.msra.mxu0 %v433
        %559 = vmatprep.subr.mxu0 0.0
        %560 = vmatpush1.msra.mxu0 0.0
        %561 = vmatprep.subr.mxu0 0.0
        %562 = vmatpush1.msra.mxu0 0.0
        %563 = vmatprep.subr.mxu0 0.0
        %564 = vmatpush1.msra.mxu0 0.0
        %565 = vmatprep.subr.mxu0 0.0
        %566 = vmatpush1.msra.mxu0 0.0
        %567 = vmatprep.subr.mxu0 0.0
        %568 = vmatpush1.msra.mxu0 0.0
        %569 = vmatprep.subr.mxu0 0.0
        %570 = vmatpush1.msra.mxu0 0.0
        %571 = vmatprep.subr.mxu0 0.0
        %572 = vmatpush1.msra.mxu0 0.0
        %573 = vmatprep.subr.mxu0 0.0
        %574 = vmatpush1.msra.mxu0 0.0
        %575 = vmatprep.subr.mxu0 0.0
        %576 = vmatpush1.msra.mxu0 0.0
        %577 = vmatprep.subr.mxu0 0.0
        %578 = vmatpush1.msra.mxu0 0.0
        %579 = vmatprep.subr.mxu0 0.0
        %580 = vmatpush1.msra.mxu0 0.0
        %581 = vmatprep.subr.mxu0 0.0
        %582 = vmatpush1.msra.mxu0 0.0
        %583 = vmatprep.subr.mxu0 0.0
        %584 = vmatpush1.msra.mxu0 0.0
        %585 = vmatprep.subr.mxu0 0.0
        %586 = vmatpush1.msra.mxu0 0.0
        %587 = vmatprep.subr.mxu0 0.0
        %588 = vmatpush1.msra.mxu0 0.0
        %589 = vmatprep.subr.mxu0 0.0
        %590 = vmatpush1.msra.mxu0 0.0
        %591 = vmatprep.mubr.f32.mxu0 0.0
        %592 = vmatmul.mubr.f32.gmra.mrb[0].mxu0 %v399
        %v593 = vpop.f32.mrb[0].mxu0
        %v594 = vadd.f32 %v517, %v593
        %v595 = vpop.f32.mrb[0].mxu0
        %v596 = vadd.f32 %v519, %v595
        %597 = vmatprep.mubr.f32.mxu0 0.0
        %598 = vmatmul.mubr.f32.gmra.mrb[0].mxu0 %v400
        %v599 = vpop.f32.mrb[0].mxu0
        %v600 = vadd.f32 %v523, %v599
        %v601 = vpop.f32.mrb[0].mxu0
        %v602 = vadd.f32 %v525, %v601
        %603 = vdwg.mxu0
        %v604 = vld [vmem:[%s4] sm:$0x3]
        %v606 = vlaneseq
        %v607 = vshrl.u32 %v606, 7
        %v608 = vsub.s32 0, %v607
        %v609 = vrot.slane %v604, %v608
        %v610 = vlaneseq
        %v611 = vshrl.u32 %v610, 7
        %v612 = vsub.s32 1, %v611
        %v613 = vrot.slane %v604, %v612
        %v616 = vadd.f32 %v594, %v609
        %v617 = vadd.f32 %v596, %v613
        %v618 = vadd.f32 %v600, %v609
        %v619 = vadd.f32 %v602, %v613
        %vm620 = vcmp.gt.f32.partialorder %v617, 0.0
        %vm621 = vcmp.gt.f32.partialorder %v619, 0.0
        %v622 = vmul.f32 %v617, 1.442695
        %v623 = vpow.pop %v622
        %v624 = vmul.f32 %v619, 1.442695
        %v625 = vpow.pop %v624
        %v626 = vsub.f32 %v623, 1.0
        %v627 = vsub.f32 %v625, 1.0
        %v628 = vsel %vm620, %v617, %v626
        %v629 = vsel %vm621, %v619, %v627
        %v630 = vld [vmem:[%s5] sm:$0xff]
        %v631 = vld [vmem:[%s5 + $0x8] sm:$0xff]
        %v632 = vld [vmem:[%s5 + $0x10] sm:$0xff]
        %v633 = vld [vmem:[%s5 + $0x18] sm:$0xff]
        %v634 = vld [vmem:[%s5 + $0x20] sm:$0xff]
        %v635 = vld [vmem:[%s5 + $0x28] sm:$0xff]
        %v636 = vld [vmem:[%s5 + $0x30] sm:$0xff]
        %v637 = vld [vmem:[%s5 + $0x38] sm:$0xff]
        %v638 = vld [vmem:[%s6] sm:$0x1]
        %v640 = vlaneseq
        %v641 = vshrl.u32 %v640, 7
        %v642 = vsub.s32 0, %v641
        %v643 = vrot.slane %v638, %v642
        %vm645 = vcmask 523264
        %v647 = vsel %vm645, %v628, 0
        %v650 = vsel %vm645, %v629, 0
        %652 = vmatprep.subr.mxu0 0.0
        %653 = vmatpush1.msra.mxu0 %v630
        %654 = vmatprep.subr.mxu0 0.0
        %655 = vmatpush1.msra.mxu0 %v631
        %656 = vmatprep.subr.mxu0 0.0
        %657 = vmatpush1.msra.mxu0 %v632
        %658 = vmatprep.subr.mxu0 0.0
        %659 = vmatpush1.msra.mxu0 %v633
        %660 = vmatprep.subr.mxu0 0.0
        %661 = vmatpush1.msra.mxu0 %v634
        %662 = vmatprep.subr.mxu0 0.0
        %663 = vmatpush1.msra.mxu0 %v635
        %664 = vmatprep.subr.mxu0 0.0
        %665 = vmatpush1.msra.mxu0 %v636
        %666 = vmatprep.subr.mxu0 0.0
        %667 = vmatpush1.msra.mxu0 %v637
        %668 = vmatprep.subr.mxu0 0.0
        %669 = vmatpush1.msra.mxu0 0.0
        %670 = vmatprep.subr.mxu0 0.0
        %671 = vmatpush1.msra.mxu0 0.0
        %672 = vmatprep.subr.mxu0 0.0
        %673 = vmatpush1.msra.mxu0 0.0
        %674 = vmatprep.subr.mxu0 0.0
        %675 = vmatpush1.msra.mxu0 0.0
        %676 = vmatprep.subr.mxu0 0.0
        %677 = vmatpush1.msra.mxu0 0.0
        %678 = vmatprep.subr.mxu0 0.0
        %679 = vmatpush1.msra.mxu0 0.0
        %680 = vmatprep.subr.mxu0 0.0
        %681 = vmatpush1.msra.mxu0 0.0
        %682 = vmatprep.subr.mxu0 0.0
        %683 = vmatpush1.msra.mxu0 0.0
        %684 = vmatprep.subr.mxu0 0.0
        %685 = vmatpush1.msra.mxu0 0.0
        %686 = vmatprep.subr.mxu0 0.0
        %687 = vmatpush1.msra.mxu0 0.0
        %688 = vmatprep.subr.mxu0 0.0
        %689 = vmatpush1.msra.mxu0 0.0
        %690 = vmatprep.subr.mxu0 0.0
        %691 = vmatpush1.msra.mxu0 0.0
        %692 = vmatprep.subr.mxu0 0.0
        %693 = vmatpush1.msra.mxu0 0.0
        %694 = vmatprep.subr.mxu0 0.0
        %695 = vmatpush1.msra.mxu0 0.0
        %696 = vmatprep.subr.mxu0 0.0
        %697 = vmatpush1.msra.mxu0 0.0
        %698 = vmatprep.subr.mxu0 0.0
        %699 = vmatpush1.msra.mxu0 0.0
        %700 = vmatprep.subr.mxu0 0.0
        %701 = vmatpush1.msra.mxu0 0.0
        %702 = vmatprep.subr.mxu0 0.0
        %703 = vmatpush1.msra.mxu0 0.0
        %704 = vmatprep.subr.mxu0 0.0
        %705 = vmatpush1.msra.mxu0 0.0
        %706 = vmatprep.subr.mxu0 0.0
        %707 = vmatpush1.msra.mxu0 0.0
        %708 = vmatprep.subr.mxu0 0.0
        %709 = vmatpush1.msra.mxu0 0.0
        %710 = vmatprep.subr.mxu0 0.0
        %711 = vmatpush1.msra.mxu0 0.0
        %712 = vmatprep.subr.mxu0 0.0
        %713 = vmatpush1.msra.mxu0 0.0
        %714 = vmatprep.subr.mxu0 0.0
        %715 = vmatpush1.msra.mxu0 0.0
        %716 = vmatprep.mubr.f32.mxu0 0.0
        %717 = vmatmul.mubr.f32.gmra.mrb[0].mxu0 %v647
        %v718 = vpop.f32.mrb[0].mxu0
        %v719 = vadd.f32 %v643, %v718
        %v720 = vpop.f32.mrb[0].mxu0
        %721 = vmatprep.mubr.f32.mxu0 0.0
        %722 = vmatmul.mubr.f32.gmra.mrb[0].mxu0 %v650
        %v723 = vpop.f32.mrb[0].mxu0
        %v724 = vadd.f32 %v643, %v723
        %v725 = vpop.f32.mrb[0].mxu0
        %726 = vdwg.mxu0
        %727 = vst [vmem:[%s372] sm:$0xff] %v719
        %728 = vst [vmem:[%s372 + $0x8] sm:$0xff] %v724
        %v729 = vmax.f32 %v616, 0.0
        %v730 = vmax.f32 %v618, 0.0
        %v731 = vld [vmem:[%s7] sm:$0x1]
        %v733 = vlaneseq
        %v734 = vshrl.u32 %v733, 7
        %v735 = vsub.s32 0, %v734
        %v736 = vrot.slane %v731, %v735
        %v738 = vmul.f32 %v729, %v736
        %v739 = vmul.f32 %v730, %v736
        %740 = vadd.xlane.f32.xlu0 %v738
        %v741 = vpop.xlane.xlu0 %740
        %742 = vadd.xlane.f32.xlu0 %v739
        %v743 = vpop.xlane.xlu0 %742
        %v744 = vld [vmem:[#allocation2] sm:$0x1]
        %v746 = vlaneseq
        %v747 = vshrl.u32 %v746, 7
        %v748 = vsub.s32 0, %v747
        %v749 = vrot.slane %v744, %v748
        %v751 = vadd.f32 %v741, %v749
        %v752 = vadd.f32 %v743, %v749
        %v753 = vtanh.pop %v751
        %v754 = vtanh.pop %v752
        %vm755 = vcmask 7168
        %756 = vst.msk [vmem:[%s397] sm:$0xff] %vm755, %v753
        %757 = vst.msk [vmem:[%s397 + $0x8] sm:$0xff] %vm755, %v754
        %s758 = sand.u32 %s234, 1
        %s759 = scalar_lea.sflag [#allocation4], %s758
        %s760 = sand.u32 %s234, 1
        %s761 = smul.addr %s760, 16
        %s762 = scalar_lea.vmem [#allocation3], %s761
        %s763 = smul.u32 2, %s27
        %p764 = scmp.lt.s32.totalorder %s763, 3
        %s765 = scalar_select %p764, %s763, 3
        %s766 = smul.addr %s765, 8
        %s767 = scalar_lea.vmem %s10, %s766
        // Predicated region
        $region57: #{_lambda_.3} parent=55 // pred_check
          %p768 = pneg %p244
        $region58: #{_lambda_.3} parent=55 // pred_check_branch
          %770 = sbr.rel (%p768) target = $region60
        $region59: #{_lambda_.3} parent=55 // pred_region
          %s771 = smul.u32 2, %s27
          %s773 = ssub.s32 256, 256
          %774 = vsyncadd %s759, %s773
          %s775 = smul.addr %s771, 128
          %s776 = scalar_lea.hbm %s9, %s775
          %s777 = sshll.u32 %s762, 4
          %s778 = int_to_ptr.vmem [resolvable:$true] %s777
          %783 = dma.vmem_to_hbm [thread:$0]  %s778, 256, %s776, %s759, 128, 128, 8
        $region60: #{_lambda_.3} parent=55 // pred_fallthru
          _
        // Predicated region
        $region61: #{_lambda_.3} parent=55 // pred_check
          %p784 = pneg %p270
        $region62: #{_lambda_.3} parent=55 // pred_check_branch
          %786 = sbr.rel (%p784) target = $region64
        $region63: #{_lambda_.3} parent=55 // pred_region
          %s787 = smul.u32 2, %s27
        $region64: #{_lambda_.3} parent=55 // pred_fallthru
          _
      $region56: #{_lambda_.3} parent=5 // pred_fallthru
        _
      %p788 = scmp.le.s32.totalorder 2, %s22
      // Predicated region
      $region65: #{_lambda_.3} parent=5 // pred_check
        %p789 = pneg %p788
      $region66: #{_lambda_.3} parent=5 // pred_check_branch
        %791 = sbr.rel (%p789) target = $region68
      $region67: #{_lambda_.3} parent=5 // pred_region
        %s792 = ssub.s32 %s22, 2
        // Predicated region
        $region69: #{_lambda_.3} parent=67 // pred_check
          %p793 = pneg %p250
        $region70: #{_lambda_.3} parent=67 // pred_check_branch
          %795 = sbr.rel (%p793) target = $region72
        $region71: #{_lambda_.3} parent=67 // pred_region
          %s796 = sand.u32 %s235, 1
          %s797 = scalar_lea.sflag [#allocation4], %s796
          %s798 = sand.u32 %s235, 1
          %s799 = smul.addr %s798, 16
          %s800 = scalar_lea.vmem [#allocation3], %s799
          %801 = dma.done %s797, 256
        $region72: #{_lambda_.3} parent=67 // pred_fallthru
          _
        // Predicated region
        $region73: #{_lambda_.3} parent=67 // pred_check
          %p802 = pneg %p276
        $region74: #{_lambda_.3} parent=67 // pred_check_branch
          %804 = sbr.rel (%p802) target = $region76
        $region75: #{_lambda_.3} parent=67 // pred_region
          %s805 = smul.u32 2, %s28
          %p806 = scmp.lt.s32.totalorder %s805, 3
          %s807 = scalar_select %p806, %s805, 3
          %s808 = smul.addr %s807, 8
          %s809 = scalar_lea.vmem %s10, %s808
        $region76: #{_lambda_.3} parent=67 // pred_fallthru
          _
      $region68: #{_lambda_.3} parent=5 // pred_fallthru
        _
    $region6: #{_lambda_.3} parent=1 // loop_footer
      %s26 = sadd.s32 1, %s22
    $region7: #{_lambda_.3} parent=1 // loop_footer_branch
      %21 = sbr.rel target = $region3
    $region8: #{_lambda_.3} parent=1 // loop_exit
      _
    %810 = vsyncpa [#allocation4], 1
    %s811 = scalar_lea.sflag [#allocation4], 1
    %812 = vsyncpa %s811, 1

// kernel: _lambda_.2
$region0: #{_lambda_.2}
  #allocation0 [shape = 'u32[]', space=smem, size = 0x4, offset = 0x4, fixed_abs, tag = 'smem constant byte address 0x4 - core index']
  #allocation1 [shape = 'u32[144,128]{1,0:T(1,128)}', space=vmem, size = 0x12000, scoped, tag = 'internal scratch']
  #allocation2 [shape = 'f32[2,128]{1,0:T(2,128)}', space=vmem, size = 0x400, scoped, tag = 'scratch operand']
  %s0 = inlined_call_operand.vmem [shape: f32[4,8,384], index: 0, kind: input, shape index: {}]
  %s1 = inlined_call_operand.vmem [shape: f32[4,1,128], index: 1, kind: input, shape index: {}]
  %s2 = inlined_call_operand.hbm [shape: f32[128,384], index: 2, kind: input, shape index: {}]
  %s3 = inlined_call_operand.vmem [shape: f32[1,384], index: 3, kind: input, shape index: {}]
  %s4 = inlined_call_operand.vmem [shape: f32[4,8,128], index: 4, kind: output, shape index: {0}]
  %s5 = inlined_call_operand.hbm [shape: f32[4,1,128], index: 5, kind: output, shape index: {1}]
  %6 = xla_tuple %s4, %s5
  %s7 = sld [smem:[#allocation0]]
  $region69: #{_lambda_.2} parent=0
    _
  %s9 = ssub.s32 1, %s7
  %s10 = scalar_select 0, %s9, %s7
  $region1: #{_lambda_.2} parent=0
    #allocation3 [shape = 'u8[196608]{0}', space=vmem, size = 0x30000, scoped, tag = 'input window, operand 2, single buffered']
    #allocation4 [shape = 's32[2]{0}', space=sflag, size = 0x8, scoped, tag = 'scoped memory for _lambda_.2']
    #allocation5 [shape = 's32[2]{0}', space=sflag, size = 0x8, scoped, tag = 'scoped memory for _lambda_.2']
    #allocation6 [shape = 'u8[2048]{0}', space=vmem, size = 0x800, scoped, tag = 'output window, operand 1']
    %11 = vsyncpa [#allocation4], 0
    %12 = vsyncpa [#allocation5], 0
    %s13 = scalar_lea.sflag [#allocation5], 1
    %14 = vsyncpa %s13, 0
    loop: start=0, step=1, limit=4
    $region2: #{_lambda_.2} parent=1 // loop_pre_header
      _
    $region3: #{_lambda_.2} parent=1 // loop_header
      %s16 = sphi 0, %s20
      %p17 = scmp.ge.s32.totalorder %s16, 4
      %s23 = sphi 0, %s35
      %s24 = sphi 0, %s31
      %s25 = sphi 0, %s23
      %s26 = sphi 0, %s24
      %s27 = sphi 0, %s25
      %s28 = sphi 0, %s26
      %s40 = sphi 0, %s42
      %s43 = sphi 0, %s40
      %s44 = sphi 0, %s43
      %s60 = sphi 0, %s44
      %s66 = sphi 0, %s68
      %s69 = sphi 0, %s66
      %s70 = sphi 0, %s69
      %s86 = sphi 0, %s70
      %s90 = sphi 0, %s90
      %s92 = sphi 0, %s90
      %s93 = sphi 0, %s92
      %s107 = sphi 0, %s93
      %s111 = sphi 0, %s111
      %s113 = sphi 0, %s111
      %s114 = sphi 0, %s113
      %s128 = sphi 0, %s114
      %s136 = sphi 0, %s138
      %s139 = sphi 0, %s136
      %s140 = sphi 0, %s139
      %s156 = sphi 0, %s140
      %s162 = sphi 0, %s164
      %s165 = sphi 0, %s162
      %s166 = sphi 0, %s165
      %s182 = sphi 0, %s166
    $region4: #{_lambda_.2} parent=1 // loop_header_branch
      %19 = sbr.rel (%p17) target = $region8
    $region5: #{_lambda_.2} parent=1 // loop_body
      %s21 = ssub.s32 %s16, 1
      %s22 = ssub.s32 %s16, 2
      %s29 = sadd.s32 1, %s24
      %p30 = scmp.ge.s32.totalorder %s29, 1
      %s31 = scalar_select %p30, 0, %s29
      %s32 = sadd.s32 1, %s23
      %s33 = scalar_select %p30, %s32, %s23
      %p34 = scmp.ge.s32.totalorder %s33, 2
      %s35 = scalar_select %p34, 0, %s33
      %s36 = ssub.s32 %s23, %s35
      %s37 = ssub.s32 %s24, %s31
      %s38 = sor.u32 %s36, %s37
      %p39 = scmp.eq.s32.totalorder %s38, 0
      %s41 = sadd.s32 %s40, 1
      %s42 = scalar_select %p39, %s40, %s41
      %p45 = pneg %p39
      %p46 = scmp.eq.s32.totalorder %s16, 1
      %p47 = por %p45, %p46
      %p48 = scmp.ne.s32.totalorder %s40, %s43
      %p49 = scmp.eq.s32.totalorder %s16, 0
      %p50 = por %p48, %p49
      %p51 = scmp.ne.s32.totalorder %s40, %s43
      %p52 = scmp.eq.s32.totalorder %s21, 1
      %p53 = por %p51, %p52
      %p54 = scmp.ne.s32.totalorder %s43, %s44
      %p55 = scmp.eq.s32.totalorder %s21, 0
      %p56 = por %p54, %p55
      %p57 = scmp.ne.s32.totalorder %s43, %s44
      %p58 = scmp.eq.s32.totalorder %s22, 1
      %p59 = por %p57, %p58
      %p61 = scmp.ne.s32.totalorder %s44, %s60
      %p62 = scmp.eq.s32.totalorder %s22, 0
      %p63 = por %p61, %p62
      %s64 = ssub.s32 %s23, %s35
      %p65 = scmp.eq.s32.totalorder %s64, 0
      %s67 = sadd.s32 %s66, 1
      %s68 = scalar_select %p65, %s66, %s67
      %p71 = pneg %p65
      %p72 = scmp.eq.s32.totalorder %s16, 1
      %p73 = por %p71, %p72
      %p74 = scmp.ne.s32.totalorder %s66, %s69
      %p75 = scmp.eq.s32.totalorder %s16, 0
      %p76 = por %p74, %p75
      %p77 = scmp.ne.s32.totalorder %s66, %s69
      %p78 = scmp.eq.s32.totalorder %s21, 1
      %p79 = por %p77, %p78
      %p80 = scmp.ne.s32.totalorder %s69, %s70
      %p81 = scmp.eq.s32.totalorder %s21, 0
      %p82 = por %p80, %p81
      %p83 = scmp.ne.s32.totalorder %s69, %s70
      %p84 = scmp.eq.s32.totalorder %s22, 1
      %p85 = por %p83, %p84
      %p87 = scmp.ne.s32.totalorder %s70, %s86
      %p88 = scmp.eq.s32.totalorder %s22, 0
      %p89 = por %p87, %p88
      %s91 = sadd.s32 %s90, 1
      %p94 = scmp.eq.s32.totalorder %s16, 1
      %p95 = scmp.ne.s32.totalorder %s90, %s92
      %p96 = scmp.eq.s32.totalorder %s16, 0
      %p97 = por %p95, %p96
      %p98 = scmp.ne.s32.totalorder %s90, %s92
      %p99 = scmp.eq.s32.totalorder %s21, 1
      %p100 = por %p98, %p99
      %p101 = scmp.ne.s32.totalorder %s92, %s93
      %p102 = scmp.eq.s32.totalorder %s21, 0
      %p103 = por %p101, %p102
      %p104 = scmp.ne.s32.totalorder %s92, %s93
      %p105 = scmp.eq.s32.totalorder %s22, 1
      %p106 = por %p104, %p105
      %p108 = scmp.ne.s32.totalorder %s93, %s107
      %p109 = scmp.eq.s32.totalorder %s22, 0
      %p110 = por %p108, %p109
      %s112 = sadd.s32 %s111, 1
      %p115 = scmp.eq.s32.totalorder %s16, 1
      %p116 = scmp.ne.s32.totalorder %s111, %s113
      %p117 = scmp.eq.s32.totalorder %s16, 0
      %p118 = por %p116, %p117
      %p119 = scmp.ne.s32.totalorder %s111, %s113
      %p120 = scmp.eq.s32.totalorder %s21, 1
      %p121 = por %p119, %p120
      %p122 = scmp.ne.s32.totalorder %s113, %s114
      %p123 = scmp.eq.s32.totalorder %s21, 0
      %p124 = por %p122, %p123
      %p125 = scmp.ne.s32.totalorder %s113, %s114
      %p126 = scmp.eq.s32.totalorder %s22, 1
      %p127 = por %p125, %p126
      %p129 = scmp.ne.s32.totalorder %s114, %s128
      %p130 = scmp.eq.s32.totalorder %s22, 0
      %p131 = por %p129, %p130
      %s132 = ssub.s32 %s23, %s35
      %s133 = ssub.s32 %s24, %s31
      %s134 = sor.u32 %s132, %s133
      %p135 = scmp.eq.s32.totalorder %s134, 0
      %s137 = sadd.s32 %s136, 1
      %s138 = scalar_select %p135, %s136, %s137
      %p141 = pneg %p135
      %p142 = scmp.eq.s32.totalorder %s16, 1
      %p143 = por %p141, %p142
      %p144 = scmp.ne.s32.totalorder %s136, %s139
      %p145 = scmp.eq.s32.totalorder %s16, 0
      %p146 = por %p144, %p145
      %p147 = scmp.ne.s32.totalorder %s136, %s139
      %p148 = scmp.eq.s32.totalorder %s21, 1
      %p149 = por %p147, %p148
      %p150 = scmp.ne.s32.totalorder %s139, %s140
      %p151 = scmp.eq.s32.totalorder %s21, 0
      %p152 = por %p150, %p151
      %p153 = scmp.ne.s32.totalorder %s139, %s140
      %p154 = scmp.eq.s32.totalorder %s22, 1
      %p155 = por %p153, %p154
      %p157 = scmp.ne.s32.totalorder %s140, %s156
      %p158 = scmp.eq.s32.totalorder %s22, 0
      %p159 = por %p157, %p158
      %s160 = ssub.s32 %s23, %s35
      %p161 = scmp.eq.s32.totalorder %s160, 0
      %s163 = sadd.s32 %s162, 1
      %s164 = scalar_select %p161, %s162, %s163
      %p167 = pneg %p161
      %p168 = scmp.eq.s32.totalorder %s16, 1
      %p169 = por %p167, %p168
      %p170 = scmp.ne.s32.totalorder %s162, %s165
      %p171 = scmp.eq.s32.totalorder %s16, 0
      %p172 = por %p170, %p171
      %p173 = scmp.ne.s32.totalorder %s162, %s165
      %p174 = scmp.eq.s32.totalorder %s21, 1
      %p175 = por %p173, %p174
      %p176 = scmp.ne.s32.totalorder %s165, %s166
      %p177 = scmp.eq.s32.totalorder %s21, 0
      %p178 = por %p176, %p177
      %p179 = scmp.ne.s32.totalorder %s165, %s166
      %p180 = scmp.eq.s32.totalorder %s22, 1
      %p181 = por %p179, %p180
      %p183 = scmp.ne.s32.totalorder %s166, %s182
      %p184 = scmp.eq.s32.totalorder %s22, 0
      %p185 = por %p183, %p184
      %p186 = scmp.le.s32.totalorder 1, %s16
      %p187 = scmp.lt.s32.totalorder %s16, 3
      %p188 = pnand %p186, %p187
      %p189 = pneg %p188
      // Predicated region
      $region9: #{_lambda_.2} parent=5 // pred_check
        _
      $region10: #{_lambda_.2} parent=5 // pred_check_branch
        %191 = sbr.rel (%p188) target = $region12
      $region11: #{_lambda_.2} parent=5 // pred_region
        %s192 = ssub.s32 %s16, 1
        // Predicated region
        $region13: #{_lambda_.2} parent=11 // pred_check
          %p193 = pneg %p103
        $region14: #{_lambda_.2} parent=11 // pred_check_branch
          %195 = sbr.rel (%p193) target = $region16
        $region15: #{_lambda_.2} parent=11 // pred_region
          %s197 = ssub.s32 6144, 6144
          %198 = vsyncadd [#allocation4], %s197
          %s199 = sshll.u32 [#allocation3], 4
          %s200 = int_to_ptr.vmem [resolvable:$true] %s199
          %205 = dma.hbm_to_vmem [thread:$0]  %s2, 6144, %s200, [#allocation4], 384, 384, 24
        $region16: #{_lambda_.2} parent=11 // pred_fallthru
          _
        // Predicated region
        $region17: #{_lambda_.2} parent=11 // pred_check
          %p206 = pneg %p124
        $region18: #{_lambda_.2} parent=11 // pred_check_branch
          %208 = sbr.rel (%p206) target = $region20
        $region19: #{_lambda_.2} parent=11 // pred_region
          _
        $region20: #{_lambda_.2} parent=11 // pred_fallthru
          _
      $region12: #{_lambda_.2} parent=5 // pred_fallthru
        _
      %p209 = scmp.lt.s32.totalorder %s16, 2
      // Predicated region
      $region21: #{_lambda_.2} parent=5 // pred_check
        %p210 = pneg %p209
      $region22: #{_lambda_.2} parent=5 // pred_check_branch
        %212 = sbr.rel (%p210) target = $region24
      $region23: #{_lambda_.2} parent=5 // pred_region
        // Predicated region
        $region25: #{_lambda_.2} parent=23 // pred_check
          %p213 = pneg %p50
        $region26: #{_lambda_.2} parent=23 // pred_check_branch
          %215 = sbr.rel (%p213) target = $region28
        $region27: #{_lambda_.2} parent=23 // pred_region
          %s216 = smul.u32 2, %s23
          %p217 = scmp.lt.s32.totalorder %s216, 3
          %s218 = scalar_select %p217, %s216, 3
          %p219 = scmp.lt.s32.totalorder %s24, 0
          %s220 = scalar_select %p219, %s24, 0
          %s221 = smul.addr %s220, 3
          %s222 = smul.addr %s218, 3
          %s223 = sadd.s32 %s221, %s222
          %s224 = smul.addr %s223, 8
          %s225 = scalar_lea.vmem %s0, %s224
          %s226 = smul.u32 2, %s23
        $region28: #{_lambda_.2} parent=23 // pred_fallthru
          _
        // Predicated region
        $region29: #{_lambda_.2} parent=23 // pred_check
          %p227 = pneg %p76
        $region30: #{_lambda_.2} parent=23 // pred_check_branch
          %229 = sbr.rel (%p227) target = $region32
        $region31: #{_lambda_.2} parent=23 // pred_region
          %s230 = smul.u32 2, %s23
          %p231 = scmp.lt.s32.totalorder %s230, 3
          %s232 = scalar_select %p231, %s230, 3
          %s233 = scalar_lea.vmem %s1, %s232
          %s234 = smul.u32 2, %s23
        $region32: #{_lambda_.2} parent=23 // pred_fallthru
          _
      $region24: #{_lambda_.2} parent=5 // pred_fallthru
        _
      %p235 = scmp.le.s32.totalorder 1, %s16
      %p236 = scmp.lt.s32.totalorder %s16, 3
      %p237 = pnand %p235, %p236
      %p238 = pneg %p237
      // Predicated region
      $region33: #{_lambda_.2} parent=5 // pred_check
        _
      $region34: #{_lambda_.2} parent=5 // pred_check_branch
        %240 = sbr.rel (%p237) target = $region36
      $region35: #{_lambda_.2} parent=5 // pred_region
        %s241 = ssub.s32 %s16, 1
        // Predicated region
        $region37: #{_lambda_.2} parent=35 // pred_check
          %p242 = pneg %p103
        $region38: #{_lambda_.2} parent=35 // pred_check_branch
          %244 = sbr.rel (%p242) target = $region40
        $region39: #{_lambda_.2} parent=35 // pred_region
          %245 = dma.done [#allocation4], 6144
        $region40: #{_lambda_.2} parent=35 // pred_fallthru
          _
        %s246 = smul.u32 2, %s25
        %p247 = scmp.lt.s32.totalorder %s246, 3
        %s248 = scalar_select %p247, %s246, 3
        %p249 = scmp.lt.s32.totalorder %s26, 0
        %s250 = scalar_select %p249, %s26, 0
        %s251 = smul.addr %s250, 3
        %s252 = smul.addr %s248, 3
        %s253 = sadd.s32 %s251, %s252
        %s254 = smul.addr %s253, 8
        %s255 = scalar_lea.vmem %s0, %s254
        %p256 = pneg %p56
        %p257 = pneg %p53
        %s258 = smul.u32 2, %s25
        %p259 = scmp.lt.s32.totalorder %s258, 3
        %s260 = scalar_select %p259, %s258, 3
        %s261 = scalar_lea.vmem %s1, %s260
        %p262 = pneg %p82
        %p263 = pneg %p79
        %p264 = pneg %p103
        %p265 = pneg %p100
        %p266 = pneg %p124
        %p267 = pneg %p121
        %p268 = pneg %p152
        %p269 = pneg %p149
        %s270 = smul.u32 2, %s25
        %p271 = scmp.lt.s32.totalorder %s270, 3
        %s272 = scalar_select %p271, %s270, 3
        %p273 = scmp.lt.s32.totalorder %s26, 0
        %s274 = scalar_select %p273, %s26, 0
        %s275 = sadd.s32 %s274, %s272
        %s276 = smul.addr %s275, 8
        %s277 = scalar_lea.vmem %s4, %s276
        %p278 = pneg %p178
        %p279 = pneg %p175
        %s280 = sand.u32 %s165, 1
        %s281 = scalar_lea.sflag [#allocation5], %s280
        %s282 = sand.u32 %s165, 1
        %s283 = smul.addr %s282, 2
        %s284 = scalar_lea.vmem [#allocation6], %s283
        %s285 = smul.u32 2, %s25
        %p286 = scmp.lt.s32.totalorder %s285, 3
        %s287 = scalar_select %p286, %s285, 3
        %p288 = scmp.lt.s32.totalorder %s26, 0
        %s289 = scalar_select %p288, %s26, 0
        %s290 = smul.addr %s289, 3
        %s291 = smul.addr %s287, 3
        %s292 = sadd.s32 %s290, %s291
        %s293 = smul.addr %s292, 8
        %s294 = scalar_lea.vmem %s0, %s293
        %s295 = smul.u32 2, %s25
        %s296 = smul.u32 2, %s25
        %p297 = scmp.lt.s32.totalorder %s296, 3
        %s298 = scalar_select %p297, %s296, 3
        %s299 = scalar_lea.vmem %s1, %s298
        %s300 = smul.u32 2, %s25
        %s301 = smul.u32 2, %s25
        %p302 = scmp.lt.s32.totalorder %s301, 3
        %s303 = scalar_select %p302, %s301, 3
        %p304 = scmp.lt.s32.totalorder %s26, 0
        %s305 = scalar_select %p304, %s26, 0
        %s306 = sadd.s32 %s305, %s303
        %s307 = smul.addr %s306, 8
        %s308 = scalar_lea.vmem %s4, %s307
        %s309 = smul.u32 2, %s25
        %s310 = smul.u32 2, %s25
        %p311 = scmp.eq.s32.totalorder %s26, 0
        // Predicated region
        $region41: #{_lambda_.2} parent=35 // pred_check
          %p312 = pneg %p311
        $region42: #{_lambda_.2} parent=35 // pred_check_branch
          %314 = sbr.rel (%p312) target = $region44
        $region43: #{_lambda_.2} parent=35 // pred_region
          %v315 = vld [vmem:[%s299] sm:$0x1]
          %v316 = vld [vmem:[%s299 + $0x1] sm:$0x1]
          %v319 = vcombine.low %v315, %v316
          %v321 = vunpack.c.l.s4 1966171168
          %v322 = vunpack.c.0.s8 %v321
          %v323 = vlaneseq
          %v324 = vshrl.u32 %v323, 7
          %v325 = vsub.s32 %v322, %v324
          %v326 = vrot.slane %v319, %v325
          %v328 = vunpack.c.l.s4 1966171168
          %v329 = vunpack.c.0.s8 %v328
          %v330 = vlaneseq
          %v331 = vshrl.u32 %v330, 7
          %v332 = vsub.s32 %v329, %v331
          %v333 = vrot.slane %v326, %v332
          %335 = vst [vmem:[#allocation2] sm:$0x3] %v333
        $region44: #{_lambda_.2} parent=35 // pred_fallthru
          _
        %v336 = vld [vmem:[%s3] sm:$0x7]
        %v337 = vld [vmem:[#allocation2] sm:$0x3]
        %v338 = vld [vmem:[%s294] ss:$8 sm:$0x7]
        %s339 = scalar_lea.vmem %s294, 24
        %v340 = vld [vmem:[%s339] ss:$8 sm:$0x7]
        %v341 = vld [vmem:[#allocation3] sm:$0xff]
        %v342 = vld [vmem:[#allocation3 + $0x8] sm:$0xff]
        %v343 = vld [vmem:[#allocation3 + $0x10] sm:$0xff]
        %v344 = vld [vmem:[#allocation3 + $0x18] sm:$0xff]
        %v345 = vld [vmem:[#allocation3 + $0x20] sm:$0xff]
        %v346 = vld [vmem:[#allocation3 + $0x28] sm:$0xff]
        %v347 = vld [vmem:[#allocation3 + $0x30] sm:$0xff]
        %v348 = vld [vmem:[#allocation3 + $0x38] sm:$0xff]
        %v349 = vld [vmem:[#allocation3 + $0x40] sm:$0xff]
        %v350 = vld [vmem:[#allocation3 + $0x48] sm:$0xff]
        %v351 = vld [vmem:[#allocation3 + $0x50] sm:$0xff]
        %v352 = vld [vmem:[#allocation3 + $0x58] sm:$0xff]
        %v353 = vld [vmem:[#allocation3 + $0x60] sm:$0xff]
        %v354 = vld [vmem:[#allocation3 + $0x68] sm:$0xff]
        %v355 = vld [vmem:[#allocation3 + $0x70] sm:$0xff]
        %v356 = vld [vmem:[#allocation3 + $0x78] sm:$0xff]
        %v357 = vld [vmem:[#allocation3 + $0x80] sm:$0xff]
        %v358 = vld [vmem:[#allocation3 + $0x88] sm:$0xff]
        %v359 = vld [vmem:[#allocation3 + $0x90] sm:$0xff]
        %v360 = vld [vmem:[#allocation3 + $0x98] sm:$0xff]
        %v361 = vld [vmem:[#allocation3 + $0xa0] sm:$0xff]
        %v362 = vld [vmem:[#allocation3 + $0xa8] sm:$0xff]
        %v363 = vld [vmem:[#allocation3 + $0xb0] sm:$0xff]
        %v364 = vld [vmem:[#allocation3 + $0xb8] sm:$0xff]
        %v365 = vld [vmem:[#allocation3 + $0xc0] sm:$0xff]
        %v366 = vld [vmem:[#allocation3 + $0xc8] sm:$0xff]
        %v367 = vld [vmem:[#allocation3 + $0xd0] sm:$0xff]
        %v368 = vld [vmem:[#allocation3 + $0xd8] sm:$0xff]
        %v369 = vld [vmem:[#allocation3 + $0xe0] sm:$0xff]
        %v370 = vld [vmem:[#allocation3 + $0xe8] sm:$0xff]
        %v371 = vld [vmem:[#allocation3 + $0xf0] sm:$0xff]
        %v372 = vld [vmem:[#allocation3 + $0xf8] sm:$0xff]
        %v373 = vld [vmem:[#allocation3 + $0x100] sm:$0xff]
        %v374 = vld [vmem:[#allocation3 + $0x108] sm:$0xff]
        %v375 = vld [vmem:[#allocation3 + $0x110] sm:$0xff]
        %v376 = vld [vmem:[#allocation3 + $0x118] sm:$0xff]
        %v377 = vld [vmem:[#allocation3 + $0x120] sm:$0xff]
        %v378 = vld [vmem:[#allocation3 + $0x128] sm:$0xff]
        %v379 = vld [vmem:[#allocation3 + $0x130] sm:$0xff]
        %v380 = vld [vmem:[#allocation3 + $0x138] sm:$0xff]
        %v381 = vld [vmem:[#allocation3 + $0x140] sm:$0xff]
        %v382 = vld [vmem:[#allocation3 + $0x148] sm:$0xff]
        %v383 = vld [vmem:[#allocation3 + $0x150] sm:$0xff]
        %v384 = vld [vmem:[#allocation3 + $0x158] sm:$0xff]
        %v385 = vld [vmem:[#allocation3 + $0x160] sm:$0xff]
        %v386 = vld [vmem:[#allocation3 + $0x168] sm:$0xff]
        %v387 = vld [vmem:[#allocation3 + $0x170] sm:$0xff]
        %v388 = vld [vmem:[#allocation3 + $0x178] sm:$0xff]
        %v390 = vlaneseq
        %v391 = vshrl.u32 %v390, 7
        %v392 = vsub.s32 0, %v391
        %v393 = vrot.slane %v336, %v392
        %v394 = vlaneseq
        %v395 = vshrl.u32 %v394, 7
        %v396 = vsub.s32 1, %v395
        %v397 = vrot.slane %v336, %v396
        %v398 = vlaneseq
        %v399 = vshrl.u32 %v398, 7
        %v400 = vsub.s32 2, %v399
        %v401 = vrot.slane %v336, %v400
        %405 = vmatprep.subr.mxu0 %v342
        %406 = vmatpush1.msra.mxu0 %v341
        %407 = vmatprep.subr.mxu0 %v345
        %408 = vmatpush1.msra.mxu0 %v344
        %409 = vmatprep.subr.mxu0 %v348
        %410 = vmatpush1.msra.mxu0 %v347
        %411 = vmatprep.subr.mxu0 %v351
        %412 = vmatpush1.msra.mxu0 %v350
        %413 = vmatprep.subr.mxu0 %v354
        %414 = vmatpush1.msra.mxu0 %v353
        %415 = vmatprep.subr.mxu0 %v357
        %416 = vmatpush1.msra.mxu0 %v356
        %417 = vmatprep.subr.mxu0 %v360
        %418 = vmatpush1.msra.mxu0 %v359
        %419 = vmatprep.subr.mxu0 %v363
        %420 = vmatpush1.msra.mxu0 %v362
        %421 = vmatprep.subr.mxu0 %v366
        %422 = vmatpush1.msra.mxu0 %v365
        %423 = vmatprep.subr.mxu0 %v369
        %424 = vmatpush1.msra.mxu0 %v368
        %425 = vmatprep.subr.mxu0 %v372
        %426 = vmatpush1.msra.mxu0 %v371
        %427 = vmatprep.subr.mxu0 %v375
        %428 = vmatpush1.msra.mxu0 %v374
        %429 = vmatprep.subr.mxu0 %v378
        %430 = vmatpush1.msra.mxu0 %v377
        %431 = vmatprep.subr.mxu0 %v381
        %432 = vmatpush1.msra.mxu0 %v380
        %433 = vmatprep.subr.mxu0 %v384
        %434 = vmatpush1.msra.mxu0 %v383
        %435 = vmatprep.subr.mxu0 %v387
        %436 = vmatpush1.msra.mxu0 %v386
        %437 = vmatprep.subr.mxu0 0.0
        %438 = vmatpush1.msra.mxu0 0.0
        %439 = vmatprep.subr.mxu0 0.0
        %440 = vmatpush1.msra.mxu0 0.0
        %441 = vmatprep.subr.mxu0 0.0
        %442 = vmatpush1.msra.mxu0 0.0
        %443 = vmatprep.subr.mxu0 0.0
        %444 = vmatpush1.msra.mxu0 0.0
        %445 = vmatprep.subr.mxu0 0.0
        %446 = vmatpush1.msra.mxu0 0.0
        %447 = vmatprep.subr.mxu0 0.0
        %448 = vmatpush1.msra.mxu0 0.0
        %449 = vmatprep.subr.mxu0 0.0
        %450 = vmatpush1.msra.mxu0 0.0
        %451 = vmatprep.subr.mxu0 0.0
        %452 = vmatpush1.msra.mxu0 0.0
        %453 = vmatprep.subr.mxu0 0.0
        %454 = vmatpush1.msra.mxu0 0.0
        %455 = vmatprep.subr.mxu0 0.0
        %456 = vmatpush1.msra.mxu0 0.0
        %457 = vmatprep.subr.mxu0 0.0
        %458 = vmatpush1.msra.mxu0 0.0
        %459 = vmatprep.subr.mxu0 0.0
        %460 = vmatpush1.msra.mxu0 0.0
        %461 = vmatprep.subr.mxu0 0.0
        %462 = vmatpush1.msra.mxu0 0.0
        %463 = vmatprep.subr.mxu0 0.0
        %464 = vmatpush1.msra.mxu0 0.0
        %465 = vmatprep.subr.mxu0 0.0
        %466 = vmatpush1.msra.mxu0 0.0
        %467 = vmatprep.subr.mxu0 0.0
        %468 = vmatpush1.msra.mxu0 0.0
        %469 = vmatprep.mubr.f32.mxu0 0.0
        %470 = vmatmul.mubr.f32.gmra.mrb[0].mxu0 %v337
        %v471 = vpop.f32.mrb[0].mxu0
        %v472 = vadd.f32 %v393, %v471
        %v473 = vpop.f32.mrb[0].mxu0
        %v474 = vadd.f32 %v397, %v473
        %475 = vdwg.mxu0
        %476 = vmatprep.subr.mxu0 0.0
        %477 = vmatpush1.msra.mxu0 %v343
        %478 = vmatprep.subr.mxu0 0.0
        %479 = vmatpush1.msra.mxu0 %v346
        %480 = vmatprep.subr.mxu0 0.0
        %481 = vmatpush1.msra.mxu0 %v349
        %482 = vmatprep.subr.mxu0 0.0
        %483 = vmatpush1.msra.mxu0 %v352
        %484 = vmatprep.subr.mxu0 0.0
        %485 = vmatpush1.msra.mxu0 %v355
        %486 = vmatprep.subr.mxu0 0.0
        %487 = vmatpush1.msra.mxu0 %v358
        %488 = vmatprep.subr.mxu0 0.0
        %489 = vmatpush1.msra.mxu0 %v361
        %490 = vmatprep.subr.mxu0 0.0
        %491 = vmatpush1.msra.mxu0 %v364
        %492 = vmatprep.subr.mxu0 0.0
        %493 = vmatpush1.msra.mxu0 %v367
        %494 = vmatprep.subr.mxu0 0.0
        %495 = vmatpush1.msra.mxu0 %v370
        %496 = vmatprep.subr.mxu0 0.0
        %497 = vmatpush1.msra.mxu0 %v373
        %498 = vmatprep.subr.mxu0 0.0
        %499 = vmatpush1.msra.mxu0 %v376
        %500 = vmatprep.subr.mxu0 0.0
        %501 = vmatpush1.msra.mxu0 %v379
        %502 = vmatprep.subr.mxu0 0.0
        %503 = vmatpush1.msra.mxu0 %v382
        %504 = vmatprep.subr.mxu0 0.0
        %505 = vmatpush1.msra.mxu0 %v385
        %506 = vmatprep.subr.mxu0 0.0
        %507 = vmatpush1.msra.mxu0 %v388
        %508 = vmatprep.subr.mxu0 0.0
        %509 = vmatpush1.msra.mxu0 0.0
        %510 = vmatprep.subr.mxu0 0.0
        %511 = vmatpush1.msra.mxu0 0.0
        %512 = vmatprep.subr.mxu0 0.0
        %513 = vmatpush1.msra.mxu0 0.0
        %514 = vmatprep.subr.mxu0 0.0
        %515 = vmatpush1.msra.mxu0 0.0
        %516 = vmatprep.subr.mxu0 0.0
        %517 = vmatpush1.msra.mxu0 0.0
        %518 = vmatprep.subr.mxu0 0.0
        %519 = vmatpush1.msra.mxu0 0.0
        %520 = vmatprep.subr.mxu0 0.0
        %521 = vmatpush1.msra.mxu0 0.0
        %522 = vmatprep.subr.mxu0 0.0
        %523 = vmatpush1.msra.mxu0 0.0
        %524 = vmatprep.subr.mxu0 0.0
        %525 = vmatpush1.msra.mxu0 0.0
        %526 = vmatprep.subr.mxu0 0.0
        %527 = vmatpush1.msra.mxu0 0.0
        %528 = vmatprep.subr.mxu0 0.0
        %529 = vmatpush1.msra.mxu0 0.0
        %530 = vmatprep.subr.mxu0 0.0
        %531 = vmatpush1.msra.mxu0 0.0
        %532 = vmatprep.subr.mxu0 0.0
        %533 = vmatpush1.msra.mxu0 0.0
        %534 = vmatprep.subr.mxu0 0.0
        %535 = vmatpush1.msra.mxu0 0.0
        %536 = vmatprep.subr.mxu0 0.0
        %537 = vmatpush1.msra.mxu0 0.0
        %538 = vmatprep.subr.mxu0 0.0
        %539 = vmatpush1.msra.mxu0 0.0
        %540 = vmatprep.mubr.f32.mxu0 0.0
        %541 = vmatmul.mubr.f32.gmra.mrb[0].mxu0 %v337
        %v542 = vpop.f32.mrb[0].mxu0
        %v543 = vadd.f32 %v401, %v542
        %v544 = vpop.f32.mrb[0].mxu0
        %545 = vdwg.mxu0
        %v548 = vunpack.c.l.s4 1966171168
        %v549 = vunpack.c.0.s8 %v548
        %v550 = vlaneseq
        %v551 = vshrl.u32 %v550, 7
        %v552 = vsub.s32 %v549, %v551
        %v553 = vrot.slane %v472, %v552
        %v554 = vcombine.high %v553, %v553
        %v556 = vunpack.c.l.s4 1966171168
        %v557 = vunpack.c.0.s8 %v556
        %v558 = vlaneseq
        %v559 = vshrl.u32 %v558, 7
        %v560 = vsub.s32 %v557, %v559
        %v561 = vrot.slane %v553, %v560
        %v563 = vunpack.c.l.s4 1966171168
        %v564 = vunpack.c.0.s8 %v563
        %v565 = vlaneseq
        %v566 = vshrl.u32 %v565, 7
        %v567 = vsub.s32 %v564, %v566
        %v568 = vrot.slane %v554, %v567
        %v571 = vadd.f32 %v338, %v561
        %v572 = vadd.f32 %v340, %v568
        %v573 = vsub.f32 0.0, %v571
        %v574 = vsub.f32 0.0, %v572
        %v575 = vmul.f32 %v573, 1.442695
        %v576 = vpow.pop %v575
        %v577 = vmul.f32 %v574, 1.442695
        %v578 = vpow.pop %v577
        %v579 = vadd.f32 %v576, 1.0
        %v580 = vadd.f32 %v578, 1.0
        %v581 = vrcp.pop %v579
        %v582 = vmul.f32 1.0, %v581
        %v583 = vrcp.pop %v580
        %v584 = vmul.f32 1.0, %v583
        %v587 = vrot.slane %v338, 1
        %v588 = vrot.slane %v340, 1
        %v593 = vunpack.c.l.s4 1966171168
        %v594 = vunpack.c.0.s8 %v593
        %v595 = vlaneseq
        %v596 = vshrl.u32 %v595, 7
        %v597 = vsub.s32 %v594, %v596
        %v598 = vrot.slane %v474, %v597
        %v599 = vcombine.high %v598, %v598
        %v601 = vunpack.c.l.s4 1966171168
        %v602 = vunpack.c.0.s8 %v601
        %v603 = vlaneseq
        %v604 = vshrl.u32 %v603, 7
        %v605 = vsub.s32 %v602, %v604
        %v606 = vrot.slane %v598, %v605
        %v608 = vunpack.c.l.s4 1966171168
        %v609 = vunpack.c.0.s8 %v608
        %v610 = vlaneseq
        %v611 = vshrl.u32 %v610, 7
        %v612 = vsub.s32 %v609, %v611
        %v613 = vrot.slane %v599, %v612
        %v616 = vadd.f32 %v587, %v606
        %v617 = vadd.f32 %v588, %v613
        %v618 = vsub.f32 0.0, %v616
        %v619 = vsub.f32 0.0, %v617
        %v620 = vmul.f32 %v618, 1.442695
        %v621 = vpow.pop %v620
        %v622 = vmul.f32 %v619, 1.442695
        %v623 = vpow.pop %v622
        %v624 = vadd.f32 %v621, 1.0
        %v625 = vadd.f32 %v623, 1.0
        %v626 = vrcp.pop %v624
        %v627 = vmul.f32 1.0, %v626
        %v628 = vrcp.pop %v625
        %v629 = vmul.f32 1.0, %v628
        %v632 = vunpack.c.l.s4 1966171168
        %v633 = vunpack.c.0.s8 %v632
        %v634 = vlaneseq
        %v635 = vshrl.u32 %v634, 7
        %v636 = vsub.s32 %v633, %v635
        %v637 = vrot.slane %v543, %v636
        %v638 = vcombine.high %v637, %v637
        %v640 = vunpack.c.l.s4 1966171168
        %v641 = vunpack.c.0.s8 %v640
        %v642 = vlaneseq
        %v643 = vshrl.u32 %v642, 7
        %v644 = vsub.s32 %v641, %v643
        %v645 = vrot.slane %v637, %v644
        %v647 = vunpack.c.l.s4 1966171168
        %v648 = vunpack.c.0.s8 %v647
        %v649 = vlaneseq
        %v650 = vshrl.u32 %v649, 7
        %v651 = vsub.s32 %v648, %v650
        %v652 = vrot.slane %v638, %v651
        %v655 = vmul.f32 %v582, %v645
        %v656 = vmul.f32 %v584, %v652
        %v657 = vrot.slane %v338, 2
        %v658 = vrot.slane %v340, 2
        %v661 = vadd.f32 %v657, %v655
        %v662 = vadd.f32 %v658, %v656
        %v663 = vtanh.pop %v661
        %v664 = vtanh.pop %v662
        %v665 = vsub.f32 1.0, %v627
        %v666 = vsub.f32 1.0, %v629
        %v667 = vmul.f32 %v665, %v663
        %v668 = vmul.f32 %v666, %v664
        %v671 = vunpack.c.l.s4 1966171168
        %v672 = vunpack.c.0.s8 %v671
        %v673 = vlaneseq
        %v674 = vshrl.u32 %v673, 7
        %v675 = vsub.s32 %v672, %v674
        %v676 = vrot.slane %v337, %v675
        %v677 = vcombine.high %v676, %v676
        %v679 = vunpack.c.l.s4 1966171168
        %v680 = vunpack.c.0.s8 %v679
        %v681 = vlaneseq
        %v682 = vshrl.u32 %v681, 7
        %v683 = vsub.s32 %v680, %v682
        %v684 = vrot.slane %v676, %v683
        %v686 = vunpack.c.l.s4 1966171168
        %v687 = vunpack.c.0.s8 %v686
        %v688 = vlaneseq
        %v689 = vshrl.u32 %v688, 7
        %v690 = vsub.s32 %v687, %v689
        %v691 = vrot.slane %v677, %v690
        %v694 = vmul.f32 %v627, %v684
        %v695 = vmul.f32 %v629, %v691
        %v696 = vadd.f32 %v667, %v694
        %v697 = vadd.f32 %v668, %v695
        %698 = vst [vmem:[%s308] sm:$0x1] %v696
        %699 = vst [vmem:[%s308 + $0x8] sm:$0x1] %v697
        %s700 = scalar_lea.vmem %s294, 1
        %v701 = vld [vmem:[%s700] ss:$8 sm:$0x7]
        %s702 = scalar_lea.vmem %s294, 25
        %v703 = vld [vmem:[%s702] ss:$8 sm:$0x7]
        %v704 = vld [vmem:[#allocation3] sm:$0xff]
        %v705 = vld [vmem:[#allocation3 + $0x8] sm:$0xff]
        %v706 = vld [vmem:[#allocation3 + $0x10] sm:$0xff]
        %v707 = vld [vmem:[#allocation3 + $0x18] sm:$0xff]
        %v708 = vld [vmem:[#allocation3 + $0x20] sm:$0xff]
        %v709 = vld [vmem:[#allocation3 + $0x28] sm:$0xff]
        %v710 = vld [vmem:[#allocation3 + $0x30] sm:$0xff]
        %v711 = vld [vmem:[#allocation3 + $0x38] sm:$0xff]
        %v712 = vld [vmem:[#allocation3 + $0x40] sm:$0xff]
        %v713 = vld [vmem:[#allocation3 + $0x48] sm:$0xff]
        %v714 = vld [vmem:[#allocation3 + $0x50] sm:$0xff]
        %v715 = vld [vmem:[#allocation3 + $0x58] sm:$0xff]
        %v716 = vld [vmem:[#allocation3 + $0x60] sm:$0xff]
        %v717 = vld [vmem:[#allocation3 + $0x68] sm:$0xff]
        %v718 = vld [vmem:[#allocation3 + $0x70] sm:$0xff]
        %v719 = vld [vmem:[#allocation3 + $0x78] sm:$0xff]
        %v720 = vld [vmem:[#allocation3 + $0x80] sm:$0xff]
        %v721 = vld [vmem:[#allocation3 + $0x88] sm:$0xff]
        %v722 = vld [vmem:[#allocation3 + $0x90] sm:$0xff]
        %v723 = vld [vmem:[#allocation3 + $0x98] sm:$0xff]
        %v724 = vld [vmem:[#allocation3 + $0xa0] sm:$0xff]
        %v725 = vld [vmem:[#allocation3 + $0xa8] sm:$0xff]
        %v726 = vld [vmem:[#allocation3 + $0xb0] sm:$0xff]
        %v727 = vld [vmem:[#allocation3 + $0xb8] sm:$0xff]
        %v728 = vld [vmem:[#allocation3 + $0xc0] sm:$0xff]
        %v729 = vld [vmem:[#allocation3 + $0xc8] sm:$0xff]
        %v730 = vld [vmem:[#allocation3 + $0xd0] sm:$0xff]
        %v731 = vld [vmem:[#allocation3 + $0xd8] sm:$0xff]
        %v732 = vld [vmem:[#allocation3 + $0xe0] sm:$0xff]
        %v733 = vld [vmem:[#allocation3 + $0xe8] sm:$0xff]
        %v734 = vld [vmem:[#allocation3 + $0xf0] sm:$0xff]
        %v735 = vld [vmem:[#allocation3 + $0xf8] sm:$0xff]
        %v736 = vld [vmem:[#allocation3 + $0x100] sm:$0xff]
        %v737 = vld [vmem:[#allocation3 + $0x108] sm:$0xff]
        %v738 = vld [vmem:[#allocation3 + $0x110] sm:$0xff]
        %v739 = vld [vmem:[#allocation3 + $0x118] sm:$0xff]
        %v740 = vld [vmem:[#allocation3 + $0x120] sm:$0xff]
        %v741 = vld [vmem:[#allocation3 + $0x128] sm:$0xff]
        %v742 = vld [vmem:[#allocation3 + $0x130] sm:$0xff]
        %v743 = vld [vmem:[#allocation3 + $0x138] sm:$0xff]
        %v744 = vld [vmem:[#allocation3 + $0x140] sm:$0xff]
        %v745 = vld [vmem:[#allocation3 + $0x148] sm:$0xff]
        %v746 = vld [vmem:[#allocation3 + $0x150] sm:$0xff]
        %v747 = vld [vmem:[#allocation3 + $0x158] sm:$0xff]
        %v748 = vld [vmem:[#allocation3 + $0x160] sm:$0xff]
        %v749 = vld [vmem:[#allocation3 + $0x168] sm:$0xff]
        %v750 = vld [vmem:[#allocation3 + $0x170] sm:$0xff]
        %v751 = vld [vmem:[#allocation3 + $0x178] sm:$0xff]
        %v754 = vcombine.low %v696, %v697
        %v756 = vunpack.c.l.s4 1966171168
        %v757 = vunpack.c.0.s8 %v756
        %v758 = vlaneseq
        %v759 = vshrl.u32 %v758, 7
        %v760 = vsub.s32 %v757, %v759
        %v761 = vrot.slane %v754, %v760
        %v763 = vunpack.c.l.s4 1966171168
        %v764 = vunpack.c.0.s8 %v763
        %v765 = vlaneseq
        %v766 = vshrl.u32 %v765, 7
        %v767 = vsub.s32 %v764, %v766
        %v768 = vrot.slane %v761, %v767
        %770 = vmatprep.subr.mxu0 %v705
        %771 = vmatpush1.msra.mxu0 %v704
        %772 = vmatprep.subr.mxu0 %v708
        %773 = vmatpush1.msra.mxu0 %v707
        %774 = vmatprep.subr.mxu0 %v711
        %775 = vmatpush1.msra.mxu0 %v710
        %776 = vmatprep.subr.mxu0 %v714
        %777 = vmatpush1.msra.mxu0 %v713
        %778 = vmatprep.subr.mxu0 %v717
        %779 = vmatpush1.msra.mxu0 %v716
        %780 = vmatprep.subr.mxu0 %v720
        %781 = vmatpush1.msra.mxu0 %v719
        %782 = vmatprep.subr.mxu0 %v723
        %783 = vmatpush1.msra.mxu0 %v722
        %784 = vmatprep.subr.mxu0 %v726
        %785 = vmatpush1.msra.mxu0 %v725
        %786 = vmatprep.subr.mxu0 %v729
        %787 = vmatpush1.msra.mxu0 %v728
        %788 = vmatprep.subr.mxu0 %v732
        %789 = vmatpush1.msra.mxu0 %v731
        %790 = vmatprep.subr.mxu0 %v735
        %791 = vmatpush1.msra.mxu0 %v734
        %792 = vmatprep.subr.mxu0 %v738
        %793 = vmatpush1.msra.mxu0 %v737
        %794 = vmatprep.subr.mxu0 %v741
        %795 = vmatpush1.msra.mxu0 %v740
        %796 = vmatprep.subr.mxu0 %v744
        %797 = vmatpush1.msra.mxu0 %v743
        %798 = vmatprep.subr.mxu0 %v747
        %799 = vmatpush1.msra.mxu0 %v746
        %800 = vmatprep.subr.mxu0 %v750
        %801 = vmatpush1.msra.mxu0 %v749
        %802 = vmatprep.subr.mxu0 0.0
        %803 = vmatpush1.msra.mxu0 0.0
        %804 = vmatprep.subr.mxu0 0.0
        %805 = vmatpush1.msra.mxu0 0.0
        %806 = vmatprep.subr.mxu0 0.0
        %807 = vmatpush1.msra.mxu0 0.0
        %808 = vmatprep.subr.mxu0 0.0
        %809 = vmatpush1.msra.mxu0 0.0
        %810 = vmatprep.subr.mxu0 0.0
        %811 = vmatpush1.msra.mxu0 0.0
        %812 = vmatprep.subr.mxu0 0.0
        %813 = vmatpush1.msra.mxu0 0.0
        %814 = vmatprep.subr.mxu0 0.0
        %815 = vmatpush1.msra.mxu0 0.0
        %816 = vmatprep.subr.mxu0 0.0
        %817 = vmatpush1.msra.mxu0 0.0
        %818 = vmatprep.subr.mxu0 0.0
        %819 = vmatpush1.msra.mxu0 0.0
        %820 = vmatprep.subr.mxu0 0.0
        %821 = vmatpush1.msra.mxu0 0.0
        %822 = vmatprep.subr.mxu0 0.0
        %823 = vmatpush1.msra.mxu0 0.0
        %824 = vmatprep.subr.mxu0 0.0
        %825 = vmatpush1.msra.mxu0 0.0
        %826 = vmatprep.subr.mxu0 0.0
        %827 = vmatpush1.msra.mxu0 0.0
        %828 = vmatprep.subr.mxu0 0.0
        %829 = vmatpush1.msra.mxu0 0.0
        %830 = vmatprep.subr.mxu0 0.0
        %831 = vmatpush1.msra.mxu0 0.0
        %832 = vmatprep.subr.mxu0 0.0
        %833 = vmatpush1.msra.mxu0 0.0
        %834 = vmatprep.mubr.f32.mxu0 0.0
        %835 = vmatmul.mubr.f32.gmra.mrb[0].mxu0 %v768
        %v836 = vpop.f32.mrb[0].mxu0
        %v837 = vadd.f32 %v393, %v836
        %v838 = vpop.f32.mrb[0].mxu0
        %v839 = vadd.f32 %v397, %v838
        %840 = vdwg.mxu0
        %841 = vmatprep.subr.mxu0 0.0
        %842 = vmatpush1.msra.mxu0 %v706
        %843 = vmatprep.subr.mxu0 0.0
        %844 = vmatpush1.msra.mxu0 %v709
        %845 = vmatprep.subr.mxu0 0.0
        %846 = vmatpush1.msra.mxu0 %v712
        %847 = vmatprep.subr.mxu0 0.0
        %848 = vmatpush1.msra.mxu0 %v715
        %849 = vmatprep.subr.mxu0 0.0
        %850 = vmatpush1.msra.mxu0 %v718
        %851 = vmatprep.subr.mxu0 0.0
        %852 = vmatpush1.msra.mxu0 %v721
        %853 = vmatprep.subr.mxu0 0.0
        %854 = vmatpush1.msra.mxu0 %v724
        %855 = vmatprep.subr.mxu0 0.0
        %856 = vmatpush1.msra.mxu0 %v727
        %857 = vmatprep.subr.mxu0 0.0
        %858 = vmatpush1.msra.mxu0 %v730
        %859 = vmatprep.subr.mxu0 0.0
        %860 = vmatpush1.msra.mxu0 %v733
        %861 = vmatprep.subr.mxu0 0.0
        %862 = vmatpush1.msra.mxu0 %v736
        %863 = vmatprep.subr.mxu0 0.0
        %864 = vmatpush1.msra.mxu0 %v739
        %865 = vmatprep.subr.mxu0 0.0
        %866 = vmatpush1.msra.mxu0 %v742
        %867 = vmatprep.subr.mxu0 0.0
        %868 = vmatpush1.msra.mxu0 %v745
        %869 = vmatprep.subr.mxu0 0.0
        %870 = vmatpush1.msra.mxu0 %v748
        %871 = vmatprep.subr.mxu0 0.0
        %872 = vmatpush1.msra.mxu0 %v751
        %873 = vmatprep.subr.mxu0 0.0
        %874 = vmatpush1.msra.mxu0 0.0
        %875 = vmatprep.subr.mxu0 0.0
        %876 = vmatpush1.msra.mxu0 0.0
        %877 = vmatprep.subr.mxu0 0.0
        %878 = vmatpush1.msra.mxu0 0.0
        %879 = vmatprep.subr.mxu0 0.0
        %880 = vmatpush1.msra.mxu0 0.0
        %881 = vmatprep.subr.mxu0 0.0
        %882 = vmatpush1.msra.mxu0 0.0
        %883 = vmatprep.subr.mxu0 0.0
        %884 = vmatpush1.msra.mxu0 0.0
        %885 = vmatprep.subr.mxu0 0.0
        %886 = vmatpush1.msra.mxu0 0.0
        %887 = vmatprep.subr.mxu0 0.0
        %888 = vmatpush1.msra.mxu0 0.0
        %889 = vmatprep.subr.mxu0 0.0
        %890 = vmatpush1.msra.mxu0 0.0
        %891 = vmatprep.subr.mxu0 0.0
        %892 = vmatpush1.msra.mxu0 0.0
        %893 = vmatprep.subr.mxu0 0.0
        %894 = vmatpush1.msra.mxu0 0.0
        %895 = vmatprep.subr.mxu0 0.0
        %896 = vmatpush1.msra.mxu0 0.0
        %897 = vmatprep.subr.mxu0 0.0
        %898 = vmatpush1.msra.mxu0 0.0
        %899 = vmatprep.subr.mxu0 0.0
        %900 = vmatpush1.msra.mxu0 0.0
        %901 = vmatprep.subr.mxu0 0.0
        %902 = vmatpush1.msra.mxu0 0.0
        %903 = vmatprep.subr.mxu0 0.0
        %904 = vmatpush1.msra.mxu0 0.0
        %905 = vmatprep.mubr.f32.mxu0 0.0
        %906 = vmatmul.mubr.f32.gmra.mrb[0].mxu0 %v768
        %v907 = vpop.f32.mrb[0].mxu0
        %v908 = vadd.f32 %v401, %v907
        %v909 = vpop.f32.mrb[0].mxu0
        %910 = vdwg.mxu0
        %v913 = vunpack.c.l.s4 1966171168
        %v914 = vunpack.c.0.s8 %v913
        %v915 = vlaneseq
        %v916 = vshrl.u32 %v915, 7
        %v917 = vsub.s32 %v914, %v916
        %v918 = vrot.slane %v837, %v917
        %v919 = vcombine.high %v918, %v918
        %v921 = vunpack.c.l.s4 1966171168
        %v922 = vunpack.c.0.s8 %v921
        %v923 = vlaneseq
        %v924 = vshrl.u32 %v923, 7
        %v925 = vsub.s32 %v922, %v924
        %v926 = vrot.slane %v918, %v925
        %v928 = vunpack.c.l.s4 1966171168
        %v929 = vunpack.c.0.s8 %v928
        %v930 = vlaneseq
        %v931 = vshrl.u32 %v930, 7
        %v932 = vsub.s32 %v929, %v931
        %v933 = vrot.slane %v919, %v932
        %v936 = vadd.f32 %v701, %v926
        %v937 = vadd.f32 %v703, %v933
        %v938 = vsub.f32 0.0, %v936
        %v939 = vsub.f32 0.0, %v937
        %v940 = vmul.f32 %v938, 1.442695
        %v941 = vpow.pop %v940
        %v942 = vmul.f32 %v939, 1.442695
        %v943 = vpow.pop %v942
        %v944 = vadd.f32 %v941, 1.0
        %v945 = vadd.f32 %v943, 1.0
        %v946 = vrcp.pop %v944
        %v947 = vmul.f32 1.0, %v946
        %v948 = vrcp.pop %v945
        %v949 = vmul.f32 1.0, %v948
        %v952 = vrot.slane %v701, 1
        %v953 = vrot.slane %v703, 1
        %v958 = vunpack.c.l.s4 1966171168
        %v959 = vunpack.c.0.s8 %v958
        %v960 = vlaneseq
        %v961 = vshrl.u32 %v960, 7
        %v962 = vsub.s32 %v959, %v961
        %v963 = vrot.slane %v839, %v962
        %v964 = vcombine.high %v963, %v963
        %v966 = vunpack.c.l.s4 1966171168
        %v967 = vunpack.c.0.s8 %v966
        %v968 = vlaneseq
        %v969 = vshrl.u32 %v968, 7
        %v970 = vsub.s32 %v967, %v969
        %v971 = vrot.slane %v963, %v970
        %v973 = vunpack.c.l.s4 1966171168
        %v974 = vunpack.c.0.s8 %v973
        %v975 = vlaneseq
        %v976 = vshrl.u32 %v975, 7
        %v977 = vsub.s32 %v974, %v976
        %v978 = vrot.slane %v964, %v977
        %v981 = vadd.f32 %v952, %v971
        %v982 = vadd.f32 %v953, %v978
        %v983 = vsub.f32 0.0, %v981
        %v984 = vsub.f32 0.0, %v982
        %v985 = vmul.f32 %v983, 1.442695
        %v986 = vpow.pop %v985
        %v987 = vmul.f32 %v984, 1.442695
        %v988 = vpow.pop %v987
        %v989 = vadd.f32 %v986, 1.0
        %v990 = vadd.f32 %v988, 1.0
        %v991 = vrcp.pop %v989
        %v992 = vmul.f32 1.0, %v991
        %v993 = vrcp.pop %v990
        %v994 = vmul.f32 1.0, %v993
        %v997 = vunpack.c.l.s4 1966171168
        %v998 = vunpack.c.0.s8 %v997
        %v999 = vlaneseq
        %v1000 = vshrl.u32 %v999, 7
        %v1001 = vsub.s32 %v998, %v1000
        %v1002 = vrot.slane %v908, %v1001
        %v1003 = vcombine.high %v1002, %v1002
        %v1005 = vunpack.c.l.s4 1966171168
        %v1006 = vunpack.c.0.s8 %v1005
        %v1007 = vlaneseq
        %v1008 = vshrl.u32 %v1007, 7
        %v1009 = vsub.s32 %v1006, %v1008
        %v1010 = vrot.slane %v1002, %v1009
        %v1012 = vunpack.c.l.s4 1966171168
        %v1013 = vunpack.c.0.s8 %v1012
        %v1014 = vlaneseq
        %v1015 = vshrl.u32 %v1014, 7
        %v1016 = vsub.s32 %v1013, %v1015
        %v1017 = vrot.slane %v1003, %v1016
        %v1020 = vmul.f32 %v947, %v1010
        %v1021 = vmul.f32 %v949, %v1017
        %v1022 = vrot.slane %v701, 2
        %v1023 = vrot.slane %v703, 2
        %v1026 = vadd.f32 %v1022, %v1020
        %v1027 = vadd.f32 %v1023, %v1021
        %v1028 = vtanh.pop %v1026
        %v1029 = vtanh.pop %v1027
        %v1030 = vsub.f32 1.0, %v992
        %v1031 = vsub.f32 1.0, %v994
        %v1032 = vmul.f32 %v1030, %v1028
        %v1033 = vmul.f32 %v1031, %v1029
        %v1034 = vmul.f32 %v992, %v696
        %v1035 = vmul.f32 %v994, %v697
        %v1036 = vadd.f32 %v1032, %v1034
        %v1037 = vadd.f32 %v1033, %v1035
        %1038 = vst [vmem:[%s308 + $0x1] sm:$0x1] %v1036
        %1039 = vst [vmem:[%s308 + $0x9] sm:$0x1] %v1037
        %s1040 = scalar_lea.vmem %s294, 2
        %v1041 = vld [vmem:[%s1040] ss:$8 sm:$0x7]
        %s1042 = scalar_lea.vmem %s294, 26
        %v1043 = vld [vmem:[%s1042] ss:$8 sm:$0x7]
        %v1044 = vld [vmem:[#allocation3] sm:$0xff]
        %v1045 = vld [vmem:[#allocation3 + $0x8] sm:$0xff]
        %v1046 = vld [vmem:[#allocation3 + $0x10] sm:$0xff]
        %v1047 = vld [vmem:[#allocation3 + $0x18] sm:$0xff]
        %v1048 = vld [vmem:[#allocation3 + $0x20] sm:$0xff]
        %v1049 = vld [vmem:[#allocation3 + $0x28] sm:$0xff]
        %v1050 = vld [vmem:[#allocation3 + $0x30] sm:$0xff]
        %v1051 = vld [vmem:[#allocation3 + $0x38] sm:$0xff]
        %v1052 = vld [vmem:[#allocation3 + $0x40] sm:$0xff]
        %v1053 = vld [vmem:[#allocation3 + $0x48] sm:$0xff]
        %v1054 = vld [vmem:[#allocation3 + $0x50] sm:$0xff]
        %v1055 = vld [vmem:[#allocation3 + $0x58] sm:$0xff]
        %v1056 = vld [vmem:[#allocation3 + $0x60] sm:$0xff]
        %v1057 = vld [vmem:[#allocation3 + $0x68] sm:$0xff]
        %v1058 = vld [vmem:[#allocation3 + $0x70] sm:$0xff]
        %v1059 = vld [vmem:[#allocation3 + $0x78] sm:$0xff]
        %v1060 = vld [vmem:[#allocation3 + $0x80] sm:$0xff]
        %v1061 = vld [vmem:[#allocation3 + $0x88] sm:$0xff]
        %v1062 = vld [vmem:[#allocation3 + $0x90] sm:$0xff]
        %v1063 = vld [vmem:[#allocation3 + $0x98] sm:$0xff]
        %v1064 = vld [vmem:[#allocation3 + $0xa0] sm:$0xff]
        %v1065 = vld [vmem:[#allocation3 + $0xa8] sm:$0xff]
        %v1066 = vld [vmem:[#allocation3 + $0xb0] sm:$0xff]
        %v1067 = vld [vmem:[#allocation3 + $0xb8] sm:$0xff]
        %v1068 = vld [vmem:[#allocation3 + $0xc0] sm:$0xff]
        %v1069 = vld [vmem:[#allocation3 + $0xc8] sm:$0xff]
        %v1070 = vld [vmem:[#allocation3 + $0xd0] sm:$0xff]
        %v1071 = vld [vmem:[#allocation3 + $0xd8] sm:$0xff]
        %v1072 = vld [vmem:[#allocation3 + $0xe0] sm:$0xff]
        %v1073 = vld [vmem:[#allocation3 + $0xe8] sm:$0xff]
        %v1074 = vld [vmem:[#allocation3 + $0xf0] sm:$0xff]
        %v1075 = vld [vmem:[#allocation3 + $0xf8] sm:$0xff]
        %v1076 = vld [vmem:[#allocation3 + $0x100] sm:$0xff]
        %v1077 = vld [vmem:[#allocation3 + $0x108] sm:$0xff]
        %v1078 = vld [vmem:[#allocation3 + $0x110] sm:$0xff]
        %v1079 = vld [vmem:[#allocation3 + $0x118] sm:$0xff]
        %v1080 = vld [vmem:[#allocation3 + $0x120] sm:$0xff]
        %v1081 = vld [vmem:[#allocation3 + $0x128] sm:$0xff]
        %v1082 = vld [vmem:[#allocation3 + $0x130] sm:$0xff]
        %v1083 = vld [vmem:[#allocation3 + $0x138] sm:$0xff]
        %v1084 = vld [vmem:[#allocation3 + $0x140] sm:$0xff]
        %v1085 = vld [vmem:[#allocation3 + $0x148] sm:$0xff]
        %v1086 = vld [vmem:[#allocation3 + $0x150] sm:$0xff]
        %v1087 = vld [vmem:[#allocation3 + $0x158] sm:$0xff]
        %v1088 = vld [vmem:[#allocation3 + $0x160] sm:$0xff]
        %v1089 = vld [vmem:[#allocation3 + $0x168] sm:$0xff]
        %v1090 = vld [vmem:[#allocation3 + $0x170] sm:$0xff]
        %v1091 = vld [vmem:[#allocation3 + $0x178] sm:$0xff]
        %v1094 = vcombine.low %v1036, %v1037
        %v1096 = vunpack.c.l.s4 1966171168
        %v1097 = vunpack.c.0.s8 %v1096
        %v1098 = vlaneseq
        %v1099 = vshrl.u32 %v1098, 7
        %v1100 = vsub.s32 %v1097, %v1099
        %v1101 = vrot.slane %v1094, %v1100
        %v1103 = vunpack.c.l.s4 1966171168
        %v1104 = vunpack.c.0.s8 %v1103
        %v1105 = vlaneseq
        %v1106 = vshrl.u32 %v1105, 7
        %v1107 = vsub.s32 %v1104, %v1106
        %v1108 = vrot.slane %v1101, %v1107
        %1110 = vmatprep.subr.mxu0 %v1045
        %1111 = vmatpush1.msra.mxu0 %v1044
        %1112 = vmatprep.subr.mxu0 %v1048
        %1113 = vmatpush1.msra.mxu0 %v1047
        %1114 = vmatprep.subr.mxu0 %v1051
        %1115 = vmatpush1.msra.mxu0 %v1050
        %1116 = vmatprep.subr.mxu0 %v1054
        %1117 = vmatpush1.msra.mxu0 %v1053
        %1118 = vmatprep.subr.mxu0 %v1057
        %1119 = vmatpush1.msra.mxu0 %v1056
        %1120 = vmatprep.subr.mxu0 %v1060
        %1121 = vmatpush1.msra.mxu0 %v1059
        %1122 = vmatprep.subr.mxu0 %v1063
        %1123 = vmatpush1.msra.mxu0 %v1062
        %1124 = vmatprep.subr.mxu0 %v1066
        %1125 = vmatpush1.msra.mxu0 %v1065
        %1126 = vmatprep.subr.mxu0 %v1069
        %1127 = vmatpush1.msra.mxu0 %v1068
        %1128 = vmatprep.subr.mxu0 %v1072
        %1129 = vmatpush1.msra.mxu0 %v1071
        %1130 = vmatprep.subr.mxu0 %v1075
        %1131 = vmatpush1.msra.mxu0 %v1074
        %1132 = vmatprep.subr.mxu0 %v1078
        %1133 = vmatpush1.msra.mxu0 %v1077
        %1134 = vmatprep.subr.mxu0 %v1081
        %1135 = vmatpush1.msra.mxu0 %v1080
        %1136 = vmatprep.subr.mxu0 %v1084
        %1137 = vmatpush1.msra.mxu0 %v1083
        %1138 = vmatprep.subr.mxu0 %v1087
        %1139 = vmatpush1.msra.mxu0 %v1086
        %1140 = vmatprep.subr.mxu0 %v1090
        %1141 = vmatpush1.msra.mxu0 %v1089
        %1142 = vmatprep.subr.mxu0 0.0
        %1143 = vmatpush1.msra.mxu0 0.0
        %1144 = vmatprep.subr.mxu0 0.0
        %1145 = vmatpush1.msra.mxu0 0.0
        %1146 = vmatprep.subr.mxu0 0.0
        %1147 = vmatpush1.msra.mxu0 0.0
        %1148 = vmatprep.subr.mxu0 0.0
        %1149 = vmatpush1.msra.mxu0 0.0
        %1150 = vmatprep.subr.mxu0 0.0
        %1151 = vmatpush1.msra.mxu0 0.0
        %1152 = vmatprep.subr.mxu0 0.0
        %1153 = vmatpush1.msra.mxu0 0.0
        %1154 = vmatprep.subr.mxu0 0.0
        %1155 = vmatpush1.msra.mxu0 0.0
        %1156 = vmatprep.subr.mxu0 0.0
        %1157 = vmatpush1.msra.mxu0 0.0
        %1158 = vmatprep.subr.mxu0 0.0
        %1159 = vmatpush1.msra.mxu0 0.0
        %1160 = vmatprep.subr.mxu0 0.0
        %1161 = vmatpush1.msra.mxu0 0.0
        %1162 = vmatprep.subr.mxu0 0.0
        %1163 = vmatpush1.msra.mxu0 0.0
        %1164 = vmatprep.subr.mxu0 0.0
        %1165 = vmatpush1.msra.mxu0 0.0
        %1166 = vmatprep.subr.mxu0 0.0
        %1167 = vmatpush1.msra.mxu0 0.0
        %1168 = vmatprep.subr.mxu0 0.0
        %1169 = vmatpush1.msra.mxu0 0.0
        %1170 = vmatprep.subr.mxu0 0.0
        %1171 = vmatpush1.msra.mxu0 0.0
        %1172 = vmatprep.subr.mxu0 0.0
        %1173 = vmatpush1.msra.mxu0 0.0
        %1174 = vmatprep.mubr.f32.mxu0 0.0
        %1175 = vmatmul.mubr.f32.gmra.mrb[0].mxu0 %v1108
        %v1176 = vpop.f32.mrb[0].mxu0
        %v1177 = vadd.f32 %v393, %v1176
        %v1178 = vpop.f32.mrb[0].mxu0
        %v1179 = vadd.f32 %v397, %v1178
        %1180 = vdwg.mxu0
        %1181 = vmatprep.subr.mxu0 0.0
        %1182 = vmatpush1.msra.mxu0 %v1046
        %1183 = vmatprep.subr.mxu0 0.0
        %1184 = vmatpush1.msra.mxu0 %v1049
        %1185 = vmatprep.subr.mxu0 0.0
        %1186 = vmatpush1.msra.mxu0 %v1052
        %1187 = vmatprep.subr.mxu0 0.0
        %1188 = vmatpush1.msra.mxu0 %v1055
        %1189 = vmatprep.subr.mxu0 0.0
        %1190 = vmatpush1.msra.mxu0 %v1058
        %1191 = vmatprep.subr.mxu0 0.0
        %1192 = vmatpush1.msra.mxu0 %v1061
        %1193 = vmatprep.subr.mxu0 0.0
        %1194 = vmatpush1.msra.mxu0 %v1064
        %1195 = vmatprep.subr.mxu0 0.0
        %1196 = vmatpush1.msra.mxu0 %v1067
        %1197 = vmatprep.subr.mxu0 0.0
        %1198 = vmatpush1.msra.mxu0 %v1070
        %1199 = vmatprep.subr.mxu0 0.0
        %1200 = vmatpush1.msra.mxu0 %v1073
        %1201 = vmatprep.subr.mxu0 0.0
        %1202 = vmatpush1.msra.mxu0 %v1076
        %1203 = vmatprep.subr.mxu0 0.0
        %1204 = vmatpush1.msra.mxu0 %v1079
        %1205 = vmatprep.subr.mxu0 0.0
        %1206 = vmatpush1.msra.mxu0 %v1082
        %1207 = vmatprep.subr.mxu0 0.0
        %1208 = vmatpush1.msra.mxu0 %v1085
        %1209 = vmatprep.subr.mxu0 0.0
        %1210 = vmatpush1.msra.mxu0 %v1088
        %1211 = vmatprep.subr.mxu0 0.0
        %1212 = vmatpush1.msra.mxu0 %v1091
        %1213 = vmatprep.subr.mxu0 0.0
        %1214 = vmatpush1.msra.mxu0 0.0
        %1215 = vmatprep.subr.mxu0 0.0
        %1216 = vmatpush1.msra.mxu0 0.0
        %1217 = vmatprep.subr.mxu0 0.0
        %1218 = vmatpush1.msra.mxu0 0.0
        %1219 = vmatprep.subr.mxu0 0.0
        %1220 = vmatpush1.msra.mxu0 0.0
        %1221 = vmatprep.subr.mxu0 0.0
        %1222 = vmatpush1.msra.mxu0 0.0
        %1223 = vmatprep.subr.mxu0 0.0
        %1224 = vmatpush1.msra.mxu0 0.0
        %1225 = vmatprep.subr.mxu0 0.0
        %1226 = vmatpush1.msra.mxu0 0.0
        %1227 = vmatprep.subr.mxu0 0.0
        %1228 = vmatpush1.msra.mxu0 0.0
        %1229 = vmatprep.subr.mxu0 0.0
        %1230 = vmatpush1.msra.mxu0 0.0
        %1231 = vmatprep.subr.mxu0 0.0
        %1232 = vmatpush1.msra.mxu0 0.0
        %1233 = vmatprep.subr.mxu0 0.0
        %1234 = vmatpush1.msra.mxu0 0.0
        %1235 = vmatprep.subr.mxu0 0.0
        %1236 = vmatpush1.msra.mxu0 0.0
        %1237 = vmatprep.subr.mxu0 0.0
        %1238 = vmatpush1.msra.mxu0 0.0
        %1239 = vmatprep.subr.mxu0 0.0
        %1240 = vmatpush1.msra.mxu0 0.0
        %1241 = vmatprep.subr.mxu0 0.0
        %1242 = vmatpush1.msra.mxu0 0.0
        %1243 = vmatprep.subr.mxu0 0.0
        %1244 = vmatpush1.msra.mxu0 0.0
        %1245 = vmatprep.mubr.f32.mxu0 0.0
        %1246 = vmatmul.mubr.f32.gmra.mrb[0].mxu0 %v1108
        %v1247 = vpop.f32.mrb[0].mxu0
        %v1248 = vadd.f32 %v401, %v1247
        %v1249 = vpop.f32.mrb[0].mxu0
        %1250 = vdwg.mxu0
        %v1253 = vunpack.c.l.s4 1966171168
        %v1254 = vunpack.c.0.s8 %v1253
        %v1255 = vlaneseq
        %v1256 = vshrl.u32 %v1255, 7
        %v1257 = vsub.s32 %v1254, %v1256
        %v1258 = vrot.slane %v1177, %v1257
        %v1259 = vcombine.high %v1258, %v1258
        %v1261 = vunpack.c.l.s4 1966171168
        %v1262 = vunpack.c.0.s8 %v1261
        %v1263 = vlaneseq
        %v1264 = vshrl.u32 %v1263, 7
        %v1265 = vsub.s32 %v1262, %v1264
        %v1266 = vrot.slane %v1258, %v1265
        %v1268 = vunpack.c.l.s4 1966171168
        %v1269 = vunpack.c.0.s8 %v1268
        %v1270 = vlaneseq
        %v1271 = vshrl.u32 %v1270, 7
        %v1272 = vsub.s32 %v1269, %v1271
        %v1273 = vrot.slane %v1259, %v1272
        %v1276 = vadd.f32 %v1041, %v1266
        %v1277 = vadd.f32 %v1043, %v1273
        %v1278 = vsub.f32 0.0, %v1276
        %v1279 = vsub.f32 0.0, %v1277
        %v1280 = vmul.f32 %v1278, 1.442695
        %v1281 = vpow.pop %v1280
        %v1282 = vmul.f32 %v1279, 1.442695
        %v1283 = vpow.pop %v1282
        %v1284 = vadd.f32 %v1281, 1.0
        %v1285 = vadd.f32 %v1283, 1.0
        %v1286 = vrcp.pop %v1284
        %v1287 = vmul.f32 1.0, %v1286
        %v1288 = vrcp.pop %v1285
        %v1289 = vmul.f32 1.0, %v1288
        %v1292 = vrot.slane %v1041, 1
        %v1293 = vrot.slane %v1043, 1
        %v1298 = vunpack.c.l.s4 1966171168
        %v1299 = vunpack.c.0.s8 %v1298
        %v1300 = vlaneseq
        %v1301 = vshrl.u32 %v1300, 7
        %v1302 = vsub.s32 %v1299, %v1301
        %v1303 = vrot.slane %v1179, %v1302
        %v1304 = vcombine.high %v1303, %v1303
        %v1306 = vunpack.c.l.s4 1966171168
        %v1307 = vunpack.c.0.s8 %v1306
        %v1308 = vlaneseq
        %v1309 = vshrl.u32 %v1308, 7
        %v1310 = vsub.s32 %v1307, %v1309
        %v1311 = vrot.slane %v1303, %v1310
        %v1313 = vunpack.c.l.s4 1966171168
        %v1314 = vunpack.c.0.s8 %v1313
        %v1315 = vlaneseq
        %v1316 = vshrl.u32 %v1315, 7
        %v1317 = vsub.s32 %v1314, %v1316
        %v1318 = vrot.slane %v1304, %v1317
        %v1321 = vadd.f32 %v1292, %v1311
        %v1322 = vadd.f32 %v1293, %v1318
        %v1323 = vsub.f32 0.0, %v1321
        %v1324 = vsub.f32 0.0, %v1322
        %v1325 = vmul.f32 %v1323, 1.442695
        %v1326 = vpow.pop %v1325
        %v1327 = vmul.f32 %v1324, 1.442695
        %v1328 = vpow.pop %v1327
        %v1329 = vadd.f32 %v1326, 1.0
        %v1330 = vadd.f32 %v1328, 1.0
        %v1331 = vrcp.pop %v1329
        %v1332 = vmul.f32 1.0, %v1331
        %v1333 = vrcp.pop %v1330
        %v1334 = vmul.f32 1.0, %v1333
        %v1337 = vunpack.c.l.s4 1966171168
        %v1338 = vunpack.c.0.s8 %v1337
        %v1339 = vlaneseq
        %v1340 = vshrl.u32 %v1339, 7
        %v1341 = vsub.s32 %v1338, %v1340
        %v1342 = vrot.slane %v1248, %v1341
        %v1343 = vcombine.high %v1342, %v1342
        %v1345 = vunpack.c.l.s4 1966171168
        %v1346 = vunpack.c.0.s8 %v1345
        %v1347 = vlaneseq
        %v1348 = vshrl.u32 %v1347, 7
        %v1349 = vsub.s32 %v1346, %v1348
        %v1350 = vrot.slane %v1342, %v1349
        %v1352 = vunpack.c.l.s4 1966171168
        %v1353 = vunpack.c.0.s8 %v1352
        %v1354 = vlaneseq
        %v1355 = vshrl.u32 %v1354, 7
        %v1356 = vsub.s32 %v1353, %v1355
        %v1357 = vrot.slane %v1343, %v1356
        %v1360 = vmul.f32 %v1287, %v1350
        %v1361 = vmul.f32 %v1289, %v1357
        %v1362 = vrot.slane %v1041, 2
        %v1363 = vrot.slane %v1043, 2
        %v1366 = vadd.f32 %v1362, %v1360
        %v1367 = vadd.f32 %v1363, %v1361
        %v1368 = vtanh.pop %v1366
        %v1369 = vtanh.pop %v1367
        %v1370 = vsub.f32 1.0, %v1332
        %v1371 = vsub.f32 1.0, %v1334
        %v1372 = vmul.f32 %v1370, %v1368
        %v1373 = vmul.f32 %v1371, %v1369
        %v1374 = vmul.f32 %v1332, %v1036
        %v1375 = vmul.f32 %v1334, %v1037
        %v1376 = vadd.f32 %v1372, %v1374
        %v1377 = vadd.f32 %v1373, %v1375
        %1378 = vst [vmem:[%s308 + $0x2] sm:$0x1] %v1376
        %1379 = vst [vmem:[%s308 + $0xa] sm:$0x1] %v1377
        %s1380 = scalar_lea.vmem %s294, 3
        %v1381 = vld [vmem:[%s1380] ss:$8 sm:$0x7]
        %s1382 = scalar_lea.vmem %s294, 27
        %v1383 = vld [vmem:[%s1382] ss:$8 sm:$0x7]
        %v1384 = vld [vmem:[#allocation3] sm:$0xff]
        %v1385 = vld [vmem:[#allocation3 + $0x8] sm:$0xff]
        %v1386 = vld [vmem:[#allocation3 + $0x10] sm:$0xff]
        %v1387 = vld [vmem:[#allocation3 + $0x18] sm:$0xff]
        %v1388 = vld [vmem:[#allocation3 + $0x20] sm:$0xff]
        %v1389 = vld [vmem:[#allocation3 + $0x28] sm:$0xff]
        %v1390 = vld [vmem:[#allocation3 + $0x30] sm:$0xff]
        %v1391 = vld [vmem:[#allocation3 + $0x38] sm:$0xff]
        %v1392 = vld [vmem:[#allocation3 + $0x40] sm:$0xff]
        %v1393 = vld [vmem:[#allocation3 + $0x48] sm:$0xff]
        %v1394 = vld [vmem:[#allocation3 + $0x50] sm:$0xff]
        %v1395 = vld [vmem:[#allocation3 + $0x58] sm:$0xff]
        %v1396 = vld [vmem:[#allocation3 + $0x60] sm:$0xff]
        %v1397 = vld [vmem:[#allocation3 + $0x68] sm:$0xff]
        %v1398 = vld [vmem:[#allocation3 + $0x70] sm:$0xff]
        %v1399 = vld [vmem:[#allocation3 + $0x78] sm:$0xff]
        %v1400 = vld [vmem:[#allocation3 + $0x80] sm:$0xff]
        %v1401 = vld [vmem:[#allocation3 + $0x88] sm:$0xff]
        %v1402 = vld [vmem:[#allocation3 + $0x90] sm:$0xff]
        %v1403 = vld [vmem:[#allocation3 + $0x98] sm:$0xff]
        %v1404 = vld [vmem:[#allocation3 + $0xa0] sm:$0xff]
        %v1405 = vld [vmem:[#allocation3 + $0xa8] sm:$0xff]
        %v1406 = vld [vmem:[#allocation3 + $0xb0] sm:$0xff]
        %v1407 = vld [vmem:[#allocation3 + $0xb8] sm:$0xff]
        %v1408 = vld [vmem:[#allocation3 + $0xc0] sm:$0xff]
        %v1409 = vld [vmem:[#allocation3 + $0xc8] sm:$0xff]
        %v1410 = vld [vmem:[#allocation3 + $0xd0] sm:$0xff]
        %v1411 = vld [vmem:[#allocation3 + $0xd8] sm:$0xff]
        %v1412 = vld [vmem:[#allocation3 + $0xe0] sm:$0xff]
        %v1413 = vld [vmem:[#allocation3 + $0xe8] sm:$0xff]
        %v1414 = vld [vmem:[#allocation3 + $0xf0] sm:$0xff]
        %v1415 = vld [vmem:[#allocation3 + $0xf8] sm:$0xff]
        %v1416 = vld [vmem:[#allocation3 + $0x100] sm:$0xff]
        %v1417 = vld [vmem:[#allocation3 + $0x108] sm:$0xff]
        %v1418 = vld [vmem:[#allocation3 + $0x110] sm:$0xff]
        %v1419 = vld [vmem:[#allocation3 + $0x118] sm:$0xff]
        %v1420 = vld [vmem:[#allocation3 + $0x120] sm:$0xff]
        %v1421 = vld [vmem:[#allocation3 + $0x128] sm:$0xff]
        %v1422 = vld [vmem:[#allocation3 + $0x130] sm:$0xff]
        %v1423 = vld [vmem:[#allocation3 + $0x138] sm:$0xff]
        %v1424 = vld [vmem:[#allocation3 + $0x140] sm:$0xff]
        %v1425 = vld [vmem:[#allocation3 + $0x148] sm:$0xff]
        %v1426 = vld [vmem:[#allocation3 + $0x150] sm:$0xff]
        %v1427 = vld [vmem:[#allocation3 + $0x158] sm:$0xff]
        %v1428 = vld [vmem:[#allocation3 + $0x160] sm:$0xff]
        %v1429 = vld [vmem:[#allocation3 + $0x168] sm:$0xff]
        %v1430 = vld [vmem:[#allocation3 + $0x170] sm:$0xff]
        %v1431 = vld [vmem:[#allocation3 + $0x178] sm:$0xff]
        %v1434 = vcombine.low %v1376, %v1377
        %v1436 = vunpack.c.l.s4 1966171168
        %v1437 = vunpack.c.0.s8 %v1436
        %v1438 = vlaneseq
        %v1439 = vshrl.u32 %v1438, 7
        %v1440 = vsub.s32 %v1437, %v1439
        %v1441 = vrot.slane %v1434, %v1440
        %v1443 = vunpack.c.l.s4 1966171168
        %v1444 = vunpack.c.0.s8 %v1443
        %v1445 = vlaneseq
        %v1446 = vshrl.u32 %v1445, 7
        %v1447 = vsub.s32 %v1444, %v1446
        %v1448 = vrot.slane %v1441, %v1447
        %1450 = vmatprep.subr.mxu0 %v1385
        %1451 = vmatpush1.msra.mxu0 %v1384
        %1452 = vmatprep.subr.mxu0 %v1388
        %1453 = vmatpush1.msra.mxu0 %v1387
        %1454 = vmatprep.subr.mxu0 %v1391
        %1455 = vmatpush1.msra.mxu0 %v1390
        %1456 = vmatprep.subr.mxu0 %v1394
        %1457 = vmatpush1.msra.mxu0 %v1393
        %1458 = vmatprep.subr.mxu0 %v1397
        %1459 = vmatpush1.msra.mxu0 %v1396
        %1460 = vmatprep.subr.mxu0 %v1400
        %1461 = vmatpush1.msra.mxu0 %v1399
        %1462 = vmatprep.subr.mxu0 %v1403
        %1463 = vmatpush1.msra.mxu0 %v1402
        %1464 = vmatprep.subr.mxu0 %v1406
        %1465 = vmatpush1.msra.mxu0 %v1405
        %1466 = vmatprep.subr.mxu0 %v1409
        %1467 = vmatpush1.msra.mxu0 %v1408
        %1468 = vmatprep.subr.mxu0 %v1412
        %1469 = vmatpush1.msra.mxu0 %v1411
        %1470 = vmatprep.subr.mxu0 %v1415
        %1471 = vmatpush1.msra.mxu0 %v1414
        %1472 = vmatprep.subr.mxu0 %v1418
        %1473 = vmatpush1.msra.mxu0 %v1417
        %1474 = vmatprep.subr.mxu0 %v1421
        %1475 = vmatpush1.msra.mxu0 %v1420
        %1476 = vmatprep.subr.mxu0 %v1424
        %1477 = vmatpush1.msra.mxu0 %v1423
        %1478 = vmatprep.subr.mxu0 %v1427
        %1479 = vmatpush1.msra.mxu0 %v1426
        %1480 = vmatprep.subr.mxu0 %v1430
        %1481 = vmatpush1.msra.mxu0 %v1429
        %1482 = vmatprep.subr.mxu0 0.0
        %1483 = vmatpush1.msra.mxu0 0.0
        %1484 = vmatprep.subr.mxu0 0.0
        %1485 = vmatpush1.msra.mxu0 0.0
        %1486 = vmatprep.subr.mxu0 0.0
        %1487 = vmatpush1.msra.mxu0 0.0
        %1488 = vmatprep.subr.mxu0 0.0
        %1489 = vmatpush1.msra.mxu0 0.0
        %1490 = vmatprep.subr.mxu0 0.0
        %1491 = vmatpush1.msra.mxu0 0.0
        %1492 = vmatprep.subr.mxu0 0.0
        %1493 = vmatpush1.msra.mxu0 0.0
        %1494 = vmatprep.subr.mxu0 0.0
        %1495 = vmatpush1.msra.mxu0 0.0
        %1496 = vmatprep.subr.mxu0 0.0
        %1497 = vmatpush1.msra.mxu0 0.0
        %1498 = vmatprep.subr.mxu0 0.0
        %1499 = vmatpush1.msra.mxu0 0.0
        %1500 = vmatprep.subr.mxu0 0.0
        %1501 = vmatpush1.msra.mxu0 0.0
        %1502 = vmatprep.subr.mxu0 0.0
        %1503 = vmatpush1.msra.mxu0 0.0
        %1504 = vmatprep.subr.mxu0 0.0
        %1505 = vmatpush1.msra.mxu0 0.0
        %1506 = vmatprep.subr.mxu0 0.0
        %1507 = vmatpush1.msra.mxu0 0.0
        %1508 = vmatprep.subr.mxu0 0.0
        %1509 = vmatpush1.msra.mxu0 0.0
        %1510 = vmatprep.subr.mxu0 0.0
        %1511 = vmatpush1.msra.mxu0 0.0
        %1512 = vmatprep.subr.mxu0 0.0
        %1513 = vmatpush1.msra.mxu0 0.0
        %1514 = vmatprep.mubr.f32.mxu0 0.0
        %1515 = vmatmul.mubr.f32.gmra.mrb[0].mxu0 %v1448
        %v1516 = vpop.f32.mrb[0].mxu0
        %v1517 = vadd.f32 %v393, %v1516
        %v1518 = vpop.f32.mrb[0].mxu0
        %v1519 = vadd.f32 %v397, %v1518
        %1520 = vdwg.mxu0
        %1521 = vmatprep.subr.mxu0 0.0
        %1522 = vmatpush1.msra.mxu0 %v1386
        %1523 = vmatprep.subr.mxu0 0.0
        %1524 = vmatpush1.msra.mxu0 %v1389
        %1525 = vmatprep.subr.mxu0 0.0
        %1526 = vmatpush1.msra.mxu0 %v1392
        %1527 = vmatprep.subr.mxu0 0.0
        %1528 = vmatpush1.msra.mxu0 %v1395
        %1529 = vmatprep.subr.mxu0 0.0
        %1530 = vmatpush1.msra.mxu0 %v1398
        %1531 = vmatprep.subr.mxu0 0.0
        %1532 = vmatpush1.msra.mxu0 %v1401
        %1533 = vmatprep.subr.mxu0 0.0
        %1534 = vmatpush1.msra.mxu0 %v1404
        %1535 = vmatprep.subr.mxu0 0.0
        %1536 = vmatpush1.msra.mxu0 %v1407
        %1537 = vmatprep.subr.mxu0 0.0
        %1538 = vmatpush1.msra.mxu0 %v1410
        %1539 = vmatprep.subr.mxu0 0.0
        %1540 = vmatpush1.msra.mxu0 %v1413
        %1541 = vmatprep.subr.mxu0 0.0
        %1542 = vmatpush1.msra.mxu0 %v1416
        %1543 = vmatprep.subr.mxu0 0.0
        %1544 = vmatpush1.msra.mxu0 %v1419
        %1545 = vmatprep.subr.mxu0 0.0
        %1546 = vmatpush1.msra.mxu0 %v1422
        %1547 = vmatprep.subr.mxu0 0.0
        %1548 = vmatpush1.msra.mxu0 %v1425
        %1549 = vmatprep.subr.mxu0 0.0
        %1550 = vmatpush1.msra.mxu0 %v1428
        %1551 = vmatprep.subr.mxu0 0.0
        %1552 = vmatpush1.msra.mxu0 %v1431
        %1553 = vmatprep.subr.mxu0 0.0
        %1554 = vmatpush1.msra.mxu0 0.0
        %1555 = vmatprep.subr.mxu0 0.0
        %1556 = vmatpush1.msra.mxu0 0.0
        %1557 = vmatprep.subr.mxu0 0.0
        %1558 = vmatpush1.msra.mxu0 0.0
        %1559 = vmatprep.subr.mxu0 0.0
        %1560 = vmatpush1.msra.mxu0 0.0
        %1561 = vmatprep.subr.mxu0 0.0
        %1562 = vmatpush1.msra.mxu0 0.0
        %1563 = vmatprep.subr.mxu0 0.0
        %1564 = vmatpush1.msra.mxu0 0.0
        %1565 = vmatprep.subr.mxu0 0.0
        %1566 = vmatpush1.msra.mxu0 0.0
        %1567 = vmatprep.subr.mxu0 0.0
        %1568 = vmatpush1.msra.mxu0 0.0
        %1569 = vmatprep.subr.mxu0 0.0
        %1570 = vmatpush1.msra.mxu0 0.0
        %1571 = vmatprep.subr.mxu0 0.0
        %1572 = vmatpush1.msra.mxu0 0.0
        %1573 = vmatprep.subr.mxu0 0.0
        %1574 = vmatpush1.msra.mxu0 0.0
        %1575 = vmatprep.subr.mxu0 0.0
        %1576 = vmatpush1.msra.mxu0 0.0
        %1577 = vmatprep.subr.mxu0 0.0
        %1578 = vmatpush1.msra.mxu0 0.0
        %1579 = vmatprep.subr.mxu0 0.0
        %1580 = vmatpush1.msra.mxu0 0.0
        %1581 = vmatprep.subr.mxu0 0.0
        %1582 = vmatpush1.msra.mxu0 0.0
        %1583 = vmatprep.subr.mxu0 0.0
        %1584 = vmatpush1.msra.mxu0 0.0
        %1585 = vmatprep.mubr.f32.mxu0 0.0
        %1586 = vmatmul.mubr.f32.gmra.mrb[0].mxu0 %v1448
        %v1587 = vpop.f32.mrb[0].mxu0
        %v1588 = vadd.f32 %v401, %v1587
        %v1589 = vpop.f32.mrb[0].mxu0
        %1590 = vdwg.mxu0
        %v1593 = vunpack.c.l.s4 1966171168
        %v1594 = vunpack.c.0.s8 %v1593
        %v1595 = vlaneseq
        %v1596 = vshrl.u32 %v1595, 7
        %v1597 = vsub.s32 %v1594, %v1596
        %v1598 = vrot.slane %v1517, %v1597
        %v1599 = vcombine.high %v1598, %v1598
        %v1601 = vunpack.c.l.s4 1966171168
        %v1602 = vunpack.c.0.s8 %v1601
        %v1603 = vlaneseq
        %v1604 = vshrl.u32 %v1603, 7
        %v1605 = vsub.s32 %v1602, %v1604
        %v1606 = vrot.slane %v1598, %v1605
        %v1608 = vunpack.c.l.s4 1966171168
        %v1609 = vunpack.c.0.s8 %v1608
        %v1610 = vlaneseq
        %v1611 = vshrl.u32 %v1610, 7
        %v1612 = vsub.s32 %v1609, %v1611
        %v1613 = vrot.slane %v1599, %v1612
        %v1616 = vadd.f32 %v1381, %v1606
        %v1617 = vadd.f32 %v1383, %v1613
        %v1618 = vsub.f32 0.0, %v1616
        %v1619 = vsub.f32 0.0, %v1617
        %v1620 = vmul.f32 %v1618, 1.442695
        %v1621 = vpow.pop %v1620
        %v1622 = vmul.f32 %v1619, 1.442695
        %v1623 = vpow.pop %v1622
        %v1624 = vadd.f32 %v1621, 1.0
        %v1625 = vadd.f32 %v1623, 1.0
        %v1626 = vrcp.pop %v1624
        %v1627 = vmul.f32 1.0, %v1626
        %v1628 = vrcp.pop %v1625
        %v1629 = vmul.f32 1.0, %v1628
        %v1632 = vrot.slane %v1381, 1
        %v1633 = vrot.slane %v1383, 1
        %v1638 = vunpack.c.l.s4 1966171168
        %v1639 = vunpack.c.0.s8 %v1638
        %v1640 = vlaneseq
        %v1641 = vshrl.u32 %v1640, 7
        %v1642 = vsub.s32 %v1639, %v1641
        %v1643 = vrot.slane %v1519, %v1642
        %v1644 = vcombine.high %v1643, %v1643
        %v1646 = vunpack.c.l.s4 1966171168
        %v1647 = vunpack.c.0.s8 %v1646
        %v1648 = vlaneseq
        %v1649 = vshrl.u32 %v1648, 7
        %v1650 = vsub.s32 %v1647, %v1649
        %v1651 = vrot.slane %v1643, %v1650
        %v1653 = vunpack.c.l.s4 1966171168
        %v1654 = vunpack.c.0.s8 %v1653
        %v1655 = vlaneseq
        %v1656 = vshrl.u32 %v1655, 7
        %v1657 = vsub.s32 %v1654, %v1656
        %v1658 = vrot.slane %v1644, %v1657
        %v1661 = vadd.f32 %v1632, %v1651
        %v1662 = vadd.f32 %v1633, %v1658
        %v1663 = vsub.f32 0.0, %v1661
        %v1664 = vsub.f32 0.0, %v1662
        %v1665 = vmul.f32 %v1663, 1.442695
        %v1666 = vpow.pop %v1665
        %v1667 = vmul.f32 %v1664, 1.442695
        %v1668 = vpow.pop %v1667
        %v1669 = vadd.f32 %v1666, 1.0
        %v1670 = vadd.f32 %v1668, 1.0
        %v1671 = vrcp.pop %v1669
        %v1672 = vmul.f32 1.0, %v1671
        %v1673 = vrcp.pop %v1670
        %v1674 = vmul.f32 1.0, %v1673
        %v1677 = vunpack.c.l.s4 1966171168
        %v1678 = vunpack.c.0.s8 %v1677
        %v1679 = vlaneseq
        %v1680 = vshrl.u32 %v1679, 7
        %v1681 = vsub.s32 %v1678, %v1680
        %v1682 = vrot.slane %v1588, %v1681
        %v1683 = vcombine.high %v1682, %v1682
        %v1685 = vunpack.c.l.s4 1966171168
        %v1686 = vunpack.c.0.s8 %v1685
        %v1687 = vlaneseq
        %v1688 = vshrl.u32 %v1687, 7
        %v1689 = vsub.s32 %v1686, %v1688
        %v1690 = vrot.slane %v1682, %v1689
        %v1692 = vunpack.c.l.s4 1966171168
        %v1693 = vunpack.c.0.s8 %v1692
        %v1694 = vlaneseq
        %v1695 = vshrl.u32 %v1694, 7
        %v1696 = vsub.s32 %v1693, %v1695
        %v1697 = vrot.slane %v1683, %v1696
        %v1700 = vmul.f32 %v1627, %v1690
        %v1701 = vmul.f32 %v1629, %v1697
        %v1702 = vrot.slane %v1381, 2
        %v1703 = vrot.slane %v1383, 2
        %v1706 = vadd.f32 %v1702, %v1700
        %v1707 = vadd.f32 %v1703, %v1701
        %v1708 = vtanh.pop %v1706
        %v1709 = vtanh.pop %v1707
        %v1710 = vsub.f32 1.0, %v1672
        %v1711 = vsub.f32 1.0, %v1674
        %v1712 = vmul.f32 %v1710, %v1708
        %v1713 = vmul.f32 %v1711, %v1709
        %v1714 = vmul.f32 %v1672, %v1376
        %v1715 = vmul.f32 %v1674, %v1377
        %v1716 = vadd.f32 %v1712, %v1714
        %v1717 = vadd.f32 %v1713, %v1715
        %1718 = vst [vmem:[%s308 + $0x3] sm:$0x1] %v1716
        %1719 = vst [vmem:[%s308 + $0xb] sm:$0x1] %v1717
        %s1720 = scalar_lea.vmem %s294, 4
        %v1721 = vld [vmem:[%s1720] ss:$8 sm:$0x7]
        %s1722 = scalar_lea.vmem %s294, 28
        %v1723 = vld [vmem:[%s1722] ss:$8 sm:$0x7]
        %v1724 = vld [vmem:[#allocation3] sm:$0xff]
        %v1725 = vld [vmem:[#allocation3 + $0x8] sm:$0xff]
        %v1726 = vld [vmem:[#allocation3 + $0x10] sm:$0xff]
        %v1727 = vld [vmem:[#allocation3 + $0x18] sm:$0xff]
        %v1728 = vld [vmem:[#allocation3 + $0x20] sm:$0xff]
        %v1729 = vld [vmem:[#allocation3 + $0x28] sm:$0xff]
        %v1730 = vld [vmem:[#allocation3 + $0x30] sm:$0xff]
        %v1731 = vld [vmem:[#allocation3 + $0x38] sm:$0xff]
        %v1732 = vld [vmem:[#allocation3 + $0x40] sm:$0xff]
        %v1733 = vld [vmem:[#allocation3 + $0x48] sm:$0xff]
        %v1734 = vld [vmem:[#allocation3 + $0x50] sm:$0xff]
        %v1735 = vld [vmem:[#allocation3 + $0x58] sm:$0xff]
        %v1736 = vld [vmem:[#allocation3 + $0x60] sm:$0xff]
        %v1737 = vld [vmem:[#allocation3 + $0x68] sm:$0xff]
        %v1738 = vld [vmem:[#allocation3 + $0x70] sm:$0xff]
        %v1739 = vld [vmem:[#allocation3 + $0x78] sm:$0xff]
        %v1740 = vld [vmem:[#allocation3 + $0x80] sm:$0xff]
        %v1741 = vld [vmem:[#allocation3 + $0x88] sm:$0xff]
        %v1742 = vld [vmem:[#allocation3 + $0x90] sm:$0xff]
        %v1743 = vld [vmem:[#allocation3 + $0x98] sm:$0xff]
        %v1744 = vld [vmem:[#allocation3 + $0xa0] sm:$0xff]
        %v1745 = vld [vmem:[#allocation3 + $0xa8] sm:$0xff]
        %v1746 = vld [vmem:[#allocation3 + $0xb0] sm:$0xff]
        %v1747 = vld [vmem:[#allocation3 + $0xb8] sm:$0xff]
        %v1748 = vld [vmem:[#allocation3 + $0xc0] sm:$0xff]
        %v1749 = vld [vmem:[#allocation3 + $0xc8] sm:$0xff]
        %v1750 = vld [vmem:[#allocation3 + $0xd0] sm:$0xff]
        %v1751 = vld [vmem:[#allocation3 + $0xd8] sm:$0xff]
        %v1752 = vld [vmem:[#allocation3 + $0xe0] sm:$0xff]
        %v1753 = vld [vmem:[#allocation3 + $0xe8] sm:$0xff]
        %v1754 = vld [vmem:[#allocation3 + $0xf0] sm:$0xff]
        %v1755 = vld [vmem:[#allocation3 + $0xf8] sm:$0xff]
        %v1756 = vld [vmem:[#allocation3 + $0x100] sm:$0xff]
        %v1757 = vld [vmem:[#allocation3 + $0x108] sm:$0xff]
        %v1758 = vld [vmem:[#allocation3 + $0x110] sm:$0xff]
        %v1759 = vld [vmem:[#allocation3 + $0x118] sm:$0xff]
        %v1760 = vld [vmem:[#allocation3 + $0x120] sm:$0xff]
        %v1761 = vld [vmem:[#allocation3 + $0x128] sm:$0xff]
        %v1762 = vld [vmem:[#allocation3 + $0x130] sm:$0xff]
        %v1763 = vld [vmem:[#allocation3 + $0x138] sm:$0xff]
        %v1764 = vld [vmem:[#allocation3 + $0x140] sm:$0xff]
        %v1765 = vld [vmem:[#allocation3 + $0x148] sm:$0xff]
        %v1766 = vld [vmem:[#allocation3 + $0x150] sm:$0xff]
        %v1767 = vld [vmem:[#allocation3 + $0x158] sm:$0xff]
        %v1768 = vld [vmem:[#allocation3 + $0x160] sm:$0xff]
        %v1769 = vld [vmem:[#allocation3 + $0x168] sm:$0xff]
        %v1770 = vld [vmem:[#allocation3 + $0x170] sm:$0xff]
        %v1771 = vld [vmem:[#allocation3 + $0x178] sm:$0xff]
        %v1774 = vcombine.low %v1716, %v1717
        %v1776 = vunpack.c.l.s4 1966171168
        %v1777 = vunpack.c.0.s8 %v1776
        %v1778 = vlaneseq
        %v1779 = vshrl.u32 %v1778, 7
        %v1780 = vsub.s32 %v1777, %v1779
        %v1781 = vrot.slane %v1774, %v1780
        %v1783 = vunpack.c.l.s4 1966171168
        %v1784 = vunpack.c.0.s8 %v1783
        %v1785 = vlaneseq
        %v1786 = vshrl.u32 %v1785, 7
        %v1787 = vsub.s32 %v1784, %v1786
        %v1788 = vrot.slane %v1781, %v1787
        %1790 = vmatprep.subr.mxu0 %v1725
        %1791 = vmatpush1.msra.mxu0 %v1724
        %1792 = vmatprep.subr.mxu0 %v1728
        %1793 = vmatpush1.msra.mxu0 %v1727
        %1794 = vmatprep.subr.mxu0 %v1731
        %1795 = vmatpush1.msra.mxu0 %v1730
        %1796 = vmatprep.subr.mxu0 %v1734
        %1797 = vmatpush1.msra.mxu0 %v1733
        %1798 = vmatprep.subr.mxu0 %v1737
        %1799 = vmatpush1.msra.mxu0 %v1736
        %1800 = vmatprep.subr.mxu0 %v1740
        %1801 = vmatpush1.msra.mxu0 %v1739
        %1802 = vmatprep.subr.mxu0 %v1743
        %1803 = vmatpush1.msra.mxu0 %v1742
        %1804 = vmatprep.subr.mxu0 %v1746
        %1805 = vmatpush1.msra.mxu0 %v1745
        %1806 = vmatprep.subr.mxu0 %v1749
        %1807 = vmatpush1.msra.mxu0 %v1748
        %1808 = vmatprep.subr.mxu0 %v1752
        %1809 = vmatpush1.msra.mxu0 %v1751
        %1810 = vmatprep.subr.mxu0 %v1755
        %1811 = vmatpush1.msra.mxu0 %v1754
        %1812 = vmatprep.subr.mxu0 %v1758
        %1813 = vmatpush1.msra.mxu0 %v1757
        %1814 = vmatprep.subr.mxu0 %v1761
        %1815 = vmatpush1.msra.mxu0 %v1760
        %1816 = vmatprep.subr.mxu0 %v1764
        %1817 = vmatpush1.msra.mxu0 %v1763
        %1818 = vmatprep.subr.mxu0 %v1767
        %1819 = vmatpush1.msra.mxu0 %v1766
        %1820 = vmatprep.subr.mxu0 %v1770
        %1821 = vmatpush1.msra.mxu0 %v1769
        %1822 = vmatprep.subr.mxu0 0.0
        %1823 = vmatpush1.msra.mxu0 0.0
        %1824 = vmatprep.subr.mxu0 0.0
        %1825 = vmatpush1.msra.mxu0 0.0
        %1826 = vmatprep.subr.mxu0 0.0
        %1827 = vmatpush1.msra.mxu0 0.0
        %1828 = vmatprep.subr.mxu0 0.0
        %1829 = vmatpush1.msra.mxu0 0.0
        %1830 = vmatprep.subr.mxu0 0.0
        %1831 = vmatpush1.msra.mxu0 0.0
        %1832 = vmatprep.subr.mxu0 0.0
        %1833 = vmatpush1.msra.mxu0 0.0
        %1834 = vmatprep.subr.mxu0 0.0
        %1835 = vmatpush1.msra.mxu0 0.0
        %1836 = vmatprep.subr.mxu0 0.0
        %1837 = vmatpush1.msra.mxu0 0.0
        %1838 = vmatprep.subr.mxu0 0.0
        %1839 = vmatpush1.msra.mxu0 0.0
        %1840 = vmatprep.subr.mxu0 0.0
        %1841 = vmatpush1.msra.mxu0 0.0
        %1842 = vmatprep.subr.mxu0 0.0
        %1843 = vmatpush1.msra.mxu0 0.0
        %1844 = vmatprep.subr.mxu0 0.0
        %1845 = vmatpush1.msra.mxu0 0.0
        %1846 = vmatprep.subr.mxu0 0.0
        %1847 = vmatpush1.msra.mxu0 0.0
        %1848 = vmatprep.subr.mxu0 0.0
        %1849 = vmatpush1.msra.mxu0 0.0
        %1850 = vmatprep.subr.mxu0 0.0
        %1851 = vmatpush1.msra.mxu0 0.0
        %1852 = vmatprep.subr.mxu0 0.0
        %1853 = vmatpush1.msra.mxu0 0.0
        %1854 = vmatprep.mubr.f32.mxu0 0.0
        %1855 = vmatmul.mubr.f32.gmra.mrb[0].mxu0 %v1788
        %v1856 = vpop.f32.mrb[0].mxu0
        %v1857 = vadd.f32 %v393, %v1856
        %v1858 = vpop.f32.mrb[0].mxu0
        %v1859 = vadd.f32 %v397, %v1858
        %1860 = vdwg.mxu0
        %1861 = vmatprep.subr.mxu0 0.0
        %1862 = vmatpush1.msra.mxu0 %v1726
        %1863 = vmatprep.subr.mxu0 0.0
        %1864 = vmatpush1.msra.mxu0 %v1729
        %1865 = vmatprep.subr.mxu0 0.0
        %1866 = vmatpush1.msra.mxu0 %v1732
        %1867 = vmatprep.subr.mxu0 0.0
        %1868 = vmatpush1.msra.mxu0 %v1735
        %1869 = vmatprep.subr.mxu0 0.0
        %1870 = vmatpush1.msra.mxu0 %v1738
        %1871 = vmatprep.subr.mxu0 0.0
        %1872 = vmatpush1.msra.mxu0 %v1741
        %1873 = vmatprep.subr.mxu0 0.0
        %1874 = vmatpush1.msra.mxu0 %v1744
        %1875 = vmatprep.subr.mxu0 0.0
        %1876 = vmatpush1.msra.mxu0 %v1747
        %1877 = vmatprep.subr.mxu0 0.0
        %1878 = vmatpush1.msra.mxu0 %v1750
        %1879 = vmatprep.subr.mxu0 0.0
        %1880 = vmatpush1.msra.mxu0 %v1753
        %1881 = vmatprep.subr.mxu0 0.0
        %1882 = vmatpush1.msra.mxu0 %v1756
        %1883 = vmatprep.subr.mxu0 0.0
        %1884 = vmatpush1.msra.mxu0 %v1759
        %1885 = vmatprep.subr.mxu0 0.0
        %1886 = vmatpush1.msra.mxu0 %v1762
        %1887 = vmatprep.subr.mxu0 0.0
        %1888 = vmatpush1.msra.mxu0 %v1765
        %1889 = vmatprep.subr.mxu0 0.0
        %1890 = vmatpush1.msra.mxu0 %v1768
        %1891 = vmatprep.subr.mxu0 0.0
        %1892 = vmatpush1.msra.mxu0 %v1771
        %1893 = vmatprep.subr.mxu0 0.0
        %1894 = vmatpush1.msra.mxu0 0.0
        %1895 = vmatprep.subr.mxu0 0.0
        %1896 = vmatpush1.msra.mxu0 0.0
        %1897 = vmatprep.subr.mxu0 0.0
        %1898 = vmatpush1.msra.mxu0 0.0
        %1899 = vmatprep.subr.mxu0 0.0
        %1900 = vmatpush1.msra.mxu0 0.0
        %1901 = vmatprep.subr.mxu0 0.0
        %1902 = vmatpush1.msra.mxu0 0.0
        %1903 = vmatprep.subr.mxu0 0.0
        %1904 = vmatpush1.msra.mxu0 0.0
        %1905 = vmatprep.subr.mxu0 0.0
        %1906 = vmatpush1.msra.mxu0 0.0
        %1907 = vmatprep.subr.mxu0 0.0
        %1908 = vmatpush1.msra.mxu0 0.0
        %1909 = vmatprep.subr.mxu0 0.0
        %1910 = vmatpush1.msra.mxu0 0.0
        %1911 = vmatprep.subr.mxu0 0.0
        %1912 = vmatpush1.msra.mxu0 0.0
        %1913 = vmatprep.subr.mxu0 0.0
        %1914 = vmatpush1.msra.mxu0 0.0
        %1915 = vmatprep.subr.mxu0 0.0
        %1916 = vmatpush1.msra.mxu0 0.0
        %1917 = vmatprep.subr.mxu0 0.0
        %1918 = vmatpush1.msra.mxu0 0.0
        %1919 = vmatprep.subr.mxu0 0.0
        %1920 = vmatpush1.msra.mxu0 0.0
        %1921 = vmatprep.subr.mxu0 0.0
        %1922 = vmatpush1.msra.mxu0 0.0
        %1923 = vmatprep.subr.mxu0 0.0
        %1924 = vmatpush1.msra.mxu0 0.0
        %1925 = vmatprep.mubr.f32.mxu0 0.0
        %1926 = vmatmul.mubr.f32.gmra.mrb[0].mxu0 %v1788
        %v1927 = vpop.f32.mrb[0].mxu0
        %v1928 = vadd.f32 %v401, %v1927
        %v1929 = vpop.f32.mrb[0].mxu0
        %1930 = vdwg.mxu0
        %v1933 = vunpack.c.l.s4 1966171168
        %v1934 = vunpack.c.0.s8 %v1933
        %v1935 = vlaneseq
        %v1936 = vshrl.u32 %v1935, 7
        %v1937 = vsub.s32 %v1934, %v1936
        %v1938 = vrot.slane %v1857, %v1937
        %v1939 = vcombine.high %v1938, %v1938
        %v1941 = vunpack.c.l.s4 1966171168
        %v1942 = vunpack.c.0.s8 %v1941
        %v1943 = vlaneseq
        %v1944 = vshrl.u32 %v1943, 7
        %v1945 = vsub.s32 %v1942, %v1944
        %v1946 = vrot.slane %v1938, %v1945
        %v1948 = vunpack.c.l.s4 1966171168
        %v1949 = vunpack.c.0.s8 %v1948
        %v1950 = vlaneseq
        %v1951 = vshrl.u32 %v1950, 7
        %v1952 = vsub.s32 %v1949, %v1951
        %v1953 = vrot.slane %v1939, %v1952
        %v1956 = vadd.f32 %v1721, %v1946
        %v1957 = vadd.f32 %v1723, %v1953
        %v1958 = vsub.f32 0.0, %v1956
        %v1959 = vsub.f32 0.0, %v1957
        %v1960 = vmul.f32 %v1958, 1.442695
        %v1961 = vpow.pop %v1960
        %v1962 = vmul.f32 %v1959, 1.442695
        %v1963 = vpow.pop %v1962
        %v1964 = vadd.f32 %v1961, 1.0
        %v1965 = vadd.f32 %v1963, 1.0
        %v1966 = vrcp.pop %v1964
        %v1967 = vmul.f32 1.0, %v1966
        %v1968 = vrcp.pop %v1965
        %v1969 = vmul.f32 1.0, %v1968
        %v1972 = vrot.slane %v1721, 1
        %v1973 = vrot.slane %v1723, 1
        %v1978 = vunpack.c.l.s4 1966171168
        %v1979 = vunpack.c.0.s8 %v1978
        %v1980 = vlaneseq
        %v1981 = vshrl.u32 %v1980, 7
        %v1982 = vsub.s32 %v1979, %v1981
        %v1983 = vrot.slane %v1859, %v1982
        %v1984 = vcombine.high %v1983, %v1983
        %v1986 = vunpack.c.l.s4 1966171168
        %v1987 = vunpack.c.0.s8 %v1986
        %v1988 = vlaneseq
        %v1989 = vshrl.u32 %v1988, 7
        %v1990 = vsub.s32 %v1987, %v1989
        %v1991 = vrot.slane %v1983, %v1990
        %v1993 = vunpack.c.l.s4 1966171168
        %v1994 = vunpack.c.0.s8 %v1993
        %v1995 = vlaneseq
        %v1996 = vshrl.u32 %v1995, 7
        %v1997 = vsub.s32 %v1994, %v1996
        %v1998 = vrot.slane %v1984, %v1997
        %v2001 = vadd.f32 %v1972, %v1991
        %v2002 = vadd.f32 %v1973, %v1998
        %v2003 = vsub.f32 0.0, %v2001
        %v2004 = vsub.f32 0.0, %v2002
        %v2005 = vmul.f32 %v2003, 1.442695
        %v2006 = vpow.pop %v2005
        %v2007 = vmul.f32 %v2004, 1.442695
        %v2008 = vpow.pop %v2007
        %v2009 = vadd.f32 %v2006, 1.0
        %v2010 = vadd.f32 %v2008, 1.0
        %v2011 = vrcp.pop %v2009
        %v2012 = vmul.f32 1.0, %v2011
        %v2013 = vrcp.pop %v2010
        %v2014 = vmul.f32 1.0, %v2013
        %v2017 = vunpack.c.l.s4 1966171168
        %v2018 = vunpack.c.0.s8 %v2017
        %v2019 = vlaneseq
        %v2020 = vshrl.u32 %v2019, 7
        %v2021 = vsub.s32 %v2018, %v2020
        %v2022 = vrot.slane %v1928, %v2021
        %v2023 = vcombine.high %v2022, %v2022
        %v2025 = vunpack.c.l.s4 1966171168
        %v2026 = vunpack.c.0.s8 %v2025
        %v2027 = vlaneseq
        %v2028 = vshrl.u32 %v2027, 7
        %v2029 = vsub.s32 %v2026, %v2028
        %v2030 = vrot.slane %v2022, %v2029
        %v2032 = vunpack.c.l.s4 1966171168
        %v2033 = vunpack.c.0.s8 %v2032
        %v2034 = vlaneseq
        %v2035 = vshrl.u32 %v2034, 7
        %v2036 = vsub.s32 %v2033, %v2035
        %v2037 = vrot.slane %v2023, %v2036
        %v2040 = vmul.f32 %v1967, %v2030
        %v2041 = vmul.f32 %v1969, %v2037
        %v2042 = vrot.slane %v1721, 2
        %v2043 = vrot.slane %v1723, 2
        %v2046 = vadd.f32 %v2042, %v2040
        %v2047 = vadd.f32 %v2043, %v2041
        %v2048 = vtanh.pop %v2046
        %v2049 = vtanh.pop %v2047
        %v2050 = vsub.f32 1.0, %v2012
        %v2051 = vsub.f32 1.0, %v2014
        %v2052 = vmul.f32 %v2050, %v2048
        %v2053 = vmul.f32 %v2051, %v2049
        %v2054 = vmul.f32 %v2012, %v1716
        %v2055 = vmul.f32 %v2014, %v1717
        %v2056 = vadd.f32 %v2052, %v2054
        %v2057 = vadd.f32 %v2053, %v2055
        %2058 = vst [vmem:[%s308 + $0x4] sm:$0x1] %v2056
        %2059 = vst [vmem:[%s308 + $0xc] sm:$0x1] %v2057
        %s2060 = scalar_lea.vmem %s294, 5
        %v2061 = vld [vmem:[%s2060] ss:$8 sm:$0x7]
        %s2062 = scalar_lea.vmem %s294, 29
        %v2063 = vld [vmem:[%s2062] ss:$8 sm:$0x7]
        %v2064 = vld [vmem:[#allocation3] sm:$0xff]
        %v2065 = vld [vmem:[#allocation3 + $0x8] sm:$0xff]
        %v2066 = vld [vmem:[#allocation3 + $0x10] sm:$0xff]
        %v2067 = vld [vmem:[#allocation3 + $0x18] sm:$0xff]
        %v2068 = vld [vmem:[#allocation3 + $0x20] sm:$0xff]
        %v2069 = vld [vmem:[#allocation3 + $0x28] sm:$0xff]
        %v2070 = vld [vmem:[#allocation3 + $0x30] sm:$0xff]
        %v2071 = vld [vmem:[#allocation3 + $0x38] sm:$0xff]
        %v2072 = vld [vmem:[#allocation3 + $0x40] sm:$0xff]
        %v2073 = vld [vmem:[#allocation3 + $0x48] sm:$0xff]
        %v2074 = vld [vmem:[#allocation3 + $0x50] sm:$0xff]
        %v2075 = vld [vmem:[#allocation3 + $0x58] sm:$0xff]
        %v2076 = vld [vmem:[#allocation3 + $0x60] sm:$0xff]
        %v2077 = vld [vmem:[#allocation3 + $0x68] sm:$0xff]
        %v2078 = vld [vmem:[#allocation3 + $0x70] sm:$0xff]
        %v2079 = vld [vmem:[#allocation3 + $0x78] sm:$0xff]
        %v2080 = vld [vmem:[#allocation3 + $0x80] sm:$0xff]
        %v2081 = vld [vmem:[#allocation3 + $0x88] sm:$0xff]
        %v2082 = vld [vmem:[#allocation3 + $0x90] sm:$0xff]
        %v2083 = vld [vmem:[#allocation3 + $0x98] sm:$0xff]
        %v2084 = vld [vmem:[#allocation3 + $0xa0] sm:$0xff]
        %v2085 = vld [vmem:[#allocation3 + $0xa8] sm:$0xff]
        %v2086 = vld [vmem:[#allocation3 + $0xb0] sm:$0xff]
        %v2087 = vld [vmem:[#allocation3 + $0xb8] sm:$0xff]
        %v2088 = vld [vmem:[#allocation3 + $0xc0] sm:$0xff]
        %v2089 = vld [vmem:[#allocation3 + $0xc8] sm:$0xff]
        %v2090 = vld [vmem:[#allocation3 + $0xd0] sm:$0xff]
        %v2091 = vld [vmem:[#allocation3 + $0xd8] sm:$0xff]
        %v2092 = vld [vmem:[#allocation3 + $0xe0] sm:$0xff]
        %v2093 = vld [vmem:[#allocation3 + $0xe8] sm:$0xff]
        %v2094 = vld [vmem:[#allocation3 + $0xf0] sm:$0xff]
        %v2095 = vld [vmem:[#allocation3 + $0xf8] sm:$0xff]
        %v2096 = vld [vmem:[#allocation3 + $0x100] sm:$0xff]
        %v2097 = vld [vmem:[#allocation3 + $0x108] sm:$0xff]
        %v2098 = vld [vmem:[#allocation3 + $0x110] sm:$0xff]
        %v2099 = vld [vmem:[#allocation3 + $0x118] sm:$0xff]
        %v2100 = vld [vmem:[#allocation3 + $0x120] sm:$0xff]
        %v2101 = vld [vmem:[#allocation3 + $0x128] sm:$0xff]
        %v2102 = vld [vmem:[#allocation3 + $0x130] sm:$0xff]
        %v2103 = vld [vmem:[#allocation3 + $0x138] sm:$0xff]
        %v2104 = vld [vmem:[#allocation3 + $0x140] sm:$0xff]
        %v2105 = vld [vmem:[#allocation3 + $0x148] sm:$0xff]
        %v2106 = vld [vmem:[#allocation3 + $0x150] sm:$0xff]
        %v2107 = vld [vmem:[#allocation3 + $0x158] sm:$0xff]
        %v2108 = vld [vmem:[#allocation3 + $0x160] sm:$0xff]
        %v2109 = vld [vmem:[#allocation3 + $0x168] sm:$0xff]
        %v2110 = vld [vmem:[#allocation3 + $0x170] sm:$0xff]
        %v2111 = vld [vmem:[#allocation3 + $0x178] sm:$0xff]
        %v2114 = vcombine.low %v2056, %v2057
        %v2116 = vunpack.c.l.s4 1966171168
        %v2117 = vunpack.c.0.s8 %v2116
        %v2118 = vlaneseq
        %v2119 = vshrl.u32 %v2118, 7
        %v2120 = vsub.s32 %v2117, %v2119
        %v2121 = vrot.slane %v2114, %v2120
        %v2123 = vunpack.c.l.s4 1966171168
        %v2124 = vunpack.c.0.s8 %v2123
        %v2125 = vlaneseq
        %v2126 = vshrl.u32 %v2125, 7
        %v2127 = vsub.s32 %v2124, %v2126
        %v2128 = vrot.slane %v2121, %v2127
        %2130 = vmatprep.subr.mxu0 %v2065
        %2131 = vmatpush1.msra.mxu0 %v2064
        %2132 = vmatprep.subr.mxu0 %v2068
        %2133 = vmatpush1.msra.mxu0 %v2067
        %2134 = vmatprep.subr.mxu0 %v2071
        %2135 = vmatpush1.msra.mxu0 %v2070
        %2136 = vmatprep.subr.mxu0 %v2074
        %2137 = vmatpush1.msra.mxu0 %v2073
        %2138 = vmatprep.subr.mxu0 %v2077
        %2139 = vmatpush1.msra.mxu0 %v2076
        %2140 = vmatprep.subr.mxu0 %v2080
        %2141 = vmatpush1.msra.mxu0 %v2079
        %2142 = vmatprep.subr.mxu0 %v2083
        %2143 = vmatpush1.msra.mxu0 %v2082
        %2144 = vmatprep.subr.mxu0 %v2086
        %2145 = vmatpush1.msra.mxu0 %v2085
        %2146 = vmatprep.subr.mxu0 %v2089
        %2147 = vmatpush1.msra.mxu0 %v2088
        %2148 = vmatprep.subr.mxu0 %v2092
        %2149 = vmatpush1.msra.mxu0 %v2091
        %2150 = vmatprep.subr.mxu0 %v2095
        %2151 = vmatpush1.msra.mxu0 %v2094
        %2152 = vmatprep.subr.mxu0 %v2098
        %2153 = vmatpush1.msra.mxu0 %v2097
        %2154 = vmatprep.subr.mxu0 %v2101
        %2155 = vmatpush1.msra.mxu0 %v2100
        %2156 = vmatprep.subr.mxu0 %v2104
        %2157 = vmatpush1.msra.mxu0 %v2103
        %2158 = vmatprep.subr.mxu0 %v2107
        %2159 = vmatpush1.msra.mxu0 %v2106
        %2160 = vmatprep.subr.mxu0 %v2110
        %2161 = vmatpush1.msra.mxu0 %v2109
        %2162 = vmatprep.subr.mxu0 0.0
        %2163 = vmatpush1.msra.mxu0 0.0
        %2164 = vmatprep.subr.mxu0 0.0
        %2165 = vmatpush1.msra.mxu0 0.0
        %2166 = vmatprep.subr.mxu0 0.0
        %2167 = vmatpush1.msra.mxu0 0.0
        %2168 = vmatprep.subr.mxu0 0.0
        %2169 = vmatpush1.msra.mxu0 0.0
        %2170 = vmatprep.subr.mxu0 0.0
        %2171 = vmatpush1.msra.mxu0 0.0
        %2172 = vmatprep.subr.mxu0 0.0
        %2173 = vmatpush1.msra.mxu0 0.0
        %2174 = vmatprep.subr.mxu0 0.0
        %2175 = vmatpush1.msra.mxu0 0.0
        %2176 = vmatprep.subr.mxu0 0.0
        %2177 = vmatpush1.msra.mxu0 0.0
        %2178 = vmatprep.subr.mxu0 0.0
        %2179 = vmatpush1.msra.mxu0 0.0
        %2180 = vmatprep.subr.mxu0 0.0
        %2181 = vmatpush1.msra.mxu0 0.0
        %2182 = vmatprep.subr.mxu0 0.0
        %2183 = vmatpush1.msra.mxu0 0.0
        %2184 = vmatprep.subr.mxu0 0.0
        %2185 = vmatpush1.msra.mxu0 0.0
        %2186 = vmatprep.subr.mxu0 0.0
        %2187 = vmatpush1.msra.mxu0 0.0
        %2188 = vmatprep.subr.mxu0 0.0
        %2189 = vmatpush1.msra.mxu0 0.0
        %2190 = vmatprep.subr.mxu0 0.0
        %2191 = vmatpush1.msra.mxu0 0.0
        %2192 = vmatprep.subr.mxu0 0.0
        %2193 = vmatpush1.msra.mxu0 0.0
        %2194 = vmatprep.mubr.f32.mxu0 0.0
        %2195 = vmatmul.mubr.f32.gmra.mrb[0].mxu0 %v2128
        %v2196 = vpop.f32.mrb[0].mxu0
        %v2197 = vadd.f32 %v393, %v2196
        %v2198 = vpop.f32.mrb[0].mxu0
        %v2199 = vadd.f32 %v397, %v2198
        %2200 = vdwg.mxu0
        %2201 = vmatprep.subr.mxu0 0.0
        %2202 = vmatpush1.msra.mxu0 %v2066
        %2203 = vmatprep.subr.mxu0 0.0
        %2204 = vmatpush1.msra.mxu0 %v2069
        %2205 = vmatprep.subr.mxu0 0.0
        %2206 = vmatpush1.msra.mxu0 %v2072
        %2207 = vmatprep.subr.mxu0 0.0
        %2208 = vmatpush1.msra.mxu0 %v2075
        %2209 = vmatprep.subr.mxu0 0.0
        %2210 = vmatpush1.msra.mxu0 %v2078
        %2211 = vmatprep.subr.mxu0 0.0
        %2212 = vmatpush1.msra.mxu0 %v2081
        %2213 = vmatprep.subr.mxu0 0.0
        %2214 = vmatpush1.msra.mxu0 %v2084
        %2215 = vmatprep.subr.mxu0 0.0
        %2216 = vmatpush1.msra.mxu0 %v2087
        %2217 = vmatprep.subr.mxu0 0.0
        %2218 = vmatpush1.msra.mxu0 %v2090
        %2219 = vmatprep.subr.mxu0 0.0
        %2220 = vmatpush1.msra.mxu0 %v2093
        %2221 = vmatprep.subr.mxu0 0.0
        %2222 = vmatpush1.msra.mxu0 %v2096
        %2223 = vmatprep.subr.mxu0 0.0
        %2224 = vmatpush1.msra.mxu0 %v2099
        %2225 = vmatprep.subr.mxu0 0.0
        %2226 = vmatpush1.msra.mxu0 %v2102
        %2227 = vmatprep.subr.mxu0 0.0
        %2228 = vmatpush1.msra.mxu0 %v2105
        %2229 = vmatprep.subr.mxu0 0.0
        %2230 = vmatpush1.msra.mxu0 %v2108
        %2231 = vmatprep.subr.mxu0 0.0
        %2232 = vmatpush1.msra.mxu0 %v2111
        %2233 = vmatprep.subr.mxu0 0.0
        %2234 = vmatpush1.msra.mxu0 0.0
        %2235 = vmatprep.subr.mxu0 0.0
        %2236 = vmatpush1.msra.mxu0 0.0
        %2237 = vmatprep.subr.mxu0 0.0
        %2238 = vmatpush1.msra.mxu0 0.0
        %2239 = vmatprep.subr.mxu0 0.0
        %2240 = vmatpush1.msra.mxu0 0.0
        %2241 = vmatprep.subr.mxu0 0.0
        %2242 = vmatpush1.msra.mxu0 0.0
        %2243 = vmatprep.subr.mxu0 0.0
        %2244 = vmatpush1.msra.mxu0 0.0
        %2245 = vmatprep.subr.mxu0 0.0
        %2246 = vmatpush1.msra.mxu0 0.0
        %2247 = vmatprep.subr.mxu0 0.0
        %2248 = vmatpush1.msra.mxu0 0.0
        %2249 = vmatprep.subr.mxu0 0.0
        %2250 = vmatpush1.msra.mxu0 0.0
        %2251 = vmatprep.subr.mxu0 0.0
        %2252 = vmatpush1.msra.mxu0 0.0
        %2253 = vmatprep.subr.mxu0 0.0
        %2254 = vmatpush1.msra.mxu0 0.0
        %2255 = vmatprep.subr.mxu0 0.0
        %2256 = vmatpush1.msra.mxu0 0.0
        %2257 = vmatprep.subr.mxu0 0.0
        %2258 = vmatpush1.msra.mxu0 0.0
        %2259 = vmatprep.subr.mxu0 0.0
        %2260 = vmatpush1.msra.mxu0 0.0
        %2261 = vmatprep.subr.mxu0 0.0
        %2262 = vmatpush1.msra.mxu0 0.0
        %2263 = vmatprep.subr.mxu0 0.0
        %2264 = vmatpush1.msra.mxu0 0.0
        %2265 = vmatprep.mubr.f32.mxu0 0.0
        %2266 = vmatmul.mubr.f32.gmra.mrb[0].mxu0 %v2128
        %v2267 = vpop.f32.mrb[0].mxu0
        %v2268 = vadd.f32 %v401, %v2267
        %v2269 = vpop.f32.mrb[0].mxu0
        %2270 = vdwg.mxu0
        %v2273 = vunpack.c.l.s4 1966171168
        %v2274 = vunpack.c.0.s8 %v2273
        %v2275 = vlaneseq
        %v2276 = vshrl.u32 %v2275, 7
        %v2277 = vsub.s32 %v2274, %v2276
        %v2278 = vrot.slane %v2197, %v2277
        %v2279 = vcombine.high %v2278, %v2278
        %v2281 = vunpack.c.l.s4 1966171168
        %v2282 = vunpack.c.0.s8 %v2281
        %v2283 = vlaneseq
        %v2284 = vshrl.u32 %v2283, 7
        %v2285 = vsub.s32 %v2282, %v2284
        %v2286 = vrot.slane %v2278, %v2285
        %v2288 = vunpack.c.l.s4 1966171168
        %v2289 = vunpack.c.0.s8 %v2288
        %v2290 = vlaneseq
        %v2291 = vshrl.u32 %v2290, 7
        %v2292 = vsub.s32 %v2289, %v2291
        %v2293 = vrot.slane %v2279, %v2292
        %v2296 = vadd.f32 %v2061, %v2286
        %v2297 = vadd.f32 %v2063, %v2293
        %v2298 = vsub.f32 0.0, %v2296
        %v2299 = vsub.f32 0.0, %v2297
        %v2300 = vmul.f32 %v2298, 1.442695
        %v2301 = vpow.pop %v2300
        %v2302 = vmul.f32 %v2299, 1.442695
        %v2303 = vpow.pop %v2302
        %v2304 = vadd.f32 %v2301, 1.0
        %v2305 = vadd.f32 %v2303, 1.0
        %v2306 = vrcp.pop %v2304
        %v2307 = vmul.f32 1.0, %v2306
        %v2308 = vrcp.pop %v2305
        %v2309 = vmul.f32 1.0, %v2308
        %v2312 = vrot.slane %v2061, 1
        %v2313 = vrot.slane %v2063, 1
        %v2318 = vunpack.c.l.s4 1966171168
        %v2319 = vunpack.c.0.s8 %v2318
        %v2320 = vlaneseq
        %v2321 = vshrl.u32 %v2320, 7
        %v2322 = vsub.s32 %v2319, %v2321
        %v2323 = vrot.slane %v2199, %v2322
        %v2324 = vcombine.high %v2323, %v2323
        %v2326 = vunpack.c.l.s4 1966171168
        %v2327 = vunpack.c.0.s8 %v2326
        %v2328 = vlaneseq
        %v2329 = vshrl.u32 %v2328, 7
        %v2330 = vsub.s32 %v2327, %v2329
        %v2331 = vrot.slane %v2323, %v2330
        %v2333 = vunpack.c.l.s4 1966171168
        %v2334 = vunpack.c.0.s8 %v2333
        %v2335 = vlaneseq
        %v2336 = vshrl.u32 %v2335, 7
        %v2337 = vsub.s32 %v2334, %v2336
        %v2338 = vrot.slane %v2324, %v2337
        %v2341 = vadd.f32 %v2312, %v2331
        %v2342 = vadd.f32 %v2313, %v2338
        %v2343 = vsub.f32 0.0, %v2341
        %v2344 = vsub.f32 0.0, %v2342
        %v2345 = vmul.f32 %v2343, 1.442695
        %v2346 = vpow.pop %v2345
        %v2347 = vmul.f32 %v2344, 1.442695
        %v2348 = vpow.pop %v2347
        %v2349 = vadd.f32 %v2346, 1.0
        %v2350 = vadd.f32 %v2348, 1.0
        %v2351 = vrcp.pop %v2349
        %v2352 = vmul.f32 1.0, %v2351
        %v2353 = vrcp.pop %v2350
        %v2354 = vmul.f32 1.0, %v2353
        %v2357 = vunpack.c.l.s4 1966171168
        %v2358 = vunpack.c.0.s8 %v2357
        %v2359 = vlaneseq
        %v2360 = vshrl.u32 %v2359, 7
        %v2361 = vsub.s32 %v2358, %v2360
        %v2362 = vrot.slane %v2268, %v2361
        %v2363 = vcombine.high %v2362, %v2362
        %v2365 = vunpack.c.l.s4 1966171168
        %v2366 = vunpack.c.0.s8 %v2365
        %v2367 = vlaneseq
        %v2368 = vshrl.u32 %v2367, 7
        %v2369 = vsub.s32 %v2366, %v2368
        %v2370 = vrot.slane %v2362, %v2369
        %v2372 = vunpack.c.l.s4 1966171168
        %v2373 = vunpack.c.0.s8 %v2372
        %v2374 = vlaneseq
        %v2375 = vshrl.u32 %v2374, 7
        %v2376 = vsub.s32 %v2373, %v2375
        %v2377 = vrot.slane %v2363, %v2376
        %v2380 = vmul.f32 %v2307, %v2370
        %v2381 = vmul.f32 %v2309, %v2377
        %v2382 = vrot.slane %v2061, 2
        %v2383 = vrot.slane %v2063, 2
        %v2386 = vadd.f32 %v2382, %v2380
        %v2387 = vadd.f32 %v2383, %v2381
        %v2388 = vtanh.pop %v2386
        %v2389 = vtanh.pop %v2387
        %v2390 = vsub.f32 1.0, %v2352
        %v2391 = vsub.f32 1.0, %v2354
        %v2392 = vmul.f32 %v2390, %v2388
        %v2393 = vmul.f32 %v2391, %v2389
        %v2394 = vmul.f32 %v2352, %v2056
        %v2395 = vmul.f32 %v2354, %v2057
        %v2396 = vadd.f32 %v2392, %v2394
        %v2397 = vadd.f32 %v2393, %v2395
        %2398 = vst [vmem:[%s308 + $0x5] sm:$0x1] %v2396
        %2399 = vst [vmem:[%s308 + $0xd] sm:$0x1] %v2397
        %s2400 = scalar_lea.vmem %s294, 6
        %v2401 = vld [vmem:[%s2400] ss:$8 sm:$0x7]
        %s2402 = scalar_lea.vmem %s294, 30
        %v2403 = vld [vmem:[%s2402] ss:$8 sm:$0x7]
        %v2404 = vld [vmem:[#allocation3] sm:$0xff]
        %v2405 = vld [vmem:[#allocation3 + $0x8] sm:$0xff]
        %v2406 = vld [vmem:[#allocation3 + $0x10] sm:$0xff]
        %v2407 = vld [vmem:[#allocation3 + $0x18] sm:$0xff]
        %v2408 = vld [vmem:[#allocation3 + $0x20] sm:$0xff]
        %v2409 = vld [vmem:[#allocation3 + $0x28] sm:$0xff]
        %v2410 = vld [vmem:[#allocation3 + $0x30] sm:$0xff]
        %v2411 = vld [vmem:[#allocation3 + $0x38] sm:$0xff]
        %v2412 = vld [vmem:[#allocation3 + $0x40] sm:$0xff]
        %v2413 = vld [vmem:[#allocation3 + $0x48] sm:$0xff]
        %v2414 = vld [vmem:[#allocation3 + $0x50] sm:$0xff]
        %v2415 = vld [vmem:[#allocation3 + $0x58] sm:$0xff]
        %v2416 = vld [vmem:[#allocation3 + $0x60] sm:$0xff]
        %v2417 = vld [vmem:[#allocation3 + $0x68] sm:$0xff]
        %v2418 = vld [vmem:[#allocation3 + $0x70] sm:$0xff]
        %v2419 = vld [vmem:[#allocation3 + $0x78] sm:$0xff]
        %v2420 = vld [vmem:[#allocation3 + $0x80] sm:$0xff]
        %v2421 = vld [vmem:[#allocation3 + $0x88] sm:$0xff]
        %v2422 = vld [vmem:[#allocation3 + $0x90] sm:$0xff]
        %v2423 = vld [vmem:[#allocation3 + $0x98] sm:$0xff]
        %v2424 = vld [vmem:[#allocation3 + $0xa0] sm:$0xff]
        %v2425 = vld [vmem:[#allocation3 + $0xa8] sm:$0xff]
        %v2426 = vld [vmem:[#allocation3 + $0xb0] sm:$0xff]
        %v2427 = vld [vmem:[#allocation3 + $0xb8] sm:$0xff]
        %v2428 = vld [vmem:[#allocation3 + $0xc0] sm:$0xff]
        %v2429 = vld [vmem:[#allocation3 + $0xc8] sm:$0xff]
        %v2430 = vld [vmem:[#allocation3 + $0xd0] sm:$0xff]
        %v2431 = vld [vmem:[#allocation3 + $0xd8] sm:$0xff]
        %v2432 = vld [vmem:[#allocation3 + $0xe0] sm:$0xff]
        %v2433 = vld [vmem:[#allocation3 + $0xe8] sm:$0xff]
        %v2434 = vld [vmem:[#allocation3 + $0xf0] sm:$0xff]
        %v2435 = vld [vmem:[#allocation3 + $0xf8] sm:$0xff]
        %v2436 = vld [vmem:[#allocation3 + $0x100] sm:$0xff]
        %v2437 = vld [vmem:[#allocation3 + $0x108] sm:$0xff]
        %v2438 = vld [vmem:[#allocation3 + $0x110] sm:$0xff]
        %v2439 = vld [vmem:[#allocation3 + $0x118] sm:$0xff]
        %v2440 = vld [vmem:[#allocation3 + $0x120] sm:$0xff]
        %v2441 = vld [vmem:[#allocation3 + $0x128] sm:$0xff]
        %v2442 = vld [vmem:[#allocation3 + $0x130] sm:$0xff]
        %v2443 = vld [vmem:[#allocation3 + $0x138] sm:$0xff]
        %v2444 = vld [vmem:[#allocation3 + $0x140] sm:$0xff]
        %v2445 = vld [vmem:[#allocation3 + $0x148] sm:$0xff]
        %v2446 = vld [vmem:[#allocation3 + $0x150] sm:$0xff]
        %v2447 = vld [vmem:[#allocation3 + $0x158] sm:$0xff]
        %v2448 = vld [vmem:[#allocation3 + $0x160] sm:$0xff]
        %v2449 = vld [vmem:[#allocation3 + $0x168] sm:$0xff]
        %v2450 = vld [vmem:[#allocation3 + $0x170] sm:$0xff]
        %v2451 = vld [vmem:[#allocation3 + $0x178] sm:$0xff]
        %v2454 = vcombine.low %v2396, %v2397
        %v2456 = vunpack.c.l.s4 1966171168
        %v2457 = vunpack.c.0.s8 %v2456
        %v2458 = vlaneseq
        %v2459 = vshrl.u32 %v2458, 7
        %v2460 = vsub.s32 %v2457, %v2459
        %v2461 = vrot.slane %v2454, %v2460
        %v2463 = vunpack.c.l.s4 1966171168
        %v2464 = vunpack.c.0.s8 %v2463
        %v2465 = vlaneseq
        %v2466 = vshrl.u32 %v2465, 7
        %v2467 = vsub.s32 %v2464, %v2466
        %v2468 = vrot.slane %v2461, %v2467
        %2470 = vmatprep.subr.mxu0 %v2405
        %2471 = vmatpush1.msra.mxu0 %v2404
        %2472 = vmatprep.subr.mxu0 %v2408
        %2473 = vmatpush1.msra.mxu0 %v2407
        %2474 = vmatprep.subr.mxu0 %v2411
        %2475 = vmatpush1.msra.mxu0 %v2410
        %2476 = vmatprep.subr.mxu0 %v2414
        %2477 = vmatpush1.msra.mxu0 %v2413
        %2478 = vmatprep.subr.mxu0 %v2417
        %2479 = vmatpush1.msra.mxu0 %v2416
        %2480 = vmatprep.subr.mxu0 %v2420
        %2481 = vmatpush1.msra.mxu0 %v2419
        %2482 = vmatprep.subr.mxu0 %v2423
        %2483 = vmatpush1.msra.mxu0 %v2422
        %2484 = vmatprep.subr.mxu0 %v2426
        %2485 = vmatpush1.msra.mxu0 %v2425
        %2486 = vmatprep.subr.mxu0 %v2429
        %2487 = vmatpush1.msra.mxu0 %v2428
        %2488 = vmatprep.subr.mxu0 %v2432
        %2489 = vmatpush1.msra.mxu0 %v2431
        %2490 = vmatprep.subr.mxu0 %v2435
        %2491 = vmatpush1.msra.mxu0 %v2434
        %2492 = vmatprep.subr.mxu0 %v2438
        %2493 = vmatpush1.msra.mxu0 %v2437
        %2494 = vmatprep.subr.mxu0 %v2441
        %2495 = vmatpush1.msra.mxu0 %v2440
        %2496 = vmatprep.subr.mxu0 %v2444
        %2497 = vmatpush1.msra.mxu0 %v2443
        %2498 = vmatprep.subr.mxu0 %v2447
        %2499 = vmatpush1.msra.mxu0 %v2446
        %2500 = vmatprep.subr.mxu0 %v2450
        %2501 = vmatpush1.msra.mxu0 %v2449
        %2502 = vmatprep.subr.mxu0 0.0
        %2503 = vmatpush1.msra.mxu0 0.0
        %2504 = vmatprep.subr.mxu0 0.0
        %2505 = vmatpush1.msra.mxu0 0.0
        %2506 = vmatprep.subr.mxu0 0.0
        %2507 = vmatpush1.msra.mxu0 0.0
        %2508 = vmatprep.subr.mxu0 0.0
        %2509 = vmatpush1.msra.mxu0 0.0
        %2510 = vmatprep.subr.mxu0 0.0
        %2511 = vmatpush1.msra.mxu0 0.0
        %2512 = vmatprep.subr.mxu0 0.0
        %2513 = vmatpush1.msra.mxu0 0.0
        %2514 = vmatprep.subr.mxu0 0.0
        %2515 = vmatpush1.msra.mxu0 0.0
        %2516 = vmatprep.subr.mxu0 0.0
        %2517 = vmatpush1.msra.mxu0 0.0
        %2518 = vmatprep.subr.mxu0 0.0
        %2519 = vmatpush1.msra.mxu0 0.0
        %2520 = vmatprep.subr.mxu0 0.0
        %2521 = vmatpush1.msra.mxu0 0.0
        %2522 = vmatprep.subr.mxu0 0.0
        %2523 = vmatpush1.msra.mxu0 0.0
        %2524 = vmatprep.subr.mxu0 0.0
        %2525 = vmatpush1.msra.mxu0 0.0
        %2526 = vmatprep.subr.mxu0 0.0
        %2527 = vmatpush1.msra.mxu0 0.0
        %2528 = vmatprep.subr.mxu0 0.0
        %2529 = vmatpush1.msra.mxu0 0.0
        %2530 = vmatprep.subr.mxu0 0.0
        %2531 = vmatpush1.msra.mxu0 0.0
        %2532 = vmatprep.subr.mxu0 0.0
        %2533 = vmatpush1.msra.mxu0 0.0
        %2534 = vmatprep.mubr.f32.mxu0 0.0
        %2535 = vmatmul.mubr.f32.gmra.mrb[0].mxu0 %v2468
        %v2536 = vpop.f32.mrb[0].mxu0
        %v2537 = vadd.f32 %v393, %v2536
        %v2538 = vpop.f32.mrb[0].mxu0
        %v2539 = vadd.f32 %v397, %v2538
        %2540 = vdwg.mxu0
        %2541 = vmatprep.subr.mxu0 0.0
        %2542 = vmatpush1.msra.mxu0 %v2406
        %2543 = vmatprep.subr.mxu0 0.0
        %2544 = vmatpush1.msra.mxu0 %v2409
        %2545 = vmatprep.subr.mxu0 0.0
        %2546 = vmatpush1.msra.mxu0 %v2412
        %2547 = vmatprep.subr.mxu0 0.0
        %2548 = vmatpush1.msra.mxu0 %v2415
        %2549 = vmatprep.subr.mxu0 0.0
        %2550 = vmatpush1.msra.mxu0 %v2418
        %2551 = vmatprep.subr.mxu0 0.0
        %2552 = vmatpush1.msra.mxu0 %v2421
        %2553 = vmatprep.subr.mxu0 0.0
        %2554 = vmatpush1.msra.mxu0 %v2424
        %2555 = vmatprep.subr.mxu0 0.0
        %2556 = vmatpush1.msra.mxu0 %v2427
        %2557 = vmatprep.subr.mxu0 0.0
        %2558 = vmatpush1.msra.mxu0 %v2430
        %2559 = vmatprep.subr.mxu0 0.0
        %2560 = vmatpush1.msra.mxu0 %v2433
        %2561 = vmatprep.subr.mxu0 0.0
        %2562 = vmatpush1.msra.mxu0 %v2436
        %2563 = vmatprep.subr.mxu0 0.0
        %2564 = vmatpush1.msra.mxu0 %v2439
        %2565 = vmatprep.subr.mxu0 0.0
        %2566 = vmatpush1.msra.mxu0 %v2442
        %2567 = vmatprep.subr.mxu0 0.0
        %2568 = vmatpush1.msra.mxu0 %v2445
        %2569 = vmatprep.subr.mxu0 0.0
        %2570 = vmatpush1.msra.mxu0 %v2448
        %2571 = vmatprep.subr.mxu0 0.0
        %2572 = vmatpush1.msra.mxu0 %v2451
        %2573 = vmatprep.subr.mxu0 0.0
        %2574 = vmatpush1.msra.mxu0 0.0
        %2575 = vmatprep.subr.mxu0 0.0
        %2576 = vmatpush1.msra.mxu0 0.0
        %2577 = vmatprep.subr.mxu0 0.0
        %2578 = vmatpush1.msra.mxu0 0.0
        %2579 = vmatprep.subr.mxu0 0.0
        %2580 = vmatpush1.msra.mxu0 0.0
        %2581 = vmatprep.subr.mxu0 0.0
        %2582 = vmatpush1.msra.mxu0 0.0
        %2583 = vmatprep.subr.mxu0 0.0
        %2584 = vmatpush1.msra.mxu0 0.0
        %2585 = vmatprep.subr.mxu0 0.0
        %2586 = vmatpush1.msra.mxu0 0.0
        %2587 = vmatprep.subr.mxu0 0.0
        %2588 = vmatpush1.msra.mxu0 0.0
        %2589 = vmatprep.subr.mxu0 0.0
        %2590 = vmatpush1.msra.mxu0 0.0
        %2591 = vmatprep.subr.mxu0 0.0
        %2592 = vmatpush1.msra.mxu0 0.0
        %2593 = vmatprep.subr.mxu0 0.0
        %2594 = vmatpush1.msra.mxu0 0.0
        %2595 = vmatprep.subr.mxu0 0.0
        %2596 = vmatpush1.msra.mxu0 0.0
        %2597 = vmatprep.subr.mxu0 0.0
        %2598 = vmatpush1.msra.mxu0 0.0
        %2599 = vmatprep.subr.mxu0 0.0
        %2600 = vmatpush1.msra.mxu0 0.0
        %2601 = vmatprep.subr.mxu0 0.0
        %2602 = vmatpush1.msra.mxu0 0.0
        %2603 = vmatprep.subr.mxu0 0.0
        %2604 = vmatpush1.msra.mxu0 0.0
        %2605 = vmatprep.mubr.f32.mxu0 0.0
        %2606 = vmatmul.mubr.f32.gmra.mrb[0].mxu0 %v2468
        %v2607 = vpop.f32.mrb[0].mxu0
        %v2608 = vadd.f32 %v401, %v2607
        %v2609 = vpop.f32.mrb[0].mxu0
        %2610 = vdwg.mxu0
        %v2613 = vunpack.c.l.s4 1966171168
        %v2614 = vunpack.c.0.s8 %v2613
        %v2615 = vlaneseq
        %v2616 = vshrl.u32 %v2615, 7
        %v2617 = vsub.s32 %v2614, %v2616
        %v2618 = vrot.slane %v2537, %v2617
        %v2619 = vcombine.high %v2618, %v2618
        %v2621 = vunpack.c.l.s4 1966171168
        %v2622 = vunpack.c.0.s8 %v2621
        %v2623 = vlaneseq
        %v2624 = vshrl.u32 %v2623, 7
        %v2625 = vsub.s32 %v2622, %v2624
        %v2626 = vrot.slane %v2618, %v2625
        %v2628 = vunpack.c.l.s4 1966171168
        %v2629 = vunpack.c.0.s8 %v2628
        %v2630 = vlaneseq
        %v2631 = vshrl.u32 %v2630, 7
        %v2632 = vsub.s32 %v2629, %v2631
        %v2633 = vrot.slane %v2619, %v2632
        %v2636 = vadd.f32 %v2401, %v2626
        %v2637 = vadd.f32 %v2403, %v2633
        %v2638 = vsub.f32 0.0, %v2636
        %v2639 = vsub.f32 0.0, %v2637
        %v2640 = vmul.f32 %v2638, 1.442695
        %v2641 = vpow.pop %v2640
        %v2642 = vmul.f32 %v2639, 1.442695
        %v2643 = vpow.pop %v2642
        %v2644 = vadd.f32 %v2641, 1.0
        %v2645 = vadd.f32 %v2643, 1.0
        %v2646 = vrcp.pop %v2644
        %v2647 = vmul.f32 1.0, %v2646
        %v2648 = vrcp.pop %v2645
        %v2649 = vmul.f32 1.0, %v2648
        %v2652 = vrot.slane %v2401, 1
        %v2653 = vrot.slane %v2403, 1
        %v2658 = vunpack.c.l.s4 1966171168
        %v2659 = vunpack.c.0.s8 %v2658
        %v2660 = vlaneseq
        %v2661 = vshrl.u32 %v2660, 7
        %v2662 = vsub.s32 %v2659, %v2661
        %v2663 = vrot.slane %v2539, %v2662
        %v2664 = vcombine.high %v2663, %v2663
        %v2666 = vunpack.c.l.s4 1966171168
        %v2667 = vunpack.c.0.s8 %v2666
        %v2668 = vlaneseq
        %v2669 = vshrl.u32 %v2668, 7
        %v2670 = vsub.s32 %v2667, %v2669
        %v2671 = vrot.slane %v2663, %v2670
        %v2673 = vunpack.c.l.s4 1966171168
        %v2674 = vunpack.c.0.s8 %v2673
        %v2675 = vlaneseq
        %v2676 = vshrl.u32 %v2675, 7
        %v2677 = vsub.s32 %v2674, %v2676
        %v2678 = vrot.slane %v2664, %v2677
        %v2681 = vadd.f32 %v2652, %v2671
        %v2682 = vadd.f32 %v2653, %v2678
        %v2683 = vsub.f32 0.0, %v2681
        %v2684 = vsub.f32 0.0, %v2682
        %v2685 = vmul.f32 %v2683, 1.442695
        %v2686 = vpow.pop %v2685
        %v2687 = vmul.f32 %v2684, 1.442695
        %v2688 = vpow.pop %v2687
        %v2689 = vadd.f32 %v2686, 1.0
        %v2690 = vadd.f32 %v2688, 1.0
        %v2691 = vrcp.pop %v2689
        %v2692 = vmul.f32 1.0, %v2691
        %v2693 = vrcp.pop %v2690
        %v2694 = vmul.f32 1.0, %v2693
        %v2697 = vunpack.c.l.s4 1966171168
        %v2698 = vunpack.c.0.s8 %v2697
        %v2699 = vlaneseq
        %v2700 = vshrl.u32 %v2699, 7
        %v2701 = vsub.s32 %v2698, %v2700
        %v2702 = vrot.slane %v2608, %v2701
        %v2703 = vcombine.high %v2702, %v2702
        %v2705 = vunpack.c.l.s4 1966171168
        %v2706 = vunpack.c.0.s8 %v2705
        %v2707 = vlaneseq
        %v2708 = vshrl.u32 %v2707, 7
        %v2709 = vsub.s32 %v2706, %v2708
        %v2710 = vrot.slane %v2702, %v2709
        %v2712 = vunpack.c.l.s4 1966171168
        %v2713 = vunpack.c.0.s8 %v2712
        %v2714 = vlaneseq
        %v2715 = vshrl.u32 %v2714, 7
        %v2716 = vsub.s32 %v2713, %v2715
        %v2717 = vrot.slane %v2703, %v2716
        %v2720 = vmul.f32 %v2647, %v2710
        %v2721 = vmul.f32 %v2649, %v2717
        %v2722 = vrot.slane %v2401, 2
        %v2723 = vrot.slane %v2403, 2
        %v2726 = vadd.f32 %v2722, %v2720
        %v2727 = vadd.f32 %v2723, %v2721
        %v2728 = vtanh.pop %v2726
        %v2729 = vtanh.pop %v2727
        %v2730 = vsub.f32 1.0, %v2692
        %v2731 = vsub.f32 1.0, %v2694
        %v2732 = vmul.f32 %v2730, %v2728
        %v2733 = vmul.f32 %v2731, %v2729
        %v2734 = vmul.f32 %v2692, %v2396
        %v2735 = vmul.f32 %v2694, %v2397
        %v2736 = vadd.f32 %v2732, %v2734
        %v2737 = vadd.f32 %v2733, %v2735
        %2738 = vst [vmem:[%s308 + $0x6] sm:$0x1] %v2736
        %2739 = vst [vmem:[%s308 + $0xe] sm:$0x1] %v2737
        %s2740 = scalar_lea.vmem %s294, 7
        %v2741 = vld [vmem:[%s2740] ss:$8 sm:$0x7]
        %s2742 = scalar_lea.vmem %s294, 31
        %v2743 = vld [vmem:[%s2742] ss:$8 sm:$0x7]
        %v2744 = vld [vmem:[#allocation3] sm:$0xff]
        %v2745 = vld [vmem:[#allocation3 + $0x8] sm:$0xff]
        %v2746 = vld [vmem:[#allocation3 + $0x10] sm:$0xff]
        %v2747 = vld [vmem:[#allocation3 + $0x18] sm:$0xff]
        %v2748 = vld [vmem:[#allocation3 + $0x20] sm:$0xff]
        %v2749 = vld [vmem:[#allocation3 + $0x28] sm:$0xff]
        %v2750 = vld [vmem:[#allocation3 + $0x30] sm:$0xff]
        %v2751 = vld [vmem:[#allocation3 + $0x38] sm:$0xff]
        %v2752 = vld [vmem:[#allocation3 + $0x40] sm:$0xff]
        %v2753 = vld [vmem:[#allocation3 + $0x48] sm:$0xff]
        %v2754 = vld [vmem:[#allocation3 + $0x50] sm:$0xff]
        %v2755 = vld [vmem:[#allocation3 + $0x58] sm:$0xff]
        %v2756 = vld [vmem:[#allocation3 + $0x60] sm:$0xff]
        %v2757 = vld [vmem:[#allocation3 + $0x68] sm:$0xff]
        %v2758 = vld [vmem:[#allocation3 + $0x70] sm:$0xff]
        %v2759 = vld [vmem:[#allocation3 + $0x78] sm:$0xff]
        %v2760 = vld [vmem:[#allocation3 + $0x80] sm:$0xff]
        %v2761 = vld [vmem:[#allocation3 + $0x88] sm:$0xff]
        %v2762 = vld [vmem:[#allocation3 + $0x90] sm:$0xff]
        %v2763 = vld [vmem:[#allocation3 + $0x98] sm:$0xff]
        %v2764 = vld [vmem:[#allocation3 + $0xa0] sm:$0xff]
        %v2765 = vld [vmem:[#allocation3 + $0xa8] sm:$0xff]
        %v2766 = vld [vmem:[#allocation3 + $0xb0] sm:$0xff]
        %v2767 = vld [vmem:[#allocation3 + $0xb8] sm:$0xff]
        %v2768 = vld [vmem:[#allocation3 + $0xc0] sm:$0xff]
        %v2769 = vld [vmem:[#allocation3 + $0xc8] sm:$0xff]
        %v2770 = vld [vmem:[#allocation3 + $0xd0] sm:$0xff]
        %v2771 = vld [vmem:[#allocation3 + $0xd8] sm:$0xff]
        %v2772 = vld [vmem:[#allocation3 + $0xe0] sm:$0xff]
        %v2773 = vld [vmem:[#allocation3 + $0xe8] sm:$0xff]
        %v2774 = vld [vmem:[#allocation3 + $0xf0] sm:$0xff]
        %v2775 = vld [vmem:[#allocation3 + $0xf8] sm:$0xff]
        %v2776 = vld [vmem:[#allocation3 + $0x100] sm:$0xff]
        %v2777 = vld [vmem:[#allocation3 + $0x108] sm:$0xff]
        %v2778 = vld [vmem:[#allocation3 + $0x110] sm:$0xff]
        %v2779 = vld [vmem:[#allocation3 + $0x118] sm:$0xff]
        %v2780 = vld [vmem:[#allocation3 + $0x120] sm:$0xff]
        %v2781 = vld [vmem:[#allocation3 + $0x128] sm:$0xff]
        %v2782 = vld [vmem:[#allocation3 + $0x130] sm:$0xff]
        %v2783 = vld [vmem:[#allocation3 + $0x138] sm:$0xff]
        %v2784 = vld [vmem:[#allocation3 + $0x140] sm:$0xff]
        %v2785 = vld [vmem:[#allocation3 + $0x148] sm:$0xff]
        %v2786 = vld [vmem:[#allocation3 + $0x150] sm:$0xff]
        %v2787 = vld [vmem:[#allocation3 + $0x158] sm:$0xff]
        %v2788 = vld [vmem:[#allocation3 + $0x160] sm:$0xff]
        %v2789 = vld [vmem:[#allocation3 + $0x168] sm:$0xff]
        %v2790 = vld [vmem:[#allocation3 + $0x170] sm:$0xff]
        %v2791 = vld [vmem:[#allocation3 + $0x178] sm:$0xff]
        %v2794 = vcombine.low %v2736, %v2737
        %v2796 = vunpack.c.l.s4 1966171168
        %v2797 = vunpack.c.0.s8 %v2796
        %v2798 = vlaneseq
        %v2799 = vshrl.u32 %v2798, 7
        %v2800 = vsub.s32 %v2797, %v2799
        %v2801 = vrot.slane %v2794, %v2800
        %v2803 = vunpack.c.l.s4 1966171168
        %v2804 = vunpack.c.0.s8 %v2803
        %v2805 = vlaneseq
        %v2806 = vshrl.u32 %v2805, 7
        %v2807 = vsub.s32 %v2804, %v2806
        %v2808 = vrot.slane %v2801, %v2807
        %2810 = vmatprep.subr.mxu0 %v2745
        %2811 = vmatpush1.msra.mxu0 %v2744
        %2812 = vmatprep.subr.mxu0 %v2748
        %2813 = vmatpush1.msra.mxu0 %v2747
        %2814 = vmatprep.subr.mxu0 %v2751
        %2815 = vmatpush1.msra.mxu0 %v2750
        %2816 = vmatprep.subr.mxu0 %v2754
        %2817 = vmatpush1.msra.mxu0 %v2753
        %2818 = vmatprep.subr.mxu0 %v2757
        %2819 = vmatpush1.msra.mxu0 %v2756
        %2820 = vmatprep.subr.mxu0 %v2760
        %2821 = vmatpush1.msra.mxu0 %v2759
        %2822 = vmatprep.subr.mxu0 %v2763
        %2823 = vmatpush1.msra.mxu0 %v2762
        %2824 = vmatprep.subr.mxu0 %v2766
        %2825 = vmatpush1.msra.mxu0 %v2765
        %2826 = vmatprep.subr.mxu0 %v2769
        %2827 = vmatpush1.msra.mxu0 %v2768
        %2828 = vmatprep.subr.mxu0 %v2772
        %2829 = vmatpush1.msra.mxu0 %v2771
        %2830 = vmatprep.subr.mxu0 %v2775
        %2831 = vmatpush1.msra.mxu0 %v2774
        %2832 = vmatprep.subr.mxu0 %v2778
        %2833 = vmatpush1.msra.mxu0 %v2777
        %2834 = vmatprep.subr.mxu0 %v2781
        %2835 = vmatpush1.msra.mxu0 %v2780
        %2836 = vmatprep.subr.mxu0 %v2784
        %2837 = vmatpush1.msra.mxu0 %v2783
        %2838 = vmatprep.subr.mxu0 %v2787
        %2839 = vmatpush1.msra.mxu0 %v2786
        %2840 = vmatprep.subr.mxu0 %v2790
        %2841 = vmatpush1.msra.mxu0 %v2789
        %2842 = vmatprep.subr.mxu0 0.0
        %2843 = vmatpush1.msra.mxu0 0.0
        %2844 = vmatprep.subr.mxu0 0.0
        %2845 = vmatpush1.msra.mxu0 0.0
        %2846 = vmatprep.subr.mxu0 0.0
        %2847 = vmatpush1.msra.mxu0 0.0
        %2848 = vmatprep.subr.mxu0 0.0
        %2849 = vmatpush1.msra.mxu0 0.0
        %2850 = vmatprep.subr.mxu0 0.0
        %2851 = vmatpush1.msra.mxu0 0.0
        %2852 = vmatprep.subr.mxu0 0.0
        %2853 = vmatpush1.msra.mxu0 0.0
        %2854 = vmatprep.subr.mxu0 0.0
        %2855 = vmatpush1.msra.mxu0 0.0
        %2856 = vmatprep.subr.mxu0 0.0
        %2857 = vmatpush1.msra.mxu0 0.0
        %2858 = vmatprep.subr.mxu0 0.0
        %2859 = vmatpush1.msra.mxu0 0.0
        %2860 = vmatprep.subr.mxu0 0.0
        %2861 = vmatpush1.msra.mxu0 0.0
        %2862 = vmatprep.subr.mxu0 0.0
        %2863 = vmatpush1.msra.mxu0 0.0
        %2864 = vmatprep.subr.mxu0 0.0
        %2865 = vmatpush1.msra.mxu0 0.0
        %2866 = vmatprep.subr.mxu0 0.0
        %2867 = vmatpush1.msra.mxu0 0.0
        %2868 = vmatprep.subr.mxu0 0.0
        %2869 = vmatpush1.msra.mxu0 0.0
        %2870 = vmatprep.subr.mxu0 0.0
        %2871 = vmatpush1.msra.mxu0 0.0
        %2872 = vmatprep.subr.mxu0 0.0
        %2873 = vmatpush1.msra.mxu0 0.0
        %2874 = vmatprep.mubr.f32.mxu0 0.0
        %2875 = vmatmul.mubr.f32.gmra.mrb[0].mxu0 %v2808
        %v2876 = vpop.f32.mrb[0].mxu0
        %v2877 = vadd.f32 %v393, %v2876
        %v2878 = vpop.f32.mrb[0].mxu0
        %v2879 = vadd.f32 %v397, %v2878
        %2880 = vdwg.mxu0
        %2881 = vmatprep.subr.mxu0 0.0
        %2882 = vmatpush1.msra.mxu0 %v2746
        %2883 = vmatprep.subr.mxu0 0.0
        %2884 = vmatpush1.msra.mxu0 %v2749
        %2885 = vmatprep.subr.mxu0 0.0
        %2886 = vmatpush1.msra.mxu0 %v2752
        %2887 = vmatprep.subr.mxu0 0.0
        %2888 = vmatpush1.msra.mxu0 %v2755
        %2889 = vmatprep.subr.mxu0 0.0
        %2890 = vmatpush1.msra.mxu0 %v2758
        %2891 = vmatprep.subr.mxu0 0.0
        %2892 = vmatpush1.msra.mxu0 %v2761
        %2893 = vmatprep.subr.mxu0 0.0
        %2894 = vmatpush1.msra.mxu0 %v2764
        %2895 = vmatprep.subr.mxu0 0.0
        %2896 = vmatpush1.msra.mxu0 %v2767
        %2897 = vmatprep.subr.mxu0 0.0
        %2898 = vmatpush1.msra.mxu0 %v2770
        %2899 = vmatprep.subr.mxu0 0.0
        %2900 = vmatpush1.msra.mxu0 %v2773
        %2901 = vmatprep.subr.mxu0 0.0
        %2902 = vmatpush1.msra.mxu0 %v2776
        %2903 = vmatprep.subr.mxu0 0.0
        %2904 = vmatpush1.msra.mxu0 %v2779
        %2905 = vmatprep.subr.mxu0 0.0
        %2906 = vmatpush1.msra.mxu0 %v2782
        %2907 = vmatprep.subr.mxu0 0.0
        %2908 = vmatpush1.msra.mxu0 %v2785
        %2909 = vmatprep.subr.mxu0 0.0
        %2910 = vmatpush1.msra.mxu0 %v2788
        %2911 = vmatprep.subr.mxu0 0.0
        %2912 = vmatpush1.msra.mxu0 %v2791
        %2913 = vmatprep.subr.mxu0 0.0
        %2914 = vmatpush1.msra.mxu0 0.0
        %2915 = vmatprep.subr.mxu0 0.0
        %2916 = vmatpush1.msra.mxu0 0.0
        %2917 = vmatprep.subr.mxu0 0.0
        %2918 = vmatpush1.msra.mxu0 0.0
        %2919 = vmatprep.subr.mxu0 0.0
        %2920 = vmatpush1.msra.mxu0 0.0
        %2921 = vmatprep.subr.mxu0 0.0
        %2922 = vmatpush1.msra.mxu0 0.0
        %2923 = vmatprep.subr.mxu0 0.0
        %2924 = vmatpush1.msra.mxu0 0.0
        %2925 = vmatprep.subr.mxu0 0.0
        %2926 = vmatpush1.msra.mxu0 0.0
        %2927 = vmatprep.subr.mxu0 0.0
        %2928 = vmatpush1.msra.mxu0 0.0
        %2929 = vmatprep.subr.mxu0 0.0
        %2930 = vmatpush1.msra.mxu0 0.0
        %2931 = vmatprep.subr.mxu0 0.0
        %2932 = vmatpush1.msra.mxu0 0.0
        %2933 = vmatprep.subr.mxu0 0.0
        %2934 = vmatpush1.msra.mxu0 0.0
        %2935 = vmatprep.subr.mxu0 0.0
        %2936 = vmatpush1.msra.mxu0 0.0
        %2937 = vmatprep.subr.mxu0 0.0
        %2938 = vmatpush1.msra.mxu0 0.0
        %2939 = vmatprep.subr.mxu0 0.0
        %2940 = vmatpush1.msra.mxu0 0.0
        %2941 = vmatprep.subr.mxu0 0.0
        %2942 = vmatpush1.msra.mxu0 0.0
        %2943 = vmatprep.subr.mxu0 0.0
        %2944 = vmatpush1.msra.mxu0 0.0
        %2945 = vmatprep.mubr.f32.mxu0 0.0
        %2946 = vmatmul.mubr.f32.gmra.mrb[0].mxu0 %v2808
        %v2947 = vpop.f32.mrb[0].mxu0
        %v2948 = vadd.f32 %v401, %v2947
        %v2949 = vpop.f32.mrb[0].mxu0
        %2950 = vdwg.mxu0
        %v2953 = vunpack.c.l.s4 1966171168
        %v2954 = vunpack.c.0.s8 %v2953
        %v2955 = vlaneseq
        %v2956 = vshrl.u32 %v2955, 7
        %v2957 = vsub.s32 %v2954, %v2956
        %v2958 = vrot.slane %v2877, %v2957
        %v2959 = vcombine.high %v2958, %v2958
        %v2961 = vunpack.c.l.s4 1966171168
        %v2962 = vunpack.c.0.s8 %v2961
        %v2963 = vlaneseq
        %v2964 = vshrl.u32 %v2963, 7
        %v2965 = vsub.s32 %v2962, %v2964
        %v2966 = vrot.slane %v2958, %v2965
        %v2968 = vunpack.c.l.s4 1966171168
        %v2969 = vunpack.c.0.s8 %v2968
        %v2970 = vlaneseq
        %v2971 = vshrl.u32 %v2970, 7
        %v2972 = vsub.s32 %v2969, %v2971
        %v2973 = vrot.slane %v2959, %v2972
        %v2976 = vadd.f32 %v2741, %v2966
        %v2977 = vadd.f32 %v2743, %v2973
        %v2978 = vsub.f32 0.0, %v2976
        %v2979 = vsub.f32 0.0, %v2977
        %v2980 = vmul.f32 %v2978, 1.442695
        %v2981 = vpow.pop %v2980
        %v2982 = vmul.f32 %v2979, 1.442695
        %v2983 = vpow.pop %v2982
        %v2984 = vadd.f32 %v2981, 1.0
        %v2985 = vadd.f32 %v2983, 1.0
        %v2986 = vrcp.pop %v2984
        %v2987 = vmul.f32 1.0, %v2986
        %v2988 = vrcp.pop %v2985
        %v2989 = vmul.f32 1.0, %v2988
        %v2992 = vrot.slane %v2741, 1
        %v2993 = vrot.slane %v2743, 1
        %v2998 = vunpack.c.l.s4 1966171168
        %v2999 = vunpack.c.0.s8 %v2998
        %v3000 = vlaneseq
        %v3001 = vshrl.u32 %v3000, 7
        %v3002 = vsub.s32 %v2999, %v3001
        %v3003 = vrot.slane %v2879, %v3002
        %v3004 = vcombine.high %v3003, %v3003
        %v3006 = vunpack.c.l.s4 1966171168
        %v3007 = vunpack.c.0.s8 %v3006
        %v3008 = vlaneseq
        %v3009 = vshrl.u32 %v3008, 7
        %v3010 = vsub.s32 %v3007, %v3009
        %v3011 = vrot.slane %v3003, %v3010
        %v3013 = vunpack.c.l.s4 1966171168
        %v3014 = vunpack.c.0.s8 %v3013
        %v3015 = vlaneseq
        %v3016 = vshrl.u32 %v3015, 7
        %v3017 = vsub.s32 %v3014, %v3016
        %v3018 = vrot.slane %v3004, %v3017
        %v3021 = vadd.f32 %v2992, %v3011
        %v3022 = vadd.f32 %v2993, %v3018
        %v3023 = vsub.f32 0.0, %v3021
        %v3024 = vsub.f32 0.0, %v3022
        %v3025 = vmul.f32 %v3023, 1.442695
        %v3026 = vpow.pop %v3025
        %v3027 = vmul.f32 %v3024, 1.442695
        %v3028 = vpow.pop %v3027
        %v3029 = vadd.f32 %v3026, 1.0
        %v3030 = vadd.f32 %v3028, 1.0
        %v3031 = vrcp.pop %v3029
        %v3032 = vmul.f32 1.0, %v3031
        %v3033 = vrcp.pop %v3030
        %v3034 = vmul.f32 1.0, %v3033
        %v3037 = vunpack.c.l.s4 1966171168
        %v3038 = vunpack.c.0.s8 %v3037
        %v3039 = vlaneseq
        %v3040 = vshrl.u32 %v3039, 7
        %v3041 = vsub.s32 %v3038, %v3040
        %v3042 = vrot.slane %v2948, %v3041
        %v3043 = vcombine.high %v3042, %v3042
        %v3045 = vunpack.c.l.s4 1966171168
        %v3046 = vunpack.c.0.s8 %v3045
        %v3047 = vlaneseq
        %v3048 = vshrl.u32 %v3047, 7
        %v3049 = vsub.s32 %v3046, %v3048
        %v3050 = vrot.slane %v3042, %v3049
        %v3052 = vunpack.c.l.s4 1966171168
        %v3053 = vunpack.c.0.s8 %v3052
        %v3054 = vlaneseq
        %v3055 = vshrl.u32 %v3054, 7
        %v3056 = vsub.s32 %v3053, %v3055
        %v3057 = vrot.slane %v3043, %v3056
        %v3060 = vmul.f32 %v2987, %v3050
        %v3061 = vmul.f32 %v2989, %v3057
        %v3062 = vrot.slane %v2741, 2
        %v3063 = vrot.slane %v2743, 2
        %v3066 = vadd.f32 %v3062, %v3060
        %v3067 = vadd.f32 %v3063, %v3061
        %v3068 = vtanh.pop %v3066
        %v3069 = vtanh.pop %v3067
        %v3070 = vsub.f32 1.0, %v3032
        %v3071 = vsub.f32 1.0, %v3034
        %v3072 = vmul.f32 %v3070, %v3068
        %v3073 = vmul.f32 %v3071, %v3069
        %v3074 = vmul.f32 %v3032, %v2736
        %v3075 = vmul.f32 %v3034, %v2737
        %v3076 = vadd.f32 %v3072, %v3074
        %v3077 = vadd.f32 %v3073, %v3075
        %3078 = vst [vmem:[%s308 + $0x7] sm:$0x1] %v3076
        %3079 = vst [vmem:[%s308 + $0xf] sm:$0x1] %v3077
        %v3082 = vcombine.low %v3076, %v3077
        %v3084 = vunpack.c.l.s4 1966171168
        %v3085 = vunpack.c.0.s8 %v3084
        %v3086 = vlaneseq
        %v3087 = vshrl.u32 %v3086, 7
        %v3088 = vsub.s32 %v3085, %v3087
        %v3089 = vrot.slane %v3082, %v3088
        %v3091 = vunpack.c.l.s4 1966171168
        %v3092 = vunpack.c.0.s8 %v3091
        %v3093 = vlaneseq
        %v3094 = vshrl.u32 %v3093, 7
        %v3095 = vsub.s32 %v3092, %v3094
        %v3096 = vrot.slane %v3089, %v3095
        %3098 = vst [vmem:[#allocation2] sm:$0x3] %v3096
        // Predicated region
        $region45: #{_lambda_.2} parent=35 // pred_check
          %p3099 = pneg %p311
        $region46: #{_lambda_.2} parent=35 // pred_check_branch
          %3101 = sbr.rel (%p3099) target = $region48
        $region47: #{_lambda_.2} parent=35 // pred_region
          %3102 = vst [vmem:[%s284] sm:$0x1] %v3076
          %3103 = vst [vmem:[%s284 + $0x1] sm:$0x1] %v3077
        $region48: #{_lambda_.2} parent=35 // pred_fallthru
          _
        %s3104 = smul.u32 2, %s25
        %p3105 = scmp.lt.s32.totalorder %s3104, 3
        %s3106 = scalar_select %p3105, %s3104, 3
        %p3107 = scmp.lt.s32.totalorder %s26, 0
        %s3108 = scalar_select %p3107, %s26, 0
        %s3109 = sadd.s32 %s3108, %s3106
        %s3110 = smul.addr %s3109, 8
        %s3111 = scalar_lea.vmem %s4, %s3110
        %s3112 = sand.u32 %s165, 1
        %s3113 = scalar_lea.sflag [#allocation5], %s3112
        %s3114 = sand.u32 %s165, 1
        %s3115 = smul.addr %s3114, 2
        %s3116 = scalar_lea.vmem [#allocation6], %s3115
        // Predicated region
        $region49: #{_lambda_.2} parent=35 // pred_check
          %p3117 = pneg %p149
        $region50: #{_lambda_.2} parent=35 // pred_check_branch
          %3119 = sbr.rel (%p3117) target = $region52
        $region51: #{_lambda_.2} parent=35 // pred_region
          %s3120 = smul.u32 2, %s25
        $region52: #{_lambda_.2} parent=35 // pred_fallthru
          _
        // Predicated region
        $region53: #{_lambda_.2} parent=35 // pred_check
          %p3121 = pneg %p175
        $region54: #{_lambda_.2} parent=35 // pred_check_branch
          %3123 = sbr.rel (%p3121) target = $region56
        $region55: #{_lambda_.2} parent=35 // pred_region
          %s3124 = smul.u32 2, %s25
          %s3126 = ssub.s32 32, 32
          %3127 = vsyncadd %s3113, %s3126
          %s3128 = smul.addr %s3124, 16
          %s3129 = scalar_lea.hbm %s5, %s3128
          %s3130 = sshll.u32 %s3116, 4
          %s3131 = int_to_ptr.vmem [resolvable:$true] %s3130
          %3136 = dma.vmem_to_hbm [thread:$0]  %s3131, 32, %s3129, %s3113, 16, 16, 1
        $region56: #{_lambda_.2} parent=35 // pred_fallthru
          _
      $region36: #{_lambda_.2} parent=5 // pred_fallthru
        _
      %p3137 = scmp.le.s32.totalorder 2, %s16
      // Predicated region
      $region57: #{_lambda_.2} parent=5 // pred_check
        %p3138 = pneg %p3137
      $region58: #{_lambda_.2} parent=5 // pred_check_branch
        %3140 = sbr.rel (%p3138) target = $region60
      $region59: #{_lambda_.2} parent=5 // pred_region
        %s3141 = ssub.s32 %s16, 2
        // Predicated region
        $region61: #{_lambda_.2} parent=59 // pred_check
          %p3142 = pneg %p155
        $region62: #{_lambda_.2} parent=59 // pred_check_branch
          %3144 = sbr.rel (%p3142) target = $region64
        $region63: #{_lambda_.2} parent=59 // pred_region
          %s3145 = smul.u32 2, %s27
          %p3146 = scmp.lt.s32.totalorder %s3145, 3
          %s3147 = scalar_select %p3146, %s3145, 3
          %p3148 = scmp.lt.s32.totalorder %s28, 0
          %s3149 = scalar_select %p3148, %s28, 0
          %s3150 = sadd.s32 %s3149, %s3147
          %s3151 = smul.addr %s3150, 8
          %s3152 = scalar_lea.vmem %s4, %s3151
        $region64: #{_lambda_.2} parent=59 // pred_fallthru
          _
        // Predicated region
        $region65: #{_lambda_.2} parent=59 // pred_check
          %p3153 = pneg %p181
        $region66: #{_lambda_.2} parent=59 // pred_check_branch
          %3155 = sbr.rel (%p3153) target = $region68
        $region67: #{_lambda_.2} parent=59 // pred_region
          %s3156 = sand.u32 %s166, 1
          %s3157 = scalar_lea.sflag [#allocation5], %s3156
          %s3158 = sand.u32 %s166, 1
          %s3159 = smul.addr %s3158, 2
          %s3160 = scalar_lea.vmem [#allocation6], %s3159
          %3161 = dma.done %s3157, 32
        $region68: #{_lambda_.2} parent=59 // pred_fallthru
          _
      $region60: #{_lambda_.2} parent=5 // pred_fallthru
        _
    $region6: #{_lambda_.2} parent=1 // loop_footer
      %s20 = sadd.s32 1, %s16
    $region7: #{_lambda_.2} parent=1 // loop_footer_branch
      %15 = sbr.rel target = $region3
    $region8: #{_lambda_.2} parent=1 // loop_exit
      _
    %3162 = vsyncpa [#allocation4], 1
    %s3163 = scalar_lea.sflag [#allocation4], 1
    %3164 = vsyncpa %s3163, 1
    %3165 = vsyncpa [#allocation5], 1
    %s3166 = scalar_lea.sflag [#allocation5], 1
    %3167 = vsyncpa %s3166, 1

</llo_original>
